<compile_context>
chip_gen: v6e
topology: v6e:2x2x1
jax: 0.10.0
libtpu: 0.0.40
codegen_flags: <defaults>
</compile_context>

<pallas_src>
from functools import partial

import jax
import jax.numpy as jnp
from jax.experimental import pallas as pl
from jax.experimental.pallas import tpu as pltpu

IMG_SHAPE = (1, 28, 28)
LATENT_DIM = 100
HIDDEN = (256, 512, 1024)
OUT_DIM = IMG_SHAPE[0] * IMG_SHAPE[1] * IMG_SHAPE[2]  # 784

LATENT_PAD = 128  # pad K of layer 1 to a full lane tile


def _leaky_relu(x, slope=0.2):
    return jnp.where(x > 0, x, slope * x)


def generator_kernel(z_ref,
                     w1_ref, b1_ref,
                     w2_ref, b2_ref,
                     w3_ref, b3_ref,
                     w4_ref, b4_ref,
                     out_ref):
    # Layer 1: Linear(128pad -> 256) + LeakyReLU(0.2).  bf16 operands, f32 acc.
    h = jnp.dot(z_ref[...], w1_ref[...], preferred_element_type=jnp.float32)
    h = _leaky_relu(h + b1_ref[...])
    # Layer 2: Linear(256 -> 512) + LeakyReLU(0.2)
    h = jnp.dot(h.astype(jnp.bfloat16), w2_ref[...],
                preferred_element_type=jnp.float32)
    h = _leaky_relu(h + b2_ref[...])
    # Layer 3: Linear(512 -> 1024) + LeakyReLU(0.2)
    h = jnp.dot(h.astype(jnp.bfloat16), w3_ref[...],
                preferred_element_type=jnp.float32)
    h = _leaky_relu(h + b3_ref[...])
    # Layer 4: Linear(1024 -> 784) + Tanh (native 784-wide output block).
    h = jnp.dot(h.astype(jnp.bfloat16), w4_ref[...],
                preferred_element_type=jnp.float32)
    out_ref[...] = jnp.tanh(h + b4_ref[...])


def prepare_params(params):
    """One-time param prep: bf16 weight cast + zero-pad latent dim 100->128.

    Do this once (outside the training/inference step) so the per-call path
    does not re-read the f32 weights from HBM.
    """
    (w1, b1), (w2, b2), (w3, b3), (w4, b4) = params
    w1p = (jnp.zeros((LATENT_PAD, HIDDEN[0]), jnp.bfloat16)
           .at[:LATENT_DIM, :].set(w1.astype(jnp.bfloat16)))
    return (w1p, b1,
            w2.astype(jnp.bfloat16), b2,
            w3.astype(jnp.bfloat16), b3,
            w4.astype(jnp.bfloat16), b4)


@partial(jax.jit, static_argnames=("tm",))
def generator_forward(z, prepared, *, tm=256):
    """z: (B, LATENT_DIM) f32 -> img: (B, 1, 28, 28) f32.

    tm: max batch-tile rows.  Default 256 (v6e/v7x MXU height); use 128 on v5e.
    """
    w1p, b1, w2, b2, w3, b3, w4, b4 = prepared
    B = z.shape[0]

    # Batch tile: multiple of 8, and capped at ceil(B/2) (rounded up to 8) so
    # the grid has >= 2 steps whenever possible -> both v7x TCs get work.
    half = max(8, ((-(-B // 2) + 7) // 8) * 8)
    tm_eff = min(tm, half)
    b_pad = pl.cdiv(B, tm_eff) * tm_eff

    # z in bf16, padded batch rows + latent cols are zero.
    zp = (jnp.zeros((b_pad, LATENT_PAD), jnp.bfloat16)
          .at[:B, :LATENT_DIM].set(z.astype(jnp.bfloat16)))

    grid = (b_pad // tm_eff,)

    flat = pl.pallas_call(
        generator_kernel,
        out_shape=jax.ShapeDtypeStruct((b_pad, OUT_DIM), jnp.float32),
        grid_spec=pltpu.PrefetchScalarGridSpec(
            num_scalar_prefetch=0,
            grid=grid,
            in_specs=[
                # z tile: streams with the grid.
                pl.BlockSpec((tm_eff, LATENT_PAD), lambda i: (i, 0)),
                # Weights / biases: constant index_map -> fetched once,
                # VMEM-resident for the whole grid.
                pl.BlockSpec((LATENT_PAD, HIDDEN[0]), lambda i: (0, 0)),
                pl.BlockSpec((1, HIDDEN[0]), lambda i: (0, 0)),
                pl.BlockSpec((HIDDEN[0], HIDDEN[1]), lambda i: (0, 0)),
                pl.BlockSpec((1, HIDDEN[1]), lambda i: (0, 0)),
                pl.BlockSpec((HIDDEN[1], HIDDEN[2]), lambda i: (0, 0)),
                pl.BlockSpec((1, HIDDEN[2]), lambda i: (0, 0)),
                # 784 == full array dim, so a non-128-multiple block is legal.
                pl.BlockSpec((HIDDEN[2], OUT_DIM), lambda i: (0, 0)),
                pl.BlockSpec((1, OUT_DIM), lambda i: (0, 0)),
            ],
            out_specs=pl.BlockSpec((tm_eff, OUT_DIM), lambda i: (i, 0)),
        ),
        compiler_params=pltpu.CompilerParams(
            dimension_semantics=("parallel",),
            vmem_limit_bytes=32 << 20,
        ),
    )(zp, w1p, b1, w2, b2, w3, b3, w4, b4)

    # Strip batch padding (no-op when B % tm_eff == 0); reshape is metadata.
    return flat[:B].reshape(B, *IMG_SHAPE)


def init_params(key):
    """Deterministic synthetic parameters matching the PyTorch module shapes.

    PyTorch nn.Linear stores W as (out, in); we generate W directly as
    (in, out) so the kernel computes x @ W + b with identical semantics.
    Biases are stored as (1, out) for TPU-friendly broadcasting.
    """
    dims = (LATENT_DIM,) + HIDDEN + (OUT_DIM,)
    params = []
    for i in range(4):
        key, wk, bk = jax.random.split(key, 3)
        fan_in, fan_out = dims[i], dims[i + 1]
        bound = 1.0 / jnp.sqrt(fan_in)
        w = jax.random.uniform(wk, (fan_in, fan_out), jnp.float32, -bound, bound)
        b = jax.random.uniform(bk, (1, fan_out), jnp.float32, -bound, bound)
        params.append((w, b))
    return params


def reference_forward_bf16(z, params):
    """Same numerics as the kernel: bf16 inputs/weights, f32 accumulation."""
    h = z
    for i, (w, b) in enumerate(params):
        h = jnp.dot(h.astype(jnp.bfloat16), w.astype(jnp.bfloat16),
                    preferred_element_type=jnp.float32) + b
        h = jnp.where(h > 0, h, 0.2 * h) if i < 3 else jnp.tanh(h)
    return h.reshape(z.shape[0], *IMG_SHAPE)


def reference_forward_f32(z, params):
    """Full-precision reference of the original PyTorch module."""
    h = z
    for i, (w, b) in enumerate(params):
        h = h @ w + b
        h = jnp.where(h > 0, h, 0.2 * h) if i < 3 else jnp.tanh(h)
    return h.reshape(z.shape[0], *IMG_SHAPE)


if __name__ == "__main__":
    key = jax.random.PRNGKey(0)
    key, zk = jax.random.split(key)

    B = 8
    z = jax.random.normal(zk, (B, LATENT_DIM), jnp.float32)
    params = init_params(key)

    prepared = prepare_params(params)  # one-time bf16 cast + padding
    img = jax.block_until_ready(generator_forward(z, prepared))

    assert img.shape == (B, 1, 28, 28), img.shape
    assert img.dtype == jnp.float32

    # Exact-numerics check against a bf16-weight/activation JAX reference.
    ref = reference_forward_bf16(z, params)
    err = float(jnp.max(jnp.abs(img - ref)))
    assert err < 2e-3, f"max abs error vs bf16 reference: {err}"

    # Loose check against the full-f32 semantics of the PyTorch module.
    ref32 = reference_forward_f32(z, params)
    err32 = float(jnp.max(jnp.abs(img - ref32)))
    assert err32 < 5e-2, f"max abs error vs f32 reference: {err32}"

    print("KERNEL_OK")
</pallas_src>

<mosaic_0001>
module attributes {stable_mosaic.version = 11 : i64} {
  func.func @generator_kernel(%arg0: i32, %arg1: memref<8x128xbf16, #tpu.memory_space<vmem>>, %arg2: memref<128x256xbf16, #tpu.memory_space<vmem>>, %arg3: memref<1x256xf32, #tpu.memory_space<vmem>>, %arg4: memref<256x512xbf16, #tpu.memory_space<vmem>>, %arg5: memref<1x512xf32, #tpu.memory_space<vmem>>, %arg6: memref<512x1024xbf16, #tpu.memory_space<vmem>>, %arg7: memref<1x1024xf32, #tpu.memory_space<vmem>>, %arg8: memref<1024x784xbf16, #tpu.memory_space<vmem>>, %arg9: memref<1x784xf32, #tpu.memory_space<vmem>>, %arg10: memref<8x784xf32, #tpu.memory_space<vmem>>) attributes {dimension_semantics = [#tpu.dimension_semantics<parallel>], iteration_bounds = array<i64: 1>, scalar_prefetch = 0 : i64, scratch_operands = 0 : i64, tpu.core_type = #tpu.core_type<tc>, window_params = [{transform_indices = @transform_0, window_bounds = array<i64: 8, 128>}, {pipeline_mode = #tpu.pipeline_mode<synchronous>, transform_indices = @transform_1, window_bounds = array<i64: 128, 256>}, {pipeline_mode = #tpu.pipeline_mode<synchronous>, transform_indices = @transform_2, window_bounds = array<i64: 1, 256>}, {pipeline_mode = #tpu.pipeline_mode<synchronous>, transform_indices = @transform_3, window_bounds = array<i64: 256, 512>}, {pipeline_mode = #tpu.pipeline_mode<synchronous>, transform_indices = @transform_4, window_bounds = array<i64: 1, 512>}, {pipeline_mode = #tpu.pipeline_mode<synchronous>, transform_indices = @transform_5, window_bounds = array<i64: 512, 1024>}, {pipeline_mode = #tpu.pipeline_mode<synchronous>, transform_indices = @transform_6, window_bounds = array<i64: 1, 1024>}, {pipeline_mode = #tpu.pipeline_mode<synchronous>, transform_indices = @transform_7, window_bounds = array<i64: 1024, 784>}, {pipeline_mode = #tpu.pipeline_mode<synchronous>, transform_indices = @transform_8, window_bounds = array<i64: 1, 784>}, {transform_indices = @transform_9, window_bounds = array<i64: 8, 784>}]} {
    %c0 = arith.constant 0 : index
    %c0_0 = arith.constant 0 : index
    %0 = vector.load %arg1[%c0, %c0_0] : memref<8x128xbf16, #tpu.memory_space<vmem>>, vector<8x128xbf16>
    %c0_1 = arith.constant 0 : index
    %c0_2 = arith.constant 0 : index
    %1 = vector.load %arg2[%c0_1, %c0_2] : memref<128x256xbf16, #tpu.memory_space<vmem>>, vector<128x256xbf16>
    %cst = arith.constant dense<0.000000e+00> : vector<8x256xf32>
    %2 = tpu.matmul %0, %1, %cst {dimension_numbers = #tpu.dot_dimension_numbers<[1], [0], [0], [1], [0, 0, 1, 1], [], []>} : vector<8x128xbf16>, vector<128x256xbf16>, vector<8x256xf32> -> vector<8x256xf32>
    %c0_3 = arith.constant 0 : index
    %c0_4 = arith.constant 0 : index
    %3 = vector.load %arg3[%c0_3, %c0_4] : memref<1x256xf32, #tpu.memory_space<vmem>>, vector<1x256xf32>
    %4 = vector.broadcast %3 : vector<1x256xf32> to vector<8x256xf32>
    %5 = arith.addf %2, %4 : vector<8x256xf32>
    %cst_5 = arith.constant 0.000000e+00 : f32
    %6 = vector.broadcast %cst_5 : f32 to vector<8x256xf32>
    %7 = arith.cmpf ogt, %5, %6 : vector<8x256xf32>
    %cst_6 = arith.constant 2.000000e-01 : f32
    %8 = vector.broadcast %cst_6 : f32 to vector<8x256xf32>
    %9 = arith.mulf %8, %5 : vector<8x256xf32>
    %10 = arith.select %7, %5, %9 : vector<8x256xi1>, vector<8x256xf32>
    %11 = arith.truncf %10 : vector<8x256xf32> to vector<8x256xbf16>
    %c0_7 = arith.constant 0 : index
    %c0_8 = arith.constant 0 : index
    %12 = vector.load %arg4[%c0_7, %c0_8] : memref<256x512xbf16, #tpu.memory_space<vmem>>, vector<256x512xbf16>
    %cst_9 = arith.constant dense<0.000000e+00> : vector<8x512xf32>
    %13 = tpu.matmul %11, %12, %cst_9 {dimension_numbers = #tpu.dot_dimension_numbers<[1], [0], [0], [1], [0, 0, 1, 1], [], []>} : vector<8x256xbf16>, vector<256x512xbf16>, vector<8x512xf32> -> vector<8x512xf32>
    %c0_10 = arith.constant 0 : index
    %c0_11 = arith.constant 0 : index
    %14 = vector.load %arg5[%c0_10, %c0_11] : memref<1x512xf32, #tpu.memory_space<vmem>>, vector<1x512xf32>
    %15 = vector.broadcast %14 : vector<1x512xf32> to vector<8x512xf32>
    %16 = arith.addf %13, %15 : vector<8x512xf32>
    %cst_12 = arith.constant 0.000000e+00 : f32
    %17 = vector.broadcast %cst_12 : f32 to vector<8x512xf32>
    %18 = arith.cmpf ogt, %16, %17 : vector<8x512xf32>
    %cst_13 = arith.constant 2.000000e-01 : f32
    %19 = vector.broadcast %cst_13 : f32 to vector<8x512xf32>
    %20 = arith.mulf %19, %16 : vector<8x512xf32>
    %21 = arith.select %18, %16, %20 : vector<8x512xi1>, vector<8x512xf32>
    %22 = arith.truncf %21 : vector<8x512xf32> to vector<8x512xbf16>
    %c0_14 = arith.constant 0 : index
    %c0_15 = arith.constant 0 : index
    %23 = vector.load %arg6[%c0_14, %c0_15] : memref<512x1024xbf16, #tpu.memory_space<vmem>>, vector<512x1024xbf16>
    %cst_16 = arith.constant dense<0.000000e+00> : vector<8x1024xf32>
    %24 = tpu.matmul %22, %23, %cst_16 {dimension_numbers = #tpu.dot_dimension_numbers<[1], [0], [0], [1], [0, 0, 1, 1], [], []>} : vector<8x512xbf16>, vector<512x1024xbf16>, vector<8x1024xf32> -> vector<8x1024xf32>
    %c0_17 = arith.constant 0 : index
    %c0_18 = arith.constant 0 : index
    %25 = vector.load %arg7[%c0_17, %c0_18] : memref<1x1024xf32, #tpu.memory_space<vmem>>, vector<1x1024xf32>
    %26 = vector.broadcast %25 : vector<1x1024xf32> to vector<8x1024xf32>
    %27 = arith.addf %24, %26 : vector<8x1024xf32>
    %cst_19 = arith.constant 0.000000e+00 : f32
    %28 = vector.broadcast %cst_19 : f32 to vector<8x1024xf32>
    %29 = arith.cmpf ogt, %27, %28 : vector<8x1024xf32>
    %cst_20 = arith.constant 2.000000e-01 : f32
    %30 = vector.broadcast %cst_20 : f32 to vector<8x1024xf32>
    %31 = arith.mulf %30, %27 : vector<8x1024xf32>
    %32 = arith.select %29, %27, %31 : vector<8x1024xi1>, vector<8x1024xf32>
    %33 = arith.truncf %32 : vector<8x1024xf32> to vector<8x1024xbf16>
    %c0_21 = arith.constant 0 : index
    %c0_22 = arith.constant 0 : index
    %34 = vector.load %arg8[%c0_21, %c0_22] : memref<1024x784xbf16, #tpu.memory_space<vmem>>, vector<1024x784xbf16>
    %cst_23 = arith.constant dense<0.000000e+00> : vector<8x784xf32>
    %35 = tpu.matmul %33, %34, %cst_23 {dimension_numbers = #tpu.dot_dimension_numbers<[1], [0], [0], [1], [0, 0, 1, 1], [], []>} : vector<8x1024xbf16>, vector<1024x784xbf16>, vector<8x784xf32> -> vector<8x784xf32>
    %c0_24 = arith.constant 0 : index
    %c0_25 = arith.constant 0 : index
    %36 = vector.load %arg9[%c0_24, %c0_25] : memref<1x784xf32, #tpu.memory_space<vmem>>, vector<1x784xf32>
    %37 = vector.broadcast %36 : vector<1x784xf32> to vector<8x784xf32>
    %38 = arith.addf %35, %37 : vector<8x784xf32>
    %39 = math.tanh %38 : vector<8x784xf32>
    %c0_26 = arith.constant 0 : index
    %c0_27 = arith.constant 0 : index
    %40 = vector.load %arg10[%c0_26, %c0_27] : memref<8x784xf32, #tpu.memory_space<vmem>>, vector<8x784xf32>
    tpu.vector_store %arg10[%c0_26, %c0_27], %39 {strides = array<i32>} : memref<8x784xf32, #tpu.memory_space<vmem>>, vector<8x784xf32>,
    return
  }
  func.func @transform_0(%arg0: i32) -> (i32, i32) {
    %c0_i32 = arith.constant 0 : i32
    %c0_i32_0 = arith.constant 0 : i32
    return %arg0, %c0_i32 : i32, i32
  }
  func.func @transform_1(%arg0: i32) -> (i32, i32) {
    %c0_i32 = arith.constant 0 : i32
    %c0_i32_0 = arith.constant 0 : i32
    %c0_i32_1 = arith.constant 0 : i32
    return %c0_i32, %c0_i32_0 : i32, i32
  }
  func.func @transform_2(%arg0: i32) -> (i32, i32) {
    %c0_i32 = arith.constant 0 : i32
    %c0_i32_0 = arith.constant 0 : i32
    %c0_i32_1 = arith.constant 0 : i32
    return %c0_i32, %c0_i32_0 : i32, i32
  }
  func.func @transform_3(%arg0: i32) -> (i32, i32) {
    %c0_i32 = arith.constant 0 : i32
    %c0_i32_0 = arith.constant 0 : i32
    %c0_i32_1 = arith.constant 0 : i32
    return %c0_i32, %c0_i32_0 : i32, i32
  }
  func.func @transform_4(%arg0: i32) -> (i32, i32) {
    %c0_i32 = arith.constant 0 : i32
    %c0_i32_0 = arith.constant 0 : i32
    %c0_i32_1 = arith.constant 0 : i32
    return %c0_i32, %c0_i32_0 : i32, i32
  }
  func.func @transform_5(%arg0: i32) -> (i32, i32) {
    %c0_i32 = arith.constant 0 : i32
    %c0_i32_0 = arith.constant 0 : i32
    %c0_i32_1 = arith.constant 0 : i32
    return %c0_i32, %c0_i32_0 : i32, i32
  }
  func.func @transform_6(%arg0: i32) -> (i32, i32) {
    %c0_i32 = arith.constant 0 : i32
    %c0_i32_0 = arith.constant 0 : i32
    %c0_i32_1 = arith.constant 0 : i32
    return %c0_i32, %c0_i32_0 : i32, i32
  }
  func.func @transform_7(%arg0: i32) -> (i32, i32) {
    %c0_i32 = arith.constant 0 : i32
    %c0_i32_0 = arith.constant 0 : i32
    %c0_i32_1 = arith.constant 0 : i32
    return %c0_i32, %c0_i32_0 : i32, i32
  }
  func.func @transform_8(%arg0: i32) -> (i32, i32) {
    %c0_i32 = arith.constant 0 : i32
    %c0_i32_0 = arith.constant 0 : i32
    %c0_i32_1 = arith.constant 0 : i32
    return %c0_i32, %c0_i32_0 : i32, i32
  }
  func.func @transform_9(%arg0: i32) -> (i32, i32) {
    %c0_i32 = arith.constant 0 : i32
    %c0_i32_0 = arith.constant 0 : i32
    return %arg0, %c0_i32 : i32, i32
  }
}

</mosaic_0001>

<llo_original>
// kernel: generator_forward.1
$region0: #{generator_forward.1}
  #allocation0 [shape = 'u32[]', space=smem, size = 0x4, offset = 0x4, fixed_abs, tag = 'smem constant byte address 0x4 - core index']
  #allocation1 [shape = 'u32[144,128]{1,0:T(1,128)}', space=vmem, size = 0x12000, scoped, tag = 'internal scratch']
  %s0 = inlined_call_operand.vmem [shape: bf16[8,128], index: 0, kind: input, shape index: {}]
  %s1 = inlined_call_operand.vmem [shape: bf16[128,256], index: 1, kind: input, shape index: {}]
  %s2 = inlined_call_operand.vmem [shape: f32[1,256], index: 2, kind: input, shape index: {}]
  %s3 = inlined_call_operand.vmem [shape: bf16[256,512], index: 3, kind: input, shape index: {}]
  %s4 = inlined_call_operand.vmem [shape: f32[1,512], index: 4, kind: input, shape index: {}]
  %s5 = inlined_call_operand.vmem [shape: bf16[512,1024], index: 5, kind: input, shape index: {}]
  %s6 = inlined_call_operand.vmem [shape: f32[1,1024], index: 6, kind: input, shape index: {}]
  %s7 = inlined_call_operand.vmem [shape: bf16[1024,784], index: 7, kind: input, shape index: {}]
  %s8 = inlined_call_operand.vmem [shape: f32[1,784], index: 8, kind: input, shape index: {}]
  %s9 = inlined_call_operand.vmem [shape: f32[8,784], index: 9, kind: output, shape index: {}]
  %s10 = sld [smem:[#allocation0]]
  $region46: #{generator_forward.1} parent=0
    _
  %s12 = ssub.s32 1, %s10
  %s13 = scalar_select 0, %s12, %s10
  // Predicated region
  $region2: #{generator_forward.1} parent=0 // pred_check
    _
  $region3: #{generator_forward.1} parent=0 // pred_check_branch
    %15 = sbr.rel (0) target = $region5
  $region4: #{generator_forward.1} parent=0 // pred_region
    _
  $region5: #{generator_forward.1} parent=0 // pred_fallthru
    _
  // Predicated region
  $region6: #{generator_forward.1} parent=0 // pred_check
    _
  $region7: #{generator_forward.1} parent=0 // pred_check_branch
    %17 = sbr.rel (0) target = $region9
  $region8: #{generator_forward.1} parent=0 // pred_region
    _
  $region9: #{generator_forward.1} parent=0 // pred_fallthru
    _
  // Predicated region
  $region10: #{generator_forward.1} parent=0 // pred_check
    _
  $region11: #{generator_forward.1} parent=0 // pred_check_branch
    %19 = sbr.rel (0) target = $region13
  $region12: #{generator_forward.1} parent=0 // pred_region
    _
  $region13: #{generator_forward.1} parent=0 // pred_fallthru
    _
  // Predicated region
  $region14: #{generator_forward.1} parent=0 // pred_check
    _
  $region15: #{generator_forward.1} parent=0 // pred_check_branch
    %21 = sbr.rel (0) target = $region17
  $region16: #{generator_forward.1} parent=0 // pred_region
    _
  $region17: #{generator_forward.1} parent=0 // pred_fallthru
    _
  // Predicated region
  $region18: #{generator_forward.1} parent=0 // pred_check
    _
  $region19: #{generator_forward.1} parent=0 // pred_check_branch
    %23 = sbr.rel (0) target = $region21
  $region20: #{generator_forward.1} parent=0 // pred_region
    _
  $region21: #{generator_forward.1} parent=0 // pred_fallthru
    _
  // Predicated region
  $region22: #{generator_forward.1} parent=0 // pred_check
    _
  $region23: #{generator_forward.1} parent=0 // pred_check_branch
    %25 = sbr.rel (0) target = $region25
  $region24: #{generator_forward.1} parent=0 // pred_region
    _
  $region25: #{generator_forward.1} parent=0 // pred_fallthru
    _
  // Predicated region
  $region26: #{generator_forward.1} parent=0 // pred_check
    _
  $region27: #{generator_forward.1} parent=0 // pred_check_branch
    %27 = sbr.rel (0) target = $region29
  $region28: #{generator_forward.1} parent=0 // pred_region
    _
  $region29: #{generator_forward.1} parent=0 // pred_fallthru
    _
  // Predicated region
  $region30: #{generator_forward.1} parent=0 // pred_check
    _
  $region31: #{generator_forward.1} parent=0 // pred_check_branch
    %29 = sbr.rel (0) target = $region33
  $region32: #{generator_forward.1} parent=0 // pred_region
    _
  $region33: #{generator_forward.1} parent=0 // pred_fallthru
    _
  // Predicated region
  $region34: #{generator_forward.1} parent=0 // pred_check
    _
  $region35: #{generator_forward.1} parent=0 // pred_check_branch
    %31 = sbr.rel (0) target = $region37
  $region36: #{generator_forward.1} parent=0 // pred_region
    _
  $region37: #{generator_forward.1} parent=0 // pred_fallthru
    _
  %v33 = vld [vmem:[%s0] sm:$0xf]
  %v34 = vld [vmem:[%s1] sm:$0xff]
  %v35 = vld [vmem:[%s1 + $0x8] sm:$0xff]
  %v36 = vld [vmem:[%s1 + $0x10] sm:$0xff]
  %v37 = vld [vmem:[%s1 + $0x18] sm:$0xff]
  %v38 = vld [vmem:[%s1 + $0x20] sm:$0xff]
  %v39 = vld [vmem:[%s1 + $0x28] sm:$0xff]
  %v40 = vld [vmem:[%s1 + $0x30] sm:$0xff]
  %v41 = vld [vmem:[%s1 + $0x38] sm:$0xff]
  %v42 = vld [vmem:[%s1 + $0x40] sm:$0xff]
  %v43 = vld [vmem:[%s1 + $0x48] sm:$0xff]
  %v44 = vld [vmem:[%s1 + $0x50] sm:$0xff]
  %v45 = vld [vmem:[%s1 + $0x58] sm:$0xff]
  %v46 = vld [vmem:[%s1 + $0x60] sm:$0xff]
  %v47 = vld [vmem:[%s1 + $0x68] sm:$0xff]
  %v48 = vld [vmem:[%s1 + $0x70] sm:$0xff]
  %v49 = vld [vmem:[%s1 + $0x78] sm:$0xff]
  %v50 = vld [vmem:[%s2] sm:$0x3]
  %v52 = vlaneseq
  %v53 = vshrl.u32 %v52, 7
  %v54 = vsub.s32 0, %v53
  %v55 = vrot.slane %v50, %v54
  %v56 = vlaneseq
  %v57 = vshrl.u32 %v56, 7
  %v58 = vsub.s32 1, %v57
  %v59 = vrot.slane %v50, %v58
  %v78 = vunpack.c.l.b16 %v34
  %v79 = vunpack.c.h.b16 %v34
  %v80 = vunpack.c.l.b16 %v35
  %v81 = vunpack.c.h.b16 %v35
  %v82 = vunpack.c.l.b16 %v36
  %v83 = vunpack.c.h.b16 %v36
  %v84 = vunpack.c.l.b16 %v37
  %v85 = vunpack.c.h.b16 %v37
  %v86 = vunpack.c.l.b16 %v38
  %v87 = vunpack.c.h.b16 %v38
  %v88 = vunpack.c.l.b16 %v39
  %v89 = vunpack.c.h.b16 %v39
  %v90 = vunpack.c.l.b16 %v40
  %v91 = vunpack.c.h.b16 %v40
  %v92 = vunpack.c.l.b16 %v41
  %v93 = vunpack.c.h.b16 %v41
  %v94 = vunpack.c.l.b16 %v42
  %v95 = vunpack.c.h.b16 %v42
  %v96 = vunpack.c.l.b16 %v43
  %v97 = vunpack.c.h.b16 %v43
  %v98 = vunpack.c.l.b16 %v44
  %v99 = vunpack.c.h.b16 %v44
  %v100 = vunpack.c.l.b16 %v45
  %v101 = vunpack.c.h.b16 %v45
  %v102 = vunpack.c.l.b16 %v46
  %v103 = vunpack.c.h.b16 %v46
  %v104 = vunpack.c.l.b16 %v47
  %v105 = vunpack.c.h.b16 %v47
  %v106 = vunpack.c.l.b16 %v48
  %v107 = vunpack.c.h.b16 %v48
  %v108 = vunpack.c.l.b16 %v49
  %v109 = vunpack.c.h.b16 %v49
  %v110 = vpack.c.b16 %v80, %v78
  %v111 = vpack.c.b16 %v81, %v79
  %v112 = vpack.c.b16 %v84, %v82
  %v113 = vpack.c.b16 %v85, %v83
  %v114 = vpack.c.b16 %v88, %v86
  %v115 = vpack.c.b16 %v89, %v87
  %v116 = vpack.c.b16 %v92, %v90
  %v117 = vpack.c.b16 %v93, %v91
  %v118 = vpack.c.b16 %v96, %v94
  %v119 = vpack.c.b16 %v97, %v95
  %v120 = vpack.c.b16 %v100, %v98
  %v121 = vpack.c.b16 %v101, %v99
  %v122 = vpack.c.b16 %v104, %v102
  %v123 = vpack.c.b16 %v105, %v103
  %v124 = vpack.c.b16 %v108, %v106
  %v125 = vpack.c.b16 %v109, %v107
  %142 = vmatprep.subr.bf16.mxu0 %v125
  %143 = vmatpush1.bf16.msra.mxu0 %v124
  %144 = vmatprep.subr.bf16.mxu0 %v123
  %145 = vmatpush1.bf16.msra.mxu0 %v122
  %146 = vmatprep.subr.bf16.mxu0 %v121
  %147 = vmatpush1.bf16.msra.mxu0 %v120
  %148 = vmatprep.subr.bf16.mxu0 %v119
  %149 = vmatpush1.bf16.msra.mxu0 %v118
  %150 = vmatprep.subr.bf16.mxu0 %v117
  %151 = vmatpush1.bf16.msra.mxu0 %v116
  %152 = vmatprep.subr.bf16.mxu0 %v115
  %153 = vmatpush1.bf16.msra.mxu0 %v114
  %154 = vmatprep.subr.bf16.mxu0 %v113
  %155 = vmatpush1.bf16.msra.mxu0 %v112
  %156 = vmatprep.subr.bf16.mxu0 %v111
  %157 = vmatpush1.bf16.msra.mxu0 %v110
  %158 = vmatprep.subr.bf16.mxu0 0
  %159 = vmatpush2.bf16.msra.mxu0 0
  %160 = vmatprep.subr.bf16.mxu0 0
  %161 = vmatpush2.bf16.msra.mxu0 0
  %162 = vmatprep.subr.bf16.mxu0 0
  %163 = vmatpush2.bf16.msra.mxu0 0
  %164 = vmatprep.subr.bf16.mxu0 0
  %165 = vmatpush2.bf16.msra.mxu0 0
  %166 = vmatprep.subr.bf16.mxu0 0
  %167 = vmatpush2.bf16.msra.mxu0 0
  %168 = vmatprep.subr.bf16.mxu0 0
  %169 = vmatpush2.bf16.msra.mxu0 0
  %170 = vmatprep.subr.bf16.mxu0 0
  %171 = vmatpush2.bf16.msra.mxu0 0
  %172 = vmatprep.subr.bf16.mxu0 0
  %173 = vmatpush2.bf16.msra.mxu0 0
  %174 = vmatprep.mubr.bf16.mxu0 0
  %175 = vmatmul.mubr.bf16.gmra.mxu0 %v33
  %v176 = vpop.f32.mrf.mxu0
  %v177 = vadd.f32 %v55, %v176
  %v178 = vpop.f32.mrf.mxu0
  %v179 = vadd.f32 %v59, %v178
  %v180 = vpop.f32.mrf.mxu0
  %v181 = vpop.f32.mrf.mxu0
  %182 = vdwg.mxu0
  %vm183 = vcmp.gt.f32.partialorder %v177, 0.0
  %vm184 = vcmp.gt.f32.partialorder %v179, 0.0
  %v185 = vmul.f32 %v177, 0.2
  %v186 = vmul.f32 %v179, 0.2
  %v187 = vsel %vm183, %v177, %v185
  %v188 = vsel %vm184, %v179, %v186
  %v189 = vpack.c.bf16 %v187, %v187
  %v190 = vpack.c.bf16 %v188, %v188
  %v191 = vld [vmem:[%s3] sm:$0xff]
  %v192 = vld [vmem:[%s3 + $0x8] sm:$0xff]
  %v193 = vld [vmem:[%s3 + $0x10] sm:$0xff]
  %v194 = vld [vmem:[%s3 + $0x18] sm:$0xff]
  %v195 = vld [vmem:[%s3 + $0x20] sm:$0xff]
  %v196 = vld [vmem:[%s3 + $0x28] sm:$0xff]
  %v197 = vld [vmem:[%s3 + $0x30] sm:$0xff]
  %v198 = vld [vmem:[%s3 + $0x38] sm:$0xff]
  %v199 = vld [vmem:[%s3 + $0x40] sm:$0xff]
  %v200 = vld [vmem:[%s3 + $0x48] sm:$0xff]
  %v201 = vld [vmem:[%s3 + $0x50] sm:$0xff]
  %v202 = vld [vmem:[%s3 + $0x58] sm:$0xff]
  %v203 = vld [vmem:[%s3 + $0x60] sm:$0xff]
  %v204 = vld [vmem:[%s3 + $0x68] sm:$0xff]
  %v205 = vld [vmem:[%s3 + $0x70] sm:$0xff]
  %v206 = vld [vmem:[%s3 + $0x78] sm:$0xff]
  %v207 = vld [vmem:[%s3 + $0x80] sm:$0xff]
  %v208 = vld [vmem:[%s3 + $0x88] sm:$0xff]
  %v209 = vld [vmem:[%s3 + $0x90] sm:$0xff]
  %v210 = vld [vmem:[%s3 + $0x98] sm:$0xff]
  %v211 = vld [vmem:[%s3 + $0xa0] sm:$0xff]
  %v212 = vld [vmem:[%s3 + $0xa8] sm:$0xff]
  %v213 = vld [vmem:[%s3 + $0xb0] sm:$0xff]
  %v214 = vld [vmem:[%s3 + $0xb8] sm:$0xff]
  %v215 = vld [vmem:[%s3 + $0xc0] sm:$0xff]
  %v216 = vld [vmem:[%s3 + $0xc8] sm:$0xff]
  %v217 = vld [vmem:[%s3 + $0xd0] sm:$0xff]
  %v218 = vld [vmem:[%s3 + $0xd8] sm:$0xff]
  %v219 = vld [vmem:[%s3 + $0xe0] sm:$0xff]
  %v220 = vld [vmem:[%s3 + $0xe8] sm:$0xff]
  %v221 = vld [vmem:[%s3 + $0xf0] sm:$0xff]
  %v222 = vld [vmem:[%s3 + $0xf8] sm:$0xff]
  %v223 = vld [vmem:[%s3 + $0x100] sm:$0xff]
  %v224 = vld [vmem:[%s3 + $0x108] sm:$0xff]
  %v225 = vld [vmem:[%s3 + $0x110] sm:$0xff]
  %v226 = vld [vmem:[%s3 + $0x118] sm:$0xff]
  %v227 = vld [vmem:[%s3 + $0x120] sm:$0xff]
  %v228 = vld [vmem:[%s3 + $0x128] sm:$0xff]
  %v229 = vld [vmem:[%s3 + $0x130] sm:$0xff]
  %v230 = vld [vmem:[%s3 + $0x138] sm:$0xff]
  %v231 = vld [vmem:[%s3 + $0x140] sm:$0xff]
  %v232 = vld [vmem:[%s3 + $0x148] sm:$0xff]
  %v233 = vld [vmem:[%s3 + $0x150] sm:$0xff]
  %v234 = vld [vmem:[%s3 + $0x158] sm:$0xff]
  %v235 = vld [vmem:[%s3 + $0x160] sm:$0xff]
  %v236 = vld [vmem:[%s3 + $0x168] sm:$0xff]
  %v237 = vld [vmem:[%s3 + $0x170] sm:$0xff]
  %v238 = vld [vmem:[%s3 + $0x178] sm:$0xff]
  %v239 = vld [vmem:[%s3 + $0x180] sm:$0xff]
  %v240 = vld [vmem:[%s3 + $0x188] sm:$0xff]
  %v241 = vld [vmem:[%s3 + $0x190] sm:$0xff]
  %v242 = vld [vmem:[%s3 + $0x198] sm:$0xff]
  %v243 = vld [vmem:[%s3 + $0x1a0] sm:$0xff]
  %v244 = vld [vmem:[%s3 + $0x1a8] sm:$0xff]
  %v245 = vld [vmem:[%s3 + $0x1b0] sm:$0xff]
  %v246 = vld [vmem:[%s3 + $0x1b8] sm:$0xff]
  %v247 = vld [vmem:[%s3 + $0x1c0] sm:$0xff]
  %v248 = vld [vmem:[%s3 + $0x1c8] sm:$0xff]
  %v249 = vld [vmem:[%s3 + $0x1d0] sm:$0xff]
  %v250 = vld [vmem:[%s3 + $0x1d8] sm:$0xff]
  %v251 = vld [vmem:[%s3 + $0x1e0] sm:$0xff]
  %v252 = vld [vmem:[%s3 + $0x1e8] sm:$0xff]
  %v253 = vld [vmem:[%s3 + $0x1f0] sm:$0xff]
  %v254 = vld [vmem:[%s3 + $0x1f8] sm:$0xff]
  %v255 = vld [vmem:[%s4] sm:$0xf]
  %v257 = vlaneseq
  %v258 = vshrl.u32 %v257, 7
  %v259 = vsub.s32 0, %v258
  %v260 = vrot.slane %v255, %v259
  %v261 = vlaneseq
  %v262 = vshrl.u32 %v261, 7
  %v263 = vsub.s32 1, %v262
  %v264 = vrot.slane %v255, %v263
  %v265 = vlaneseq
  %v266 = vshrl.u32 %v265, 7
  %v267 = vsub.s32 2, %v266
  %v268 = vrot.slane %v255, %v267
  %v269 = vlaneseq
  %v270 = vshrl.u32 %v269, 7
  %v271 = vsub.s32 3, %v270
  %v272 = vrot.slane %v255, %v271
  %v341 = vunpack.c.l.b16 %v191
  %v342 = vunpack.c.h.b16 %v191
  %v343 = vunpack.c.l.b16 %v192
  %v344 = vunpack.c.h.b16 %v192
  %v345 = vunpack.c.l.b16 %v193
  %v346 = vunpack.c.h.b16 %v193
  %v347 = vunpack.c.l.b16 %v194
  %v348 = vunpack.c.h.b16 %v194
  %v349 = vunpack.c.l.b16 %v195
  %v350 = vunpack.c.h.b16 %v195
  %v351 = vunpack.c.l.b16 %v196
  %v352 = vunpack.c.h.b16 %v196
  %v353 = vunpack.c.l.b16 %v197
  %v354 = vunpack.c.h.b16 %v197
  %v355 = vunpack.c.l.b16 %v198
  %v356 = vunpack.c.h.b16 %v198
  %v357 = vunpack.c.l.b16 %v199
  %v358 = vunpack.c.h.b16 %v199
  %v359 = vunpack.c.l.b16 %v200
  %v360 = vunpack.c.h.b16 %v200
  %v361 = vunpack.c.l.b16 %v201
  %v362 = vunpack.c.h.b16 %v201
  %v363 = vunpack.c.l.b16 %v202
  %v364 = vunpack.c.h.b16 %v202
  %v365 = vunpack.c.l.b16 %v203
  %v366 = vunpack.c.h.b16 %v203
  %v367 = vunpack.c.l.b16 %v204
  %v368 = vunpack.c.h.b16 %v204
  %v369 = vunpack.c.l.b16 %v205
  %v370 = vunpack.c.h.b16 %v205
  %v371 = vunpack.c.l.b16 %v206
  %v372 = vunpack.c.h.b16 %v206
  %v373 = vunpack.c.l.b16 %v207
  %v374 = vunpack.c.h.b16 %v207
  %v375 = vunpack.c.l.b16 %v208
  %v376 = vunpack.c.h.b16 %v208
  %v377 = vunpack.c.l.b16 %v209
  %v378 = vunpack.c.h.b16 %v209
  %v379 = vunpack.c.l.b16 %v210
  %v380 = vunpack.c.h.b16 %v210
  %v381 = vunpack.c.l.b16 %v211
  %v382 = vunpack.c.h.b16 %v211
  %v383 = vunpack.c.l.b16 %v212
  %v384 = vunpack.c.h.b16 %v212
  %v385 = vunpack.c.l.b16 %v213
  %v386 = vunpack.c.h.b16 %v213
  %v387 = vunpack.c.l.b16 %v214
  %v388 = vunpack.c.h.b16 %v214
  %v389 = vunpack.c.l.b16 %v215
  %v390 = vunpack.c.h.b16 %v215
  %v391 = vunpack.c.l.b16 %v216
  %v392 = vunpack.c.h.b16 %v216
  %v393 = vunpack.c.l.b16 %v217
  %v394 = vunpack.c.h.b16 %v217
  %v395 = vunpack.c.l.b16 %v218
  %v396 = vunpack.c.h.b16 %v218
  %v397 = vunpack.c.l.b16 %v219
  %v398 = vunpack.c.h.b16 %v219
  %v399 = vunpack.c.l.b16 %v220
  %v400 = vunpack.c.h.b16 %v220
  %v401 = vunpack.c.l.b16 %v221
  %v402 = vunpack.c.h.b16 %v221
  %v403 = vunpack.c.l.b16 %v222
  %v404 = vunpack.c.h.b16 %v222
  %v405 = vunpack.c.l.b16 %v223
  %v406 = vunpack.c.h.b16 %v223
  %v407 = vunpack.c.l.b16 %v224
  %v408 = vunpack.c.h.b16 %v224
  %v409 = vunpack.c.l.b16 %v225
  %v410 = vunpack.c.h.b16 %v225
  %v411 = vunpack.c.l.b16 %v226
  %v412 = vunpack.c.h.b16 %v226
  %v413 = vunpack.c.l.b16 %v227
  %v414 = vunpack.c.h.b16 %v227
  %v415 = vunpack.c.l.b16 %v228
  %v416 = vunpack.c.h.b16 %v228
  %v417 = vunpack.c.l.b16 %v229
  %v418 = vunpack.c.h.b16 %v229
  %v419 = vunpack.c.l.b16 %v230
  %v420 = vunpack.c.h.b16 %v230
  %v421 = vunpack.c.l.b16 %v231
  %v422 = vunpack.c.h.b16 %v231
  %v423 = vunpack.c.l.b16 %v232
  %v424 = vunpack.c.h.b16 %v232
  %v425 = vunpack.c.l.b16 %v233
  %v426 = vunpack.c.h.b16 %v233
  %v427 = vunpack.c.l.b16 %v234
  %v428 = vunpack.c.h.b16 %v234
  %v429 = vunpack.c.l.b16 %v235
  %v430 = vunpack.c.h.b16 %v235
  %v431 = vunpack.c.l.b16 %v236
  %v432 = vunpack.c.h.b16 %v236
  %v433 = vunpack.c.l.b16 %v237
  %v434 = vunpack.c.h.b16 %v237
  %v435 = vunpack.c.l.b16 %v238
  %v436 = vunpack.c.h.b16 %v238
  %v437 = vunpack.c.l.b16 %v239
  %v438 = vunpack.c.h.b16 %v239
  %v439 = vunpack.c.l.b16 %v240
  %v440 = vunpack.c.h.b16 %v240
  %v441 = vunpack.c.l.b16 %v241
  %v442 = vunpack.c.h.b16 %v241
  %v443 = vunpack.c.l.b16 %v242
  %v444 = vunpack.c.h.b16 %v242
  %v445 = vunpack.c.l.b16 %v243
  %v446 = vunpack.c.h.b16 %v243
  %v447 = vunpack.c.l.b16 %v244
  %v448 = vunpack.c.h.b16 %v244
  %v449 = vunpack.c.l.b16 %v245
  %v450 = vunpack.c.h.b16 %v245
  %v451 = vunpack.c.l.b16 %v246
  %v452 = vunpack.c.h.b16 %v246
  %v453 = vunpack.c.l.b16 %v247
  %v454 = vunpack.c.h.b16 %v247
  %v455 = vunpack.c.l.b16 %v248
  %v456 = vunpack.c.h.b16 %v248
  %v457 = vunpack.c.l.b16 %v249
  %v458 = vunpack.c.h.b16 %v249
  %v459 = vunpack.c.l.b16 %v250
  %v460 = vunpack.c.h.b16 %v250
  %v461 = vunpack.c.l.b16 %v251
  %v462 = vunpack.c.h.b16 %v251
  %v463 = vunpack.c.l.b16 %v252
  %v464 = vunpack.c.h.b16 %v252
  %v465 = vunpack.c.l.b16 %v253
  %v466 = vunpack.c.h.b16 %v253
  %v467 = vunpack.c.l.b16 %v254
  %v468 = vunpack.c.h.b16 %v254
  %v469 = vpack.c.b16 %v345, %v341
  %v470 = vpack.c.b16 %v346, %v342
  %v471 = vpack.c.b16 %v347, %v343
  %v472 = vpack.c.b16 %v348, %v344
  %v473 = vpack.c.b16 %v353, %v349
  %v474 = vpack.c.b16 %v354, %v350
  %v475 = vpack.c.b16 %v355, %v351
  %v476 = vpack.c.b16 %v356, %v352
  %v477 = vpack.c.b16 %v361, %v357
  %v478 = vpack.c.b16 %v362, %v358
  %v479 = vpack.c.b16 %v363, %v359
  %v480 = vpack.c.b16 %v364, %v360
  %v481 = vpack.c.b16 %v369, %v365
  %v482 = vpack.c.b16 %v370, %v366
  %v483 = vpack.c.b16 %v371, %v367
  %v484 = vpack.c.b16 %v372, %v368
  %v485 = vpack.c.b16 %v377, %v373
  %v486 = vpack.c.b16 %v378, %v374
  %v487 = vpack.c.b16 %v379, %v375
  %v488 = vpack.c.b16 %v380, %v376
  %v489 = vpack.c.b16 %v385, %v381
  %v490 = vpack.c.b16 %v386, %v382
  %v491 = vpack.c.b16 %v387, %v383
  %v492 = vpack.c.b16 %v388, %v384
  %v493 = vpack.c.b16 %v393, %v389
  %v494 = vpack.c.b16 %v394, %v390
  %v495 = vpack.c.b16 %v395, %v391
  %v496 = vpack.c.b16 %v396, %v392
  %v497 = vpack.c.b16 %v401, %v397
  %v498 = vpack.c.b16 %v402, %v398
  %v499 = vpack.c.b16 %v403, %v399
  %v500 = vpack.c.b16 %v404, %v400
  %v501 = vpack.c.b16 %v409, %v405
  %v502 = vpack.c.b16 %v410, %v406
  %v503 = vpack.c.b16 %v411, %v407
  %v504 = vpack.c.b16 %v412, %v408
  %v505 = vpack.c.b16 %v417, %v413
  %v506 = vpack.c.b16 %v418, %v414
  %v507 = vpack.c.b16 %v419, %v415
  %v508 = vpack.c.b16 %v420, %v416
  %v509 = vpack.c.b16 %v425, %v421
  %v510 = vpack.c.b16 %v426, %v422
  %v511 = vpack.c.b16 %v427, %v423
  %v512 = vpack.c.b16 %v428, %v424
  %v513 = vpack.c.b16 %v433, %v429
  %v514 = vpack.c.b16 %v434, %v430
  %v515 = vpack.c.b16 %v435, %v431
  %v516 = vpack.c.b16 %v436, %v432
  %v517 = vpack.c.b16 %v441, %v437
  %v518 = vpack.c.b16 %v442, %v438
  %v519 = vpack.c.b16 %v443, %v439
  %v520 = vpack.c.b16 %v444, %v440
  %v521 = vpack.c.b16 %v449, %v445
  %v522 = vpack.c.b16 %v450, %v446
  %v523 = vpack.c.b16 %v451, %v447
  %v524 = vpack.c.b16 %v452, %v448
  %v525 = vpack.c.b16 %v457, %v453
  %v526 = vpack.c.b16 %v458, %v454
  %v527 = vpack.c.b16 %v459, %v455
  %v528 = vpack.c.b16 %v460, %v456
  %v529 = vpack.c.b16 %v465, %v461
  %v530 = vpack.c.b16 %v466, %v462
  %v531 = vpack.c.b16 %v467, %v463
  %v532 = vpack.c.b16 %v468, %v464
  %597 = vmatprep.subr.bf16.mxu0 %v498
  %598 = vmatpush1.bf16.msra.mxu0 %v497
  %599 = vmatprep.subr.bf16.mxu0 %v494
  %600 = vmatpush1.bf16.msra.mxu0 %v493
  %601 = vmatprep.subr.bf16.mxu0 %v490
  %602 = vmatpush1.bf16.msra.mxu0 %v489
  %603 = vmatprep.subr.bf16.mxu0 %v486
  %604 = vmatpush1.bf16.msra.mxu0 %v485
  %605 = vmatprep.subr.bf16.mxu0 %v482
  %606 = vmatpush1.bf16.msra.mxu0 %v481
  %607 = vmatprep.subr.bf16.mxu0 %v478
  %608 = vmatpush1.bf16.msra.mxu0 %v477
  %609 = vmatprep.subr.bf16.mxu0 %v474
  %610 = vmatpush1.bf16.msra.mxu0 %v473
  %611 = vmatprep.subr.bf16.mxu0 %v470
  %612 = vmatpush1.bf16.msra.mxu0 %v469
  %613 = vmatprep.subr.bf16.mxu0 %v530
  %614 = vmatpush2.bf16.msra.mxu0 %v529
  %615 = vmatprep.subr.bf16.mxu0 %v526
  %616 = vmatpush2.bf16.msra.mxu0 %v525
  %617 = vmatprep.subr.bf16.mxu0 %v522
  %618 = vmatpush2.bf16.msra.mxu0 %v521
  %619 = vmatprep.subr.bf16.mxu0 %v518
  %620 = vmatpush2.bf16.msra.mxu0 %v517
  %621 = vmatprep.subr.bf16.mxu0 %v514
  %622 = vmatpush2.bf16.msra.mxu0 %v513
  %623 = vmatprep.subr.bf16.mxu0 %v510
  %624 = vmatpush2.bf16.msra.mxu0 %v509
  %625 = vmatprep.subr.bf16.mxu0 %v506
  %626 = vmatpush2.bf16.msra.mxu0 %v505
  %627 = vmatprep.subr.bf16.mxu0 %v502
  %628 = vmatpush2.bf16.msra.mxu0 %v501
  %629 = vmatprep.mubr.bf16.mxu0 %v190
  %630 = vmatmul.mubr.bf16.gmra.mxu0 %v189
  %v631 = vpop.f32.mrf.mxu0
  %v632 = vadd.f32 %v260, %v631
  %v633 = vpop.f32.mrf.mxu0
  %v634 = vadd.f32 %v264, %v633
  %v635 = vpop.f32.mrf.mxu0
  %v636 = vpop.f32.mrf.mxu0
  %637 = vdwg.mxu0
  %638 = vmatprep.subr.bf16.mxu0 %v500
  %639 = vmatpush1.bf16.msra.mxu0 %v499
  %640 = vmatprep.subr.bf16.mxu0 %v496
  %641 = vmatpush1.bf16.msra.mxu0 %v495
  %642 = vmatprep.subr.bf16.mxu0 %v492
  %643 = vmatpush1.bf16.msra.mxu0 %v491
  %644 = vmatprep.subr.bf16.mxu0 %v488
  %645 = vmatpush1.bf16.msra.mxu0 %v487
  %646 = vmatprep.subr.bf16.mxu0 %v484
  %647 = vmatpush1.bf16.msra.mxu0 %v483
  %648 = vmatprep.subr.bf16.mxu0 %v480
  %649 = vmatpush1.bf16.msra.mxu0 %v479
  %650 = vmatprep.subr.bf16.mxu0 %v476
  %651 = vmatpush1.bf16.msra.mxu0 %v475
  %652 = vmatprep.subr.bf16.mxu0 %v472
  %653 = vmatpush1.bf16.msra.mxu0 %v471
  %654 = vmatprep.subr.bf16.mxu0 %v532
  %655 = vmatpush2.bf16.msra.mxu0 %v531
  %656 = vmatprep.subr.bf16.mxu0 %v528
  %657 = vmatpush2.bf16.msra.mxu0 %v527
  %658 = vmatprep.subr.bf16.mxu0 %v524
  %659 = vmatpush2.bf16.msra.mxu0 %v523
  %660 = vmatprep.subr.bf16.mxu0 %v520
  %661 = vmatpush2.bf16.msra.mxu0 %v519
  %662 = vmatprep.subr.bf16.mxu0 %v516
  %663 = vmatpush2.bf16.msra.mxu0 %v515
  %664 = vmatprep.subr.bf16.mxu0 %v512
  %665 = vmatpush2.bf16.msra.mxu0 %v511
  %666 = vmatprep.subr.bf16.mxu0 %v508
  %667 = vmatpush2.bf16.msra.mxu0 %v507
  %668 = vmatprep.subr.bf16.mxu0 %v504
  %669 = vmatpush2.bf16.msra.mxu0 %v503
  %670 = vmatprep.mubr.bf16.mxu0 %v190
  %671 = vmatmul.mubr.bf16.gmra.mxu0 %v189
  %v672 = vpop.f32.mrf.mxu0
  %v673 = vadd.f32 %v268, %v672
  %v674 = vpop.f32.mrf.mxu0
  %v675 = vadd.f32 %v272, %v674
  %v676 = vpop.f32.mrf.mxu0
  %v677 = vpop.f32.mrf.mxu0
  %678 = vdwg.mxu0
  %vm679 = vcmp.gt.f32.partialorder %v632, 0.0
  %vm680 = vcmp.gt.f32.partialorder %v634, 0.0
  %vm681 = vcmp.gt.f32.partialorder %v673, 0.0
  %vm682 = vcmp.gt.f32.partialorder %v675, 0.0
  %v683 = vmul.f32 %v632, 0.2
  %v684 = vmul.f32 %v634, 0.2
  %v685 = vmul.f32 %v673, 0.2
  %v686 = vmul.f32 %v675, 0.2
  %v687 = vsel %vm679, %v632, %v683
  %v688 = vsel %vm680, %v634, %v684
  %v689 = vsel %vm681, %v673, %v685
  %v690 = vsel %vm682, %v675, %v686
  %v691 = vpack.c.bf16 %v687, %v687
  %v692 = vpack.c.bf16 %v688, %v688
  %v693 = vpack.c.bf16 %v689, %v689
  %v694 = vpack.c.bf16 %v690, %v690
  %v695 = vld [vmem:[%s5] sm:$0xff]
  %v696 = vld [vmem:[%s5 + $0x8] sm:$0xff]
  %v697 = vld [vmem:[%s5 + $0x10] sm:$0xff]
  %v698 = vld [vmem:[%s5 + $0x18] sm:$0xff]
  %v699 = vld [vmem:[%s5 + $0x20] sm:$0xff]
  %v700 = vld [vmem:[%s5 + $0x28] sm:$0xff]
  %v701 = vld [vmem:[%s5 + $0x30] sm:$0xff]
  %v702 = vld [vmem:[%s5 + $0x38] sm:$0xff]
  %v703 = vld [vmem:[%s5 + $0x40] sm:$0xff]
  %v704 = vld [vmem:[%s5 + $0x48] sm:$0xff]
  %v705 = vld [vmem:[%s5 + $0x50] sm:$0xff]
  %v706 = vld [vmem:[%s5 + $0x58] sm:$0xff]
  %v707 = vld [vmem:[%s5 + $0x60] sm:$0xff]
  %v708 = vld [vmem:[%s5 + $0x68] sm:$0xff]
  %v709 = vld [vmem:[%s5 + $0x70] sm:$0xff]
  %v710 = vld [vmem:[%s5 + $0x78] sm:$0xff]
  %v711 = vld [vmem:[%s5 + $0x80] sm:$0xff]
  %v712 = vld [vmem:[%s5 + $0x88] sm:$0xff]
  %v713 = vld [vmem:[%s5 + $0x90] sm:$0xff]
  %v714 = vld [vmem:[%s5 + $0x98] sm:$0xff]
  %v715 = vld [vmem:[%s5 + $0xa0] sm:$0xff]
  %v716 = vld [vmem:[%s5 + $0xa8] sm:$0xff]
  %v717 = vld [vmem:[%s5 + $0xb0] sm:$0xff]
  %v718 = vld [vmem:[%s5 + $0xb8] sm:$0xff]
  %v719 = vld [vmem:[%s5 + $0xc0] sm:$0xff]
  %v720 = vld [vmem:[%s5 + $0xc8] sm:$0xff]
  %v721 = vld [vmem:[%s5 + $0xd0] sm:$0xff]
  %v722 = vld [vmem:[%s5 + $0xd8] sm:$0xff]
  %v723 = vld [vmem:[%s5 + $0xe0] sm:$0xff]
  %v724 = vld [vmem:[%s5 + $0xe8] sm:$0xff]
  %v725 = vld [vmem:[%s5 + $0xf0] sm:$0xff]
  %v726 = vld [vmem:[%s5 + $0xf8] sm:$0xff]
  %v727 = vld [vmem:[%s5 + $0x100] sm:$0xff]
  %v728 = vld [vmem:[%s5 + $0x108] sm:$0xff]
  %v729 = vld [vmem:[%s5 + $0x110] sm:$0xff]
  %v730 = vld [vmem:[%s5 + $0x118] sm:$0xff]
  %v731 = vld [vmem:[%s5 + $0x120] sm:$0xff]
  %v732 = vld [vmem:[%s5 + $0x128] sm:$0xff]
  %v733 = vld [vmem:[%s5 + $0x130] sm:$0xff]
  %v734 = vld [vmem:[%s5 + $0x138] sm:$0xff]
  %v735 = vld [vmem:[%s5 + $0x140] sm:$0xff]
  %v736 = vld [vmem:[%s5 + $0x148] sm:$0xff]
  %v737 = vld [vmem:[%s5 + $0x150] sm:$0xff]
  %v738 = vld [vmem:[%s5 + $0x158] sm:$0xff]
  %v739 = vld [vmem:[%s5 + $0x160] sm:$0xff]
  %v740 = vld [vmem:[%s5 + $0x168] sm:$0xff]
  %v741 = vld [vmem:[%s5 + $0x170] sm:$0xff]
  %v742 = vld [vmem:[%s5 + $0x178] sm:$0xff]
  %v743 = vld [vmem:[%s5 + $0x180] sm:$0xff]
  %v744 = vld [vmem:[%s5 + $0x188] sm:$0xff]
  %v745 = vld [vmem:[%s5 + $0x190] sm:$0xff]
  %v746 = vld [vmem:[%s5 + $0x198] sm:$0xff]
  %v747 = vld [vmem:[%s5 + $0x1a0] sm:$0xff]
  %v748 = vld [vmem:[%s5 + $0x1a8] sm:$0xff]
  %v749 = vld [vmem:[%s5 + $0x1b0] sm:$0xff]
  %v750 = vld [vmem:[%s5 + $0x1b8] sm:$0xff]
  %v751 = vld [vmem:[%s5 + $0x1c0] sm:$0xff]
  %v752 = vld [vmem:[%s5 + $0x1c8] sm:$0xff]
  %v753 = vld [vmem:[%s5 + $0x1d0] sm:$0xff]
  %v754 = vld [vmem:[%s5 + $0x1d8] sm:$0xff]
  %v755 = vld [vmem:[%s5 + $0x1e0] sm:$0xff]
  %v756 = vld [vmem:[%s5 + $0x1e8] sm:$0xff]
  %v757 = vld [vmem:[%s5 + $0x1f0] sm:$0xff]
  %v758 = vld [vmem:[%s5 + $0x1f8] sm:$0xff]
  %v759 = vld [vmem:[%s5 + $0x200] sm:$0xff]
  %v760 = vld [vmem:[%s5 + $0x208] sm:$0xff]
  %v761 = vld [vmem:[%s5 + $0x210] sm:$0xff]
  %v762 = vld [vmem:[%s5 + $0x218] sm:$0xff]
  %v763 = vld [vmem:[%s5 + $0x220] sm:$0xff]
  %v764 = vld [vmem:[%s5 + $0x228] sm:$0xff]
  %v765 = vld [vmem:[%s5 + $0x230] sm:$0xff]
  %v766 = vld [vmem:[%s5 + $0x238] sm:$0xff]
  %v767 = vld [vmem:[%s5 + $0x240] sm:$0xff]
  %v768 = vld [vmem:[%s5 + $0x248] sm:$0xff]
  %v769 = vld [vmem:[%s5 + $0x250] sm:$0xff]
  %v770 = vld [vmem:[%s5 + $0x258] sm:$0xff]
  %v771 = vld [vmem:[%s5 + $0x260] sm:$0xff]
  %v772 = vld [vmem:[%s5 + $0x268] sm:$0xff]
  %v773 = vld [vmem:[%s5 + $0x270] sm:$0xff]
  %v774 = vld [vmem:[%s5 + $0x278] sm:$0xff]
  %v775 = vld [vmem:[%s5 + $0x280] sm:$0xff]
  %v776 = vld [vmem:[%s5 + $0x288] sm:$0xff]
  %v777 = vld [vmem:[%s5 + $0x290] sm:$0xff]
  %v778 = vld [vmem:[%s5 + $0x298] sm:$0xff]
  %v779 = vld [vmem:[%s5 + $0x2a0] sm:$0xff]
  %v780 = vld [vmem:[%s5 + $0x2a8] sm:$0xff]
  %v781 = vld [vmem:[%s5 + $0x2b0] sm:$0xff]
  %v782 = vld [vmem:[%s5 + $0x2b8] sm:$0xff]
  %v783 = vld [vmem:[%s5 + $0x2c0] sm:$0xff]
  %v784 = vld [vmem:[%s5 + $0x2c8] sm:$0xff]
  %v785 = vld [vmem:[%s5 + $0x2d0] sm:$0xff]
  %v786 = vld [vmem:[%s5 + $0x2d8] sm:$0xff]
  %v787 = vld [vmem:[%s5 + $0x2e0] sm:$0xff]
  %v788 = vld [vmem:[%s5 + $0x2e8] sm:$0xff]
  %v789 = vld [vmem:[%s5 + $0x2f0] sm:$0xff]
  %v790 = vld [vmem:[%s5 + $0x2f8] sm:$0xff]
  %v791 = vld [vmem:[%s5 + $0x300] sm:$0xff]
  %v792 = vld [vmem:[%s5 + $0x308] sm:$0xff]
  %v793 = vld [vmem:[%s5 + $0x310] sm:$0xff]
  %v794 = vld [vmem:[%s5 + $0x318] sm:$0xff]
  %v795 = vld [vmem:[%s5 + $0x320] sm:$0xff]
  %v796 = vld [vmem:[%s5 + $0x328] sm:$0xff]
  %v797 = vld [vmem:[%s5 + $0x330] sm:$0xff]
  %v798 = vld [vmem:[%s5 + $0x338] sm:$0xff]
  %v799 = vld [vmem:[%s5 + $0x340] sm:$0xff]
  %v800 = vld [vmem:[%s5 + $0x348] sm:$0xff]
  %v801 = vld [vmem:[%s5 + $0x350] sm:$0xff]
  %v802 = vld [vmem:[%s5 + $0x358] sm:$0xff]
  %v803 = vld [vmem:[%s5 + $0x360] sm:$0xff]
  %v804 = vld [vmem:[%s5 + $0x368] sm:$0xff]
  %v805 = vld [vmem:[%s5 + $0x370] sm:$0xff]
  %v806 = vld [vmem:[%s5 + $0x378] sm:$0xff]
  %v807 = vld [vmem:[%s5 + $0x380] sm:$0xff]
  %v808 = vld [vmem:[%s5 + $0x388] sm:$0xff]
  %v809 = vld [vmem:[%s5 + $0x390] sm:$0xff]
  %v810 = vld [vmem:[%s5 + $0x398] sm:$0xff]
  %v811 = vld [vmem:[%s5 + $0x3a0] sm:$0xff]
  %v812 = vld [vmem:[%s5 + $0x3a8] sm:$0xff]
  %v813 = vld [vmem:[%s5 + $0x3b0] sm:$0xff]
  %v814 = vld [vmem:[%s5 + $0x3b8] sm:$0xff]
  %v815 = vld [vmem:[%s5 + $0x3c0] sm:$0xff]
  %v816 = vld [vmem:[%s5 + $0x3c8] sm:$0xff]
  %v817 = vld [vmem:[%s5 + $0x3d0] sm:$0xff]
  %v818 = vld [vmem:[%s5 + $0x3d8] sm:$0xff]
  %v819 = vld [vmem:[%s5 + $0x3e0] sm:$0xff]
  %v820 = vld [vmem:[%s5 + $0x3e8] sm:$0xff]
  %v821 = vld [vmem:[%s5 + $0x3f0] sm:$0xff]
  %v822 = vld [vmem:[%s5 + $0x3f8] sm:$0xff]
  %v823 = vld [vmem:[%s5 + $0x400] sm:$0xff]
  %v824 = vld [vmem:[%s5 + $0x408] sm:$0xff]
  %v825 = vld [vmem:[%s5 + $0x410] sm:$0xff]
  %v826 = vld [vmem:[%s5 + $0x418] sm:$0xff]
  %v827 = vld [vmem:[%s5 + $0x420] sm:$0xff]
  %v828 = vld [vmem:[%s5 + $0x428] sm:$0xff]
  %v829 = vld [vmem:[%s5 + $0x430] sm:$0xff]
  %v830 = vld [vmem:[%s5 + $0x438] sm:$0xff]
  %v831 = vld [vmem:[%s5 + $0x440] sm:$0xff]
  %v832 = vld [vmem:[%s5 + $0x448] sm:$0xff]
  %v833 = vld [vmem:[%s5 + $0x450] sm:$0xff]
  %v834 = vld [vmem:[%s5 + $0x458] sm:$0xff]
  %v835 = vld [vmem:[%s5 + $0x460] sm:$0xff]
  %v836 = vld [vmem:[%s5 + $0x468] sm:$0xff]
  %v837 = vld [vmem:[%s5 + $0x470] sm:$0xff]
  %v838 = vld [vmem:[%s5 + $0x478] sm:$0xff]
  %v839 = vld [vmem:[%s5 + $0x480] sm:$0xff]
  %v840 = vld [vmem:[%s5 + $0x488] sm:$0xff]
  %v841 = vld [vmem:[%s5 + $0x490] sm:$0xff]
  %v842 = vld [vmem:[%s5 + $0x498] sm:$0xff]
  %v843 = vld [vmem:[%s5 + $0x4a0] sm:$0xff]
  %v844 = vld [vmem:[%s5 + $0x4a8] sm:$0xff]
  %v845 = vld [vmem:[%s5 + $0x4b0] sm:$0xff]
  %v846 = vld [vmem:[%s5 + $0x4b8] sm:$0xff]
  %v847 = vld [vmem:[%s5 + $0x4c0] sm:$0xff]
  %v848 = vld [vmem:[%s5 + $0x4c8] sm:$0xff]
  %v849 = vld [vmem:[%s5 + $0x4d0] sm:$0xff]
  %v850 = vld [vmem:[%s5 + $0x4d8] sm:$0xff]
  %v851 = vld [vmem:[%s5 + $0x4e0] sm:$0xff]
  %v852 = vld [vmem:[%s5 + $0x4e8] sm:$0xff]
  %v853 = vld [vmem:[%s5 + $0x4f0] sm:$0xff]
  %v854 = vld [vmem:[%s5 + $0x4f8] sm:$0xff]
  %v855 = vld [vmem:[%s5 + $0x500] sm:$0xff]
  %v856 = vld [vmem:[%s5 + $0x508] sm:$0xff]
  %v857 = vld [vmem:[%s5 + $0x510] sm:$0xff]
  %v858 = vld [vmem:[%s5 + $0x518] sm:$0xff]
  %v859 = vld [vmem:[%s5 + $0x520] sm:$0xff]
  %v860 = vld [vmem:[%s5 + $0x528] sm:$0xff]
  %v861 = vld [vmem:[%s5 + $0x530] sm:$0xff]
  %v862 = vld [vmem:[%s5 + $0x538] sm:$0xff]
  %v863 = vld [vmem:[%s5 + $0x540] sm:$0xff]
  %v864 = vld [vmem:[%s5 + $0x548] sm:$0xff]
  %v865 = vld [vmem:[%s5 + $0x550] sm:$0xff]
  %v866 = vld [vmem:[%s5 + $0x558] sm:$0xff]
  %v867 = vld [vmem:[%s5 + $0x560] sm:$0xff]
  %v868 = vld [vmem:[%s5 + $0x568] sm:$0xff]
  %v869 = vld [vmem:[%s5 + $0x570] sm:$0xff]
  %v870 = vld [vmem:[%s5 + $0x578] sm:$0xff]
  %v871 = vld [vmem:[%s5 + $0x580] sm:$0xff]
  %v872 = vld [vmem:[%s5 + $0x588] sm:$0xff]
  %v873 = vld [vmem:[%s5 + $0x590] sm:$0xff]
  %v874 = vld [vmem:[%s5 + $0x598] sm:$0xff]
  %v875 = vld [vmem:[%s5 + $0x5a0] sm:$0xff]
  %v876 = vld [vmem:[%s5 + $0x5a8] sm:$0xff]
  %v877 = vld [vmem:[%s5 + $0x5b0] sm:$0xff]
  %v878 = vld [vmem:[%s5 + $0x5b8] sm:$0xff]
  %v879 = vld [vmem:[%s5 + $0x5c0] sm:$0xff]
  %v880 = vld [vmem:[%s5 + $0x5c8] sm:$0xff]
  %v881 = vld [vmem:[%s5 + $0x5d0] sm:$0xff]
  %v882 = vld [vmem:[%s5 + $0x5d8] sm:$0xff]
  %v883 = vld [vmem:[%s5 + $0x5e0] sm:$0xff]
  %v884 = vld [vmem:[%s5 + $0x5e8] sm:$0xff]
  %v885 = vld [vmem:[%s5 + $0x5f0] sm:$0xff]
  %v886 = vld [vmem:[%s5 + $0x5f8] sm:$0xff]
  %v887 = vld [vmem:[%s5 + $0x600] sm:$0xff]
  %v888 = vld [vmem:[%s5 + $0x608] sm:$0xff]
  %v889 = vld [vmem:[%s5 + $0x610] sm:$0xff]
  %v890 = vld [vmem:[%s5 + $0x618] sm:$0xff]
  %v891 = vld [vmem:[%s5 + $0x620] sm:$0xff]
  %v892 = vld [vmem:[%s5 + $0x628] sm:$0xff]
  %v893 = vld [vmem:[%s5 + $0x630] sm:$0xff]
  %v894 = vld [vmem:[%s5 + $0x638] sm:$0xff]
  %v895 = vld [vmem:[%s5 + $0x640] sm:$0xff]
  %v896 = vld [vmem:[%s5 + $0x648] sm:$0xff]
  %v897 = vld [vmem:[%s5 + $0x650] sm:$0xff]
  %v898 = vld [vmem:[%s5 + $0x658] sm:$0xff]
  %v899 = vld [vmem:[%s5 + $0x660] sm:$0xff]
  %v900 = vld [vmem:[%s5 + $0x668] sm:$0xff]
  %v901 = vld [vmem:[%s5 + $0x670] sm:$0xff]
  %v902 = vld [vmem:[%s5 + $0x678] sm:$0xff]
  %v903 = vld [vmem:[%s5 + $0x680] sm:$0xff]
  %v904 = vld [vmem:[%s5 + $0x688] sm:$0xff]
  %v905 = vld [vmem:[%s5 + $0x690] sm:$0xff]
  %v906 = vld [vmem:[%s5 + $0x698] sm:$0xff]
  %v907 = vld [vmem:[%s5 + $0x6a0] sm:$0xff]
  %v908 = vld [vmem:[%s5 + $0x6a8] sm:$0xff]
  %v909 = vld [vmem:[%s5 + $0x6b0] sm:$0xff]
  %v910 = vld [vmem:[%s5 + $0x6b8] sm:$0xff]
  %v911 = vld [vmem:[%s5 + $0x6c0] sm:$0xff]
  %v912 = vld [vmem:[%s5 + $0x6c8] sm:$0xff]
  %v913 = vld [vmem:[%s5 + $0x6d0] sm:$0xff]
  %v914 = vld [vmem:[%s5 + $0x6d8] sm:$0xff]
  %v915 = vld [vmem:[%s5 + $0x6e0] sm:$0xff]
  %v916 = vld [vmem:[%s5 + $0x6e8] sm:$0xff]
  %v917 = vld [vmem:[%s5 + $0x6f0] sm:$0xff]
  %v918 = vld [vmem:[%s5 + $0x6f8] sm:$0xff]
  %v919 = vld [vmem:[%s5 + $0x700] sm:$0xff]
  %v920 = vld [vmem:[%s5 + $0x708] sm:$0xff]
  %v921 = vld [vmem:[%s5 + $0x710] sm:$0xff]
  %v922 = vld [vmem:[%s5 + $0x718] sm:$0xff]
  %v923 = vld [vmem:[%s5 + $0x720] sm:$0xff]
  %v924 = vld [vmem:[%s5 + $0x728] sm:$0xff]
  %v925 = vld [vmem:[%s5 + $0x730] sm:$0xff]
  %v926 = vld [vmem:[%s5 + $0x738] sm:$0xff]
  %v927 = vld [vmem:[%s5 + $0x740] sm:$0xff]
  %v928 = vld [vmem:[%s5 + $0x748] sm:$0xff]
  %v929 = vld [vmem:[%s5 + $0x750] sm:$0xff]
  %v930 = vld [vmem:[%s5 + $0x758] sm:$0xff]
  %v931 = vld [vmem:[%s5 + $0x760] sm:$0xff]
  %v932 = vld [vmem:[%s5 + $0x768] sm:$0xff]
  %v933 = vld [vmem:[%s5 + $0x770] sm:$0xff]
  %v934 = vld [vmem:[%s5 + $0x778] sm:$0xff]
  %v935 = vld [vmem:[%s5 + $0x780] sm:$0xff]
  %v936 = vld [vmem:[%s5 + $0x788] sm:$0xff]
  %v937 = vld [vmem:[%s5 + $0x790] sm:$0xff]
  %v938 = vld [vmem:[%s5 + $0x798] sm:$0xff]
  %v939 = vld [vmem:[%s5 + $0x7a0] sm:$0xff]
  %v940 = vld [vmem:[%s5 + $0x7a8] sm:$0xff]
  %v941 = vld [vmem:[%s5 + $0x7b0] sm:$0xff]
  %v942 = vld [vmem:[%s5 + $0x7b8] sm:$0xff]
  %v943 = vld [vmem:[%s5 + $0x7c0] sm:$0xff]
  %v944 = vld [vmem:[%s5 + $0x7c8] sm:$0xff]
  %v945 = vld [vmem:[%s5 + $0x7d0] sm:$0xff]
  %v946 = vld [vmem:[%s5 + $0x7d8] sm:$0xff]
  %v947 = vld [vmem:[%s5 + $0x7e0] sm:$0xff]
  %v948 = vld [vmem:[%s5 + $0x7e8] sm:$0xff]
  %v949 = vld [vmem:[%s5 + $0x7f0] sm:$0xff]
  %v950 = vld [vmem:[%s5 + $0x7f8] sm:$0xff]
  %v951 = vld [vmem:[%s6] sm:$0xff]
  %v953 = vlaneseq
  %v954 = vshrl.u32 %v953, 7
  %v955 = vsub.s32 0, %v954
  %v956 = vrot.slane %v951, %v955
  %v957 = vlaneseq
  %v958 = vshrl.u32 %v957, 7
  %v959 = vsub.s32 1, %v958
  %v960 = vrot.slane %v951, %v959
  %v961 = vlaneseq
  %v962 = vshrl.u32 %v961, 7
  %v963 = vsub.s32 2, %v962
  %v964 = vrot.slane %v951, %v963
  %v965 = vlaneseq
  %v966 = vshrl.u32 %v965, 7
  %v967 = vsub.s32 3, %v966
  %v968 = vrot.slane %v951, %v967
  %v969 = vlaneseq
  %v970 = vshrl.u32 %v969, 7
  %v971 = vsub.s32 4, %v970
  %v972 = vrot.slane %v951, %v971
  %v973 = vlaneseq
  %v974 = vshrl.u32 %v973, 7
  %v975 = vsub.s32 5, %v974
  %v976 = vrot.slane %v951, %v975
  %v977 = vlaneseq
  %v978 = vshrl.u32 %v977, 7
  %v979 = vsub.s32 6, %v978
  %v980 = vrot.slane %v951, %v979
  %v981 = vlaneseq
  %v982 = vshrl.u32 %v981, 7
  %v983 = vsub.s32 7, %v982
  %v984 = vrot.slane %v951, %v983
  %v1249 = vunpack.c.l.b16 %v695
  %v1250 = vunpack.c.h.b16 %v695
  %v1251 = vunpack.c.l.b16 %v696
  %v1252 = vunpack.c.h.b16 %v696
  %v1253 = vunpack.c.l.b16 %v697
  %v1254 = vunpack.c.h.b16 %v697
  %v1255 = vunpack.c.l.b16 %v698
  %v1256 = vunpack.c.h.b16 %v698
  %v1257 = vunpack.c.l.b16 %v699
  %v1258 = vunpack.c.h.b16 %v699
  %v1259 = vunpack.c.l.b16 %v700
  %v1260 = vunpack.c.h.b16 %v700
  %v1261 = vunpack.c.l.b16 %v701
  %v1262 = vunpack.c.h.b16 %v701
  %v1263 = vunpack.c.l.b16 %v702
  %v1264 = vunpack.c.h.b16 %v702
  %v1265 = vunpack.c.l.b16 %v703
  %v1266 = vunpack.c.h.b16 %v703
  %v1267 = vunpack.c.l.b16 %v704
  %v1268 = vunpack.c.h.b16 %v704
  %v1269 = vunpack.c.l.b16 %v705
  %v1270 = vunpack.c.h.b16 %v705
  %v1271 = vunpack.c.l.b16 %v706
  %v1272 = vunpack.c.h.b16 %v706
  %v1273 = vunpack.c.l.b16 %v707
  %v1274 = vunpack.c.h.b16 %v707
  %v1275 = vunpack.c.l.b16 %v708
  %v1276 = vunpack.c.h.b16 %v708
  %v1277 = vunpack.c.l.b16 %v709
  %v1278 = vunpack.c.h.b16 %v709
  %v1279 = vunpack.c.l.b16 %v710
  %v1280 = vunpack.c.h.b16 %v710
  %v1281 = vunpack.c.l.b16 %v711
  %v1282 = vunpack.c.h.b16 %v711
  %v1283 = vunpack.c.l.b16 %v712
  %v1284 = vunpack.c.h.b16 %v712
  %v1285 = vunpack.c.l.b16 %v713
  %v1286 = vunpack.c.h.b16 %v713
  %v1287 = vunpack.c.l.b16 %v714
  %v1288 = vunpack.c.h.b16 %v714
  %v1289 = vunpack.c.l.b16 %v715
  %v1290 = vunpack.c.h.b16 %v715
  %v1291 = vunpack.c.l.b16 %v716
  %v1292 = vunpack.c.h.b16 %v716
  %v1293 = vunpack.c.l.b16 %v717
  %v1294 = vunpack.c.h.b16 %v717
  %v1295 = vunpack.c.l.b16 %v718
  %v1296 = vunpack.c.h.b16 %v718
  %v1297 = vunpack.c.l.b16 %v719
  %v1298 = vunpack.c.h.b16 %v719
  %v1299 = vunpack.c.l.b16 %v720
  %v1300 = vunpack.c.h.b16 %v720
  %v1301 = vunpack.c.l.b16 %v721
  %v1302 = vunpack.c.h.b16 %v721
  %v1303 = vunpack.c.l.b16 %v722
  %v1304 = vunpack.c.h.b16 %v722
  %v1305 = vunpack.c.l.b16 %v723
  %v1306 = vunpack.c.h.b16 %v723
  %v1307 = vunpack.c.l.b16 %v724
  %v1308 = vunpack.c.h.b16 %v724
  %v1309 = vunpack.c.l.b16 %v725
  %v1310 = vunpack.c.h.b16 %v725
  %v1311 = vunpack.c.l.b16 %v726
  %v1312 = vunpack.c.h.b16 %v726
  %v1313 = vunpack.c.l.b16 %v727
  %v1314 = vunpack.c.h.b16 %v727
  %v1315 = vunpack.c.l.b16 %v728
  %v1316 = vunpack.c.h.b16 %v728
  %v1317 = vunpack.c.l.b16 %v729
  %v1318 = vunpack.c.h.b16 %v729
  %v1319 = vunpack.c.l.b16 %v730
  %v1320 = vunpack.c.h.b16 %v730
  %v1321 = vunpack.c.l.b16 %v731
  %v1322 = vunpack.c.h.b16 %v731
  %v1323 = vunpack.c.l.b16 %v732
  %v1324 = vunpack.c.h.b16 %v732
  %v1325 = vunpack.c.l.b16 %v733
  %v1326 = vunpack.c.h.b16 %v733
  %v1327 = vunpack.c.l.b16 %v734
  %v1328 = vunpack.c.h.b16 %v734
  %v1329 = vunpack.c.l.b16 %v735
  %v1330 = vunpack.c.h.b16 %v735
  %v1331 = vunpack.c.l.b16 %v736
  %v1332 = vunpack.c.h.b16 %v736
  %v1333 = vunpack.c.l.b16 %v737
  %v1334 = vunpack.c.h.b16 %v737
  %v1335 = vunpack.c.l.b16 %v738
  %v1336 = vunpack.c.h.b16 %v738
  %v1337 = vunpack.c.l.b16 %v739
  %v1338 = vunpack.c.h.b16 %v739
  %v1339 = vunpack.c.l.b16 %v740
  %v1340 = vunpack.c.h.b16 %v740
  %v1341 = vunpack.c.l.b16 %v741
  %v1342 = vunpack.c.h.b16 %v741
  %v1343 = vunpack.c.l.b16 %v742
  %v1344 = vunpack.c.h.b16 %v742
  %v1345 = vunpack.c.l.b16 %v743
  %v1346 = vunpack.c.h.b16 %v743
  %v1347 = vunpack.c.l.b16 %v744
  %v1348 = vunpack.c.h.b16 %v744
  %v1349 = vunpack.c.l.b16 %v745
  %v1350 = vunpack.c.h.b16 %v745
  %v1351 = vunpack.c.l.b16 %v746
  %v1352 = vunpack.c.h.b16 %v746
  %v1353 = vunpack.c.l.b16 %v747
  %v1354 = vunpack.c.h.b16 %v747
  %v1355 = vunpack.c.l.b16 %v748
  %v1356 = vunpack.c.h.b16 %v748
  %v1357 = vunpack.c.l.b16 %v749
  %v1358 = vunpack.c.h.b16 %v749
  %v1359 = vunpack.c.l.b16 %v750
  %v1360 = vunpack.c.h.b16 %v750
  %v1361 = vunpack.c.l.b16 %v751
  %v1362 = vunpack.c.h.b16 %v751
  %v1363 = vunpack.c.l.b16 %v752
  %v1364 = vunpack.c.h.b16 %v752
  %v1365 = vunpack.c.l.b16 %v753
  %v1366 = vunpack.c.h.b16 %v753
  %v1367 = vunpack.c.l.b16 %v754
  %v1368 = vunpack.c.h.b16 %v754
  %v1369 = vunpack.c.l.b16 %v755
  %v1370 = vunpack.c.h.b16 %v755
  %v1371 = vunpack.c.l.b16 %v756
  %v1372 = vunpack.c.h.b16 %v756
  %v1373 = vunpack.c.l.b16 %v757
  %v1374 = vunpack.c.h.b16 %v757
  %v1375 = vunpack.c.l.b16 %v758
  %v1376 = vunpack.c.h.b16 %v758
  %v1377 = vunpack.c.l.b16 %v759
  %v1378 = vunpack.c.h.b16 %v759
  %v1379 = vunpack.c.l.b16 %v760
  %v1380 = vunpack.c.h.b16 %v760
  %v1381 = vunpack.c.l.b16 %v761
  %v1382 = vunpack.c.h.b16 %v761
  %v1383 = vunpack.c.l.b16 %v762
  %v1384 = vunpack.c.h.b16 %v762
  %v1385 = vunpack.c.l.b16 %v763
  %v1386 = vunpack.c.h.b16 %v763
  %v1387 = vunpack.c.l.b16 %v764
  %v1388 = vunpack.c.h.b16 %v764
  %v1389 = vunpack.c.l.b16 %v765
  %v1390 = vunpack.c.h.b16 %v765
  %v1391 = vunpack.c.l.b16 %v766
  %v1392 = vunpack.c.h.b16 %v766
  %v1393 = vunpack.c.l.b16 %v767
  %v1394 = vunpack.c.h.b16 %v767
  %v1395 = vunpack.c.l.b16 %v768
  %v1396 = vunpack.c.h.b16 %v768
  %v1397 = vunpack.c.l.b16 %v769
  %v1398 = vunpack.c.h.b16 %v769
  %v1399 = vunpack.c.l.b16 %v770
  %v1400 = vunpack.c.h.b16 %v770
  %v1401 = vunpack.c.l.b16 %v771
  %v1402 = vunpack.c.h.b16 %v771
  %v1403 = vunpack.c.l.b16 %v772
  %v1404 = vunpack.c.h.b16 %v772
  %v1405 = vunpack.c.l.b16 %v773
  %v1406 = vunpack.c.h.b16 %v773
  %v1407 = vunpack.c.l.b16 %v774
  %v1408 = vunpack.c.h.b16 %v774
  %v1409 = vunpack.c.l.b16 %v775
  %v1410 = vunpack.c.h.b16 %v775
  %v1411 = vunpack.c.l.b16 %v776
  %v1412 = vunpack.c.h.b16 %v776
  %v1413 = vunpack.c.l.b16 %v777
  %v1414 = vunpack.c.h.b16 %v777
  %v1415 = vunpack.c.l.b16 %v778
  %v1416 = vunpack.c.h.b16 %v778
  %v1417 = vunpack.c.l.b16 %v779
  %v1418 = vunpack.c.h.b16 %v779
  %v1419 = vunpack.c.l.b16 %v780
  %v1420 = vunpack.c.h.b16 %v780
  %v1421 = vunpack.c.l.b16 %v781
  %v1422 = vunpack.c.h.b16 %v781
  %v1423 = vunpack.c.l.b16 %v782
  %v1424 = vunpack.c.h.b16 %v782
  %v1425 = vunpack.c.l.b16 %v783
  %v1426 = vunpack.c.h.b16 %v783
  %v1427 = vunpack.c.l.b16 %v784
  %v1428 = vunpack.c.h.b16 %v784
  %v1429 = vunpack.c.l.b16 %v785
  %v1430 = vunpack.c.h.b16 %v785
  %v1431 = vunpack.c.l.b16 %v786
  %v1432 = vunpack.c.h.b16 %v786
  %v1433 = vunpack.c.l.b16 %v787
  %v1434 = vunpack.c.h.b16 %v787
  %v1435 = vunpack.c.l.b16 %v788
  %v1436 = vunpack.c.h.b16 %v788
  %v1437 = vunpack.c.l.b16 %v789
  %v1438 = vunpack.c.h.b16 %v789
  %v1439 = vunpack.c.l.b16 %v790
  %v1440 = vunpack.c.h.b16 %v790
  %v1441 = vunpack.c.l.b16 %v791
  %v1442 = vunpack.c.h.b16 %v791
  %v1443 = vunpack.c.l.b16 %v792
  %v1444 = vunpack.c.h.b16 %v792
  %v1445 = vunpack.c.l.b16 %v793
  %v1446 = vunpack.c.h.b16 %v793
  %v1447 = vunpack.c.l.b16 %v794
  %v1448 = vunpack.c.h.b16 %v794
  %v1449 = vunpack.c.l.b16 %v795
  %v1450 = vunpack.c.h.b16 %v795
  %v1451 = vunpack.c.l.b16 %v796
  %v1452 = vunpack.c.h.b16 %v796
  %v1453 = vunpack.c.l.b16 %v797
  %v1454 = vunpack.c.h.b16 %v797
  %v1455 = vunpack.c.l.b16 %v798
  %v1456 = vunpack.c.h.b16 %v798
  %v1457 = vunpack.c.l.b16 %v799
  %v1458 = vunpack.c.h.b16 %v799
  %v1459 = vunpack.c.l.b16 %v800
  %v1460 = vunpack.c.h.b16 %v800
  %v1461 = vunpack.c.l.b16 %v801
  %v1462 = vunpack.c.h.b16 %v801
  %v1463 = vunpack.c.l.b16 %v802
  %v1464 = vunpack.c.h.b16 %v802
  %v1465 = vunpack.c.l.b16 %v803
  %v1466 = vunpack.c.h.b16 %v803
  %v1467 = vunpack.c.l.b16 %v804
  %v1468 = vunpack.c.h.b16 %v804
  %v1469 = vunpack.c.l.b16 %v805
  %v1470 = vunpack.c.h.b16 %v805
  %v1471 = vunpack.c.l.b16 %v806
  %v1472 = vunpack.c.h.b16 %v806
  %v1473 = vunpack.c.l.b16 %v807
  %v1474 = vunpack.c.h.b16 %v807
  %v1475 = vunpack.c.l.b16 %v808
  %v1476 = vunpack.c.h.b16 %v808
  %v1477 = vunpack.c.l.b16 %v809
  %v1478 = vunpack.c.h.b16 %v809
  %v1479 = vunpack.c.l.b16 %v810
  %v1480 = vunpack.c.h.b16 %v810
  %v1481 = vunpack.c.l.b16 %v811
  %v1482 = vunpack.c.h.b16 %v811
  %v1483 = vunpack.c.l.b16 %v812
  %v1484 = vunpack.c.h.b16 %v812
  %v1485 = vunpack.c.l.b16 %v813
  %v1486 = vunpack.c.h.b16 %v813
  %v1487 = vunpack.c.l.b16 %v814
  %v1488 = vunpack.c.h.b16 %v814
  %v1489 = vunpack.c.l.b16 %v815
  %v1490 = vunpack.c.h.b16 %v815
  %v1491 = vunpack.c.l.b16 %v816
  %v1492 = vunpack.c.h.b16 %v816
  %v1493 = vunpack.c.l.b16 %v817
  %v1494 = vunpack.c.h.b16 %v817
  %v1495 = vunpack.c.l.b16 %v818
  %v1496 = vunpack.c.h.b16 %v818
  %v1497 = vunpack.c.l.b16 %v819
  %v1498 = vunpack.c.h.b16 %v819
  %v1499 = vunpack.c.l.b16 %v820
  %v1500 = vunpack.c.h.b16 %v820
  %v1501 = vunpack.c.l.b16 %v821
  %v1502 = vunpack.c.h.b16 %v821
  %v1503 = vunpack.c.l.b16 %v822
  %v1504 = vunpack.c.h.b16 %v822
  %v1505 = vunpack.c.l.b16 %v823
  %v1506 = vunpack.c.h.b16 %v823
  %v1507 = vunpack.c.l.b16 %v824
  %v1508 = vunpack.c.h.b16 %v824
  %v1509 = vunpack.c.l.b16 %v825
  %v1510 = vunpack.c.h.b16 %v825
  %v1511 = vunpack.c.l.b16 %v826
  %v1512 = vunpack.c.h.b16 %v826
  %v1513 = vunpack.c.l.b16 %v827
  %v1514 = vunpack.c.h.b16 %v827
  %v1515 = vunpack.c.l.b16 %v828
  %v1516 = vunpack.c.h.b16 %v828
  %v1517 = vunpack.c.l.b16 %v829
  %v1518 = vunpack.c.h.b16 %v829
  %v1519 = vunpack.c.l.b16 %v830
  %v1520 = vunpack.c.h.b16 %v830
  %v1521 = vunpack.c.l.b16 %v831
  %v1522 = vunpack.c.h.b16 %v831
  %v1523 = vunpack.c.l.b16 %v832
  %v1524 = vunpack.c.h.b16 %v832
  %v1525 = vunpack.c.l.b16 %v833
  %v1526 = vunpack.c.h.b16 %v833
  %v1527 = vunpack.c.l.b16 %v834
  %v1528 = vunpack.c.h.b16 %v834
  %v1529 = vunpack.c.l.b16 %v835
  %v1530 = vunpack.c.h.b16 %v835
  %v1531 = vunpack.c.l.b16 %v836
  %v1532 = vunpack.c.h.b16 %v836
  %v1533 = vunpack.c.l.b16 %v837
  %v1534 = vunpack.c.h.b16 %v837
  %v1535 = vunpack.c.l.b16 %v838
  %v1536 = vunpack.c.h.b16 %v838
  %v1537 = vunpack.c.l.b16 %v839
  %v1538 = vunpack.c.h.b16 %v839
  %v1539 = vunpack.c.l.b16 %v840
  %v1540 = vunpack.c.h.b16 %v840
  %v1541 = vunpack.c.l.b16 %v841
  %v1542 = vunpack.c.h.b16 %v841
  %v1543 = vunpack.c.l.b16 %v842
  %v1544 = vunpack.c.h.b16 %v842
  %v1545 = vunpack.c.l.b16 %v843
  %v1546 = vunpack.c.h.b16 %v843
  %v1547 = vunpack.c.l.b16 %v844
  %v1548 = vunpack.c.h.b16 %v844
  %v1549 = vunpack.c.l.b16 %v845
  %v1550 = vunpack.c.h.b16 %v845
  %v1551 = vunpack.c.l.b16 %v846
  %v1552 = vunpack.c.h.b16 %v846
  %v1553 = vunpack.c.l.b16 %v847
  %v1554 = vunpack.c.h.b16 %v847
  %v1555 = vunpack.c.l.b16 %v848
  %v1556 = vunpack.c.h.b16 %v848
  %v1557 = vunpack.c.l.b16 %v849
  %v1558 = vunpack.c.h.b16 %v849
  %v1559 = vunpack.c.l.b16 %v850
  %v1560 = vunpack.c.h.b16 %v850
  %v1561 = vunpack.c.l.b16 %v851
  %v1562 = vunpack.c.h.b16 %v851
  %v1563 = vunpack.c.l.b16 %v852
  %v1564 = vunpack.c.h.b16 %v852
  %v1565 = vunpack.c.l.b16 %v853
  %v1566 = vunpack.c.h.b16 %v853
  %v1567 = vunpack.c.l.b16 %v854
  %v1568 = vunpack.c.h.b16 %v854
  %v1569 = vunpack.c.l.b16 %v855
  %v1570 = vunpack.c.h.b16 %v855
  %v1571 = vunpack.c.l.b16 %v856
  %v1572 = vunpack.c.h.b16 %v856
  %v1573 = vunpack.c.l.b16 %v857
  %v1574 = vunpack.c.h.b16 %v857
  %v1575 = vunpack.c.l.b16 %v858
  %v1576 = vunpack.c.h.b16 %v858
  %v1577 = vunpack.c.l.b16 %v859
  %v1578 = vunpack.c.h.b16 %v859
  %v1579 = vunpack.c.l.b16 %v860
  %v1580 = vunpack.c.h.b16 %v860
  %v1581 = vunpack.c.l.b16 %v861
  %v1582 = vunpack.c.h.b16 %v861
  %v1583 = vunpack.c.l.b16 %v862
  %v1584 = vunpack.c.h.b16 %v862
  %v1585 = vunpack.c.l.b16 %v863
  %v1586 = vunpack.c.h.b16 %v863
  %v1587 = vunpack.c.l.b16 %v864
  %v1588 = vunpack.c.h.b16 %v864
  %v1589 = vunpack.c.l.b16 %v865
  %v1590 = vunpack.c.h.b16 %v865
  %v1591 = vunpack.c.l.b16 %v866
  %v1592 = vunpack.c.h.b16 %v866
  %v1593 = vunpack.c.l.b16 %v867
  %v1594 = vunpack.c.h.b16 %v867
  %v1595 = vunpack.c.l.b16 %v868
  %v1596 = vunpack.c.h.b16 %v868
  %v1597 = vunpack.c.l.b16 %v869
  %v1598 = vunpack.c.h.b16 %v869
  %v1599 = vunpack.c.l.b16 %v870
  %v1600 = vunpack.c.h.b16 %v870
  %v1601 = vunpack.c.l.b16 %v871
  %v1602 = vunpack.c.h.b16 %v871
  %v1603 = vunpack.c.l.b16 %v872
  %v1604 = vunpack.c.h.b16 %v872
  %v1605 = vunpack.c.l.b16 %v873
  %v1606 = vunpack.c.h.b16 %v873
  %v1607 = vunpack.c.l.b16 %v874
  %v1608 = vunpack.c.h.b16 %v874
  %v1609 = vunpack.c.l.b16 %v875
  %v1610 = vunpack.c.h.b16 %v875
  %v1611 = vunpack.c.l.b16 %v876
  %v1612 = vunpack.c.h.b16 %v876
  %v1613 = vunpack.c.l.b16 %v877
  %v1614 = vunpack.c.h.b16 %v877
  %v1615 = vunpack.c.l.b16 %v878
  %v1616 = vunpack.c.h.b16 %v878
  %v1617 = vunpack.c.l.b16 %v879
  %v1618 = vunpack.c.h.b16 %v879
  %v1619 = vunpack.c.l.b16 %v880
  %v1620 = vunpack.c.h.b16 %v880
  %v1621 = vunpack.c.l.b16 %v881
  %v1622 = vunpack.c.h.b16 %v881
  %v1623 = vunpack.c.l.b16 %v882
  %v1624 = vunpack.c.h.b16 %v882
  %v1625 = vunpack.c.l.b16 %v883
  %v1626 = vunpack.c.h.b16 %v883
  %v1627 = vunpack.c.l.b16 %v884
  %v1628 = vunpack.c.h.b16 %v884
  %v1629 = vunpack.c.l.b16 %v885
  %v1630 = vunpack.c.h.b16 %v885
  %v1631 = vunpack.c.l.b16 %v886
  %v1632 = vunpack.c.h.b16 %v886
  %v1633 = vunpack.c.l.b16 %v887
  %v1634 = vunpack.c.h.b16 %v887
  %v1635 = vunpack.c.l.b16 %v888
  %v1636 = vunpack.c.h.b16 %v888
  %v1637 = vunpack.c.l.b16 %v889
  %v1638 = vunpack.c.h.b16 %v889
  %v1639 = vunpack.c.l.b16 %v890
  %v1640 = vunpack.c.h.b16 %v890
  %v1641 = vunpack.c.l.b16 %v891
  %v1642 = vunpack.c.h.b16 %v891
  %v1643 = vunpack.c.l.b16 %v892
  %v1644 = vunpack.c.h.b16 %v892
  %v1645 = vunpack.c.l.b16 %v893
  %v1646 = vunpack.c.h.b16 %v893
  %v1647 = vunpack.c.l.b16 %v894
  %v1648 = vunpack.c.h.b16 %v894
  %v1649 = vunpack.c.l.b16 %v895
  %v1650 = vunpack.c.h.b16 %v895
  %v1651 = vunpack.c.l.b16 %v896
  %v1652 = vunpack.c.h.b16 %v896
  %v1653 = vunpack.c.l.b16 %v897
  %v1654 = vunpack.c.h.b16 %v897
  %v1655 = vunpack.c.l.b16 %v898
  %v1656 = vunpack.c.h.b16 %v898
  %v1657 = vunpack.c.l.b16 %v899
  %v1658 = vunpack.c.h.b16 %v899
  %v1659 = vunpack.c.l.b16 %v900
  %v1660 = vunpack.c.h.b16 %v900
  %v1661 = vunpack.c.l.b16 %v901
  %v1662 = vunpack.c.h.b16 %v901
  %v1663 = vunpack.c.l.b16 %v902
  %v1664 = vunpack.c.h.b16 %v902
  %v1665 = vunpack.c.l.b16 %v903
  %v1666 = vunpack.c.h.b16 %v903
  %v1667 = vunpack.c.l.b16 %v904
  %v1668 = vunpack.c.h.b16 %v904
  %v1669 = vunpack.c.l.b16 %v905
  %v1670 = vunpack.c.h.b16 %v905
  %v1671 = vunpack.c.l.b16 %v906
  %v1672 = vunpack.c.h.b16 %v906
  %v1673 = vunpack.c.l.b16 %v907
  %v1674 = vunpack.c.h.b16 %v907
  %v1675 = vunpack.c.l.b16 %v908
  %v1676 = vunpack.c.h.b16 %v908
  %v1677 = vunpack.c.l.b16 %v909
  %v1678 = vunpack.c.h.b16 %v909
  %v1679 = vunpack.c.l.b16 %v910
  %v1680 = vunpack.c.h.b16 %v910
  %v1681 = vunpack.c.l.b16 %v911
  %v1682 = vunpack.c.h.b16 %v911
  %v1683 = vunpack.c.l.b16 %v912
  %v1684 = vunpack.c.h.b16 %v912
  %v1685 = vunpack.c.l.b16 %v913
  %v1686 = vunpack.c.h.b16 %v913
  %v1687 = vunpack.c.l.b16 %v914
  %v1688 = vunpack.c.h.b16 %v914
  %v1689 = vunpack.c.l.b16 %v915
  %v1690 = vunpack.c.h.b16 %v915
  %v1691 = vunpack.c.l.b16 %v916
  %v1692 = vunpack.c.h.b16 %v916
  %v1693 = vunpack.c.l.b16 %v917
  %v1694 = vunpack.c.h.b16 %v917
  %v1695 = vunpack.c.l.b16 %v918
  %v1696 = vunpack.c.h.b16 %v918
  %v1697 = vunpack.c.l.b16 %v919
  %v1698 = vunpack.c.h.b16 %v919
  %v1699 = vunpack.c.l.b16 %v920
  %v1700 = vunpack.c.h.b16 %v920
  %v1701 = vunpack.c.l.b16 %v921
  %v1702 = vunpack.c.h.b16 %v921
  %v1703 = vunpack.c.l.b16 %v922
  %v1704 = vunpack.c.h.b16 %v922
  %v1705 = vunpack.c.l.b16 %v923
  %v1706 = vunpack.c.h.b16 %v923
  %v1707 = vunpack.c.l.b16 %v924
  %v1708 = vunpack.c.h.b16 %v924
  %v1709 = vunpack.c.l.b16 %v925
  %v1710 = vunpack.c.h.b16 %v925
  %v1711 = vunpack.c.l.b16 %v926
  %v1712 = vunpack.c.h.b16 %v926
  %v1713 = vunpack.c.l.b16 %v927
  %v1714 = vunpack.c.h.b16 %v927
  %v1715 = vunpack.c.l.b16 %v928
  %v1716 = vunpack.c.h.b16 %v928
  %v1717 = vunpack.c.l.b16 %v929
  %v1718 = vunpack.c.h.b16 %v929
  %v1719 = vunpack.c.l.b16 %v930
  %v1720 = vunpack.c.h.b16 %v930
  %v1721 = vunpack.c.l.b16 %v931
  %v1722 = vunpack.c.h.b16 %v931
  %v1723 = vunpack.c.l.b16 %v932
  %v1724 = vunpack.c.h.b16 %v932
  %v1725 = vunpack.c.l.b16 %v933
  %v1726 = vunpack.c.h.b16 %v933
  %v1727 = vunpack.c.l.b16 %v934
  %v1728 = vunpack.c.h.b16 %v934
  %v1729 = vunpack.c.l.b16 %v935
  %v1730 = vunpack.c.h.b16 %v935
  %v1731 = vunpack.c.l.b16 %v936
  %v1732 = vunpack.c.h.b16 %v936
  %v1733 = vunpack.c.l.b16 %v937
  %v1734 = vunpack.c.h.b16 %v937
  %v1735 = vunpack.c.l.b16 %v938
  %v1736 = vunpack.c.h.b16 %v938
  %v1737 = vunpack.c.l.b16 %v939
  %v1738 = vunpack.c.h.b16 %v939
  %v1739 = vunpack.c.l.b16 %v940
  %v1740 = vunpack.c.h.b16 %v940
  %v1741 = vunpack.c.l.b16 %v941
  %v1742 = vunpack.c.h.b16 %v941
  %v1743 = vunpack.c.l.b16 %v942
  %v1744 = vunpack.c.h.b16 %v942
  %v1745 = vunpack.c.l.b16 %v943
  %v1746 = vunpack.c.h.b16 %v943
  %v1747 = vunpack.c.l.b16 %v944
  %v1748 = vunpack.c.h.b16 %v944
  %v1749 = vunpack.c.l.b16 %v945
  %v1750 = vunpack.c.h.b16 %v945
  %v1751 = vunpack.c.l.b16 %v946
  %v1752 = vunpack.c.h.b16 %v946
  %v1753 = vunpack.c.l.b16 %v947
  %v1754 = vunpack.c.h.b16 %v947
  %v1755 = vunpack.c.l.b16 %v948
  %v1756 = vunpack.c.h.b16 %v948
  %v1757 = vunpack.c.l.b16 %v949
  %v1758 = vunpack.c.h.b16 %v949
  %v1759 = vunpack.c.l.b16 %v950
  %v1760 = vunpack.c.h.b16 %v950
  %v1761 = vpack.c.b16 %v1257, %v1249
  %v1762 = vpack.c.b16 %v1258, %v1250
  %v1763 = vpack.c.b16 %v1259, %v1251
  %v1764 = vpack.c.b16 %v1260, %v1252
  %v1765 = vpack.c.b16 %v1261, %v1253
  %v1766 = vpack.c.b16 %v1262, %v1254
  %v1767 = vpack.c.b16 %v1263, %v1255
  %v1768 = vpack.c.b16 %v1264, %v1256
  %v1769 = vpack.c.b16 %v1273, %v1265
  %v1770 = vpack.c.b16 %v1274, %v1266
  %v1771 = vpack.c.b16 %v1275, %v1267
  %v1772 = vpack.c.b16 %v1276, %v1268
  %v1773 = vpack.c.b16 %v1277, %v1269
  %v1774 = vpack.c.b16 %v1278, %v1270
  %v1775 = vpack.c.b16 %v1279, %v1271
  %v1776 = vpack.c.b16 %v1280, %v1272
  %v1777 = vpack.c.b16 %v1289, %v1281
  %v1778 = vpack.c.b16 %v1290, %v1282
  %v1779 = vpack.c.b16 %v1291, %v1283
  %v1780 = vpack.c.b16 %v1292, %v1284
  %v1781 = vpack.c.b16 %v1293, %v1285
  %v1782 = vpack.c.b16 %v1294, %v1286
  %v1783 = vpack.c.b16 %v1295, %v1287
  %v1784 = vpack.c.b16 %v1296, %v1288
  %v1785 = vpack.c.b16 %v1305, %v1297
  %v1786 = vpack.c.b16 %v1306, %v1298
  %v1787 = vpack.c.b16 %v1307, %v1299
  %v1788 = vpack.c.b16 %v1308, %v1300
  %v1789 = vpack.c.b16 %v1309, %v1301
  %v1790 = vpack.c.b16 %v1310, %v1302
  %v1791 = vpack.c.b16 %v1311, %v1303
  %v1792 = vpack.c.b16 %v1312, %v1304
  %v1793 = vpack.c.b16 %v1321, %v1313
  %v1794 = vpack.c.b16 %v1322, %v1314
  %v1795 = vpack.c.b16 %v1323, %v1315
  %v1796 = vpack.c.b16 %v1324, %v1316
  %v1797 = vpack.c.b16 %v1325, %v1317
  %v1798 = vpack.c.b16 %v1326, %v1318
  %v1799 = vpack.c.b16 %v1327, %v1319
  %v1800 = vpack.c.b16 %v1328, %v1320
  %v1801 = vpack.c.b16 %v1337, %v1329
  %v1802 = vpack.c.b16 %v1338, %v1330
  %v1803 = vpack.c.b16 %v1339, %v1331
  %v1804 = vpack.c.b16 %v1340, %v1332
  %v1805 = vpack.c.b16 %v1341, %v1333
  %v1806 = vpack.c.b16 %v1342, %v1334
  %v1807 = vpack.c.b16 %v1343, %v1335
  %v1808 = vpack.c.b16 %v1344, %v1336
  %v1809 = vpack.c.b16 %v1353, %v1345
  %v1810 = vpack.c.b16 %v1354, %v1346
  %v1811 = vpack.c.b16 %v1355, %v1347
  %v1812 = vpack.c.b16 %v1356, %v1348
  %v1813 = vpack.c.b16 %v1357, %v1349
  %v1814 = vpack.c.b16 %v1358, %v1350
  %v1815 = vpack.c.b16 %v1359, %v1351
  %v1816 = vpack.c.b16 %v1360, %v1352
  %v1817 = vpack.c.b16 %v1369, %v1361
  %v1818 = vpack.c.b16 %v1370, %v1362
  %v1819 = vpack.c.b16 %v1371, %v1363
  %v1820 = vpack.c.b16 %v1372, %v1364
  %v1821 = vpack.c.b16 %v1373, %v1365
  %v1822 = vpack.c.b16 %v1374, %v1366
  %v1823 = vpack.c.b16 %v1375, %v1367
  %v1824 = vpack.c.b16 %v1376, %v1368
  %v1825 = vpack.c.b16 %v1385, %v1377
  %v1826 = vpack.c.b16 %v1386, %v1378
  %v1827 = vpack.c.b16 %v1387, %v1379
  %v1828 = vpack.c.b16 %v1388, %v1380
  %v1829 = vpack.c.b16 %v1389, %v1381
  %v1830 = vpack.c.b16 %v1390, %v1382
  %v1831 = vpack.c.b16 %v1391, %v1383
  %v1832 = vpack.c.b16 %v1392, %v1384
  %v1833 = vpack.c.b16 %v1401, %v1393
  %v1834 = vpack.c.b16 %v1402, %v1394
  %v1835 = vpack.c.b16 %v1403, %v1395
  %v1836 = vpack.c.b16 %v1404, %v1396
  %v1837 = vpack.c.b16 %v1405, %v1397
  %v1838 = vpack.c.b16 %v1406, %v1398
  %v1839 = vpack.c.b16 %v1407, %v1399
  %v1840 = vpack.c.b16 %v1408, %v1400
  %v1841 = vpack.c.b16 %v1417, %v1409
  %v1842 = vpack.c.b16 %v1418, %v1410
  %v1843 = vpack.c.b16 %v1419, %v1411
  %v1844 = vpack.c.b16 %v1420, %v1412
  %v1845 = vpack.c.b16 %v1421, %v1413
  %v1846 = vpack.c.b16 %v1422, %v1414
  %v1847 = vpack.c.b16 %v1423, %v1415
  %v1848 = vpack.c.b16 %v1424, %v1416
  %v1849 = vpack.c.b16 %v1433, %v1425
  %v1850 = vpack.c.b16 %v1434, %v1426
  %v1851 = vpack.c.b16 %v1435, %v1427
  %v1852 = vpack.c.b16 %v1436, %v1428
  %v1853 = vpack.c.b16 %v1437, %v1429
  %v1854 = vpack.c.b16 %v1438, %v1430
  %v1855 = vpack.c.b16 %v1439, %v1431
  %v1856 = vpack.c.b16 %v1440, %v1432
  %v1857 = vpack.c.b16 %v1449, %v1441
  %v1858 = vpack.c.b16 %v1450, %v1442
  %v1859 = vpack.c.b16 %v1451, %v1443
  %v1860 = vpack.c.b16 %v1452, %v1444
  %v1861 = vpack.c.b16 %v1453, %v1445
  %v1862 = vpack.c.b16 %v1454, %v1446
  %v1863 = vpack.c.b16 %v1455, %v1447
  %v1864 = vpack.c.b16 %v1456, %v1448
  %v1865 = vpack.c.b16 %v1465, %v1457
  %v1866 = vpack.c.b16 %v1466, %v1458
  %v1867 = vpack.c.b16 %v1467, %v1459
  %v1868 = vpack.c.b16 %v1468, %v1460
  %v1869 = vpack.c.b16 %v1469, %v1461
  %v1870 = vpack.c.b16 %v1470, %v1462
  %v1871 = vpack.c.b16 %v1471, %v1463
  %v1872 = vpack.c.b16 %v1472, %v1464
  %v1873 = vpack.c.b16 %v1481, %v1473
  %v1874 = vpack.c.b16 %v1482, %v1474
  %v1875 = vpack.c.b16 %v1483, %v1475
  %v1876 = vpack.c.b16 %v1484, %v1476
  %v1877 = vpack.c.b16 %v1485, %v1477
  %v1878 = vpack.c.b16 %v1486, %v1478
  %v1879 = vpack.c.b16 %v1487, %v1479
  %v1880 = vpack.c.b16 %v1488, %v1480
  %v1881 = vpack.c.b16 %v1497, %v1489
  %v1882 = vpack.c.b16 %v1498, %v1490
  %v1883 = vpack.c.b16 %v1499, %v1491
  %v1884 = vpack.c.b16 %v1500, %v1492
  %v1885 = vpack.c.b16 %v1501, %v1493
  %v1886 = vpack.c.b16 %v1502, %v1494
  %v1887 = vpack.c.b16 %v1503, %v1495
  %v1888 = vpack.c.b16 %v1504, %v1496
  %v1889 = vpack.c.b16 %v1513, %v1505
  %v1890 = vpack.c.b16 %v1514, %v1506
  %v1891 = vpack.c.b16 %v1515, %v1507
  %v1892 = vpack.c.b16 %v1516, %v1508
  %v1893 = vpack.c.b16 %v1517, %v1509
  %v1894 = vpack.c.b16 %v1518, %v1510
  %v1895 = vpack.c.b16 %v1519, %v1511
  %v1896 = vpack.c.b16 %v1520, %v1512
  %v1897 = vpack.c.b16 %v1529, %v1521
  %v1898 = vpack.c.b16 %v1530, %v1522
  %v1899 = vpack.c.b16 %v1531, %v1523
  %v1900 = vpack.c.b16 %v1532, %v1524
  %v1901 = vpack.c.b16 %v1533, %v1525
  %v1902 = vpack.c.b16 %v1534, %v1526
  %v1903 = vpack.c.b16 %v1535, %v1527
  %v1904 = vpack.c.b16 %v1536, %v1528
  %v1905 = vpack.c.b16 %v1545, %v1537
  %v1906 = vpack.c.b16 %v1546, %v1538
  %v1907 = vpack.c.b16 %v1547, %v1539
  %v1908 = vpack.c.b16 %v1548, %v1540
  %v1909 = vpack.c.b16 %v1549, %v1541
  %v1910 = vpack.c.b16 %v1550, %v1542
  %v1911 = vpack.c.b16 %v1551, %v1543
  %v1912 = vpack.c.b16 %v1552, %v1544
  %v1913 = vpack.c.b16 %v1561, %v1553
  %v1914 = vpack.c.b16 %v1562, %v1554
  %v1915 = vpack.c.b16 %v1563, %v1555
  %v1916 = vpack.c.b16 %v1564, %v1556
  %v1917 = vpack.c.b16 %v1565, %v1557
  %v1918 = vpack.c.b16 %v1566, %v1558
  %v1919 = vpack.c.b16 %v1567, %v1559
  %v1920 = vpack.c.b16 %v1568, %v1560
  %v1921 = vpack.c.b16 %v1577, %v1569
  %v1922 = vpack.c.b16 %v1578, %v1570
  %v1923 = vpack.c.b16 %v1579, %v1571
  %v1924 = vpack.c.b16 %v1580, %v1572
  %v1925 = vpack.c.b16 %v1581, %v1573
  %v1926 = vpack.c.b16 %v1582, %v1574
  %v1927 = vpack.c.b16 %v1583, %v1575
  %v1928 = vpack.c.b16 %v1584, %v1576
  %v1929 = vpack.c.b16 %v1593, %v1585
  %v1930 = vpack.c.b16 %v1594, %v1586
  %v1931 = vpack.c.b16 %v1595, %v1587
  %v1932 = vpack.c.b16 %v1596, %v1588
  %v1933 = vpack.c.b16 %v1597, %v1589
  %v1934 = vpack.c.b16 %v1598, %v1590
  %v1935 = vpack.c.b16 %v1599, %v1591
  %v1936 = vpack.c.b16 %v1600, %v1592
  %v1937 = vpack.c.b16 %v1609, %v1601
  %v1938 = vpack.c.b16 %v1610, %v1602
  %v1939 = vpack.c.b16 %v1611, %v1603
  %v1940 = vpack.c.b16 %v1612, %v1604
  %v1941 = vpack.c.b16 %v1613, %v1605
  %v1942 = vpack.c.b16 %v1614, %v1606
  %v1943 = vpack.c.b16 %v1615, %v1607
  %v1944 = vpack.c.b16 %v1616, %v1608
  %v1945 = vpack.c.b16 %v1625, %v1617
  %v1946 = vpack.c.b16 %v1626, %v1618
  %v1947 = vpack.c.b16 %v1627, %v1619
  %v1948 = vpack.c.b16 %v1628, %v1620
  %v1949 = vpack.c.b16 %v1629, %v1621
  %v1950 = vpack.c.b16 %v1630, %v1622
  %v1951 = vpack.c.b16 %v1631, %v1623
  %v1952 = vpack.c.b16 %v1632, %v1624
  %v1953 = vpack.c.b16 %v1641, %v1633
  %v1954 = vpack.c.b16 %v1642, %v1634
  %v1955 = vpack.c.b16 %v1643, %v1635
  %v1956 = vpack.c.b16 %v1644, %v1636
  %v1957 = vpack.c.b16 %v1645, %v1637
  %v1958 = vpack.c.b16 %v1646, %v1638
  %v1959 = vpack.c.b16 %v1647, %v1639
  %v1960 = vpack.c.b16 %v1648, %v1640
  %v1961 = vpack.c.b16 %v1657, %v1649
  %v1962 = vpack.c.b16 %v1658, %v1650
  %v1963 = vpack.c.b16 %v1659, %v1651
  %v1964 = vpack.c.b16 %v1660, %v1652
  %v1965 = vpack.c.b16 %v1661, %v1653
  %v1966 = vpack.c.b16 %v1662, %v1654
  %v1967 = vpack.c.b16 %v1663, %v1655
  %v1968 = vpack.c.b16 %v1664, %v1656
  %v1969 = vpack.c.b16 %v1673, %v1665
  %v1970 = vpack.c.b16 %v1674, %v1666
  %v1971 = vpack.c.b16 %v1675, %v1667
  %v1972 = vpack.c.b16 %v1676, %v1668
  %v1973 = vpack.c.b16 %v1677, %v1669
  %v1974 = vpack.c.b16 %v1678, %v1670
  %v1975 = vpack.c.b16 %v1679, %v1671
  %v1976 = vpack.c.b16 %v1680, %v1672
  %v1977 = vpack.c.b16 %v1689, %v1681
  %v1978 = vpack.c.b16 %v1690, %v1682
  %v1979 = vpack.c.b16 %v1691, %v1683
  %v1980 = vpack.c.b16 %v1692, %v1684
  %v1981 = vpack.c.b16 %v1693, %v1685
  %v1982 = vpack.c.b16 %v1694, %v1686
  %v1983 = vpack.c.b16 %v1695, %v1687
  %v1984 = vpack.c.b16 %v1696, %v1688
  %v1985 = vpack.c.b16 %v1705, %v1697
  %v1986 = vpack.c.b16 %v1706, %v1698
  %v1987 = vpack.c.b16 %v1707, %v1699
  %v1988 = vpack.c.b16 %v1708, %v1700
  %v1989 = vpack.c.b16 %v1709, %v1701
  %v1990 = vpack.c.b16 %v1710, %v1702
  %v1991 = vpack.c.b16 %v1711, %v1703
  %v1992 = vpack.c.b16 %v1712, %v1704
  %v1993 = vpack.c.b16 %v1721, %v1713
  %v1994 = vpack.c.b16 %v1722, %v1714
  %v1995 = vpack.c.b16 %v1723, %v1715
  %v1996 = vpack.c.b16 %v1724, %v1716
  %v1997 = vpack.c.b16 %v1725, %v1717
  %v1998 = vpack.c.b16 %v1726, %v1718
  %v1999 = vpack.c.b16 %v1727, %v1719
  %v2000 = vpack.c.b16 %v1728, %v1720
  %v2001 = vpack.c.b16 %v1737, %v1729
  %v2002 = vpack.c.b16 %v1738, %v1730
  %v2003 = vpack.c.b16 %v1739, %v1731
  %v2004 = vpack.c.b16 %v1740, %v1732
  %v2005 = vpack.c.b16 %v1741, %v1733
  %v2006 = vpack.c.b16 %v1742, %v1734
  %v2007 = vpack.c.b16 %v1743, %v1735
  %v2008 = vpack.c.b16 %v1744, %v1736
  %v2009 = vpack.c.b16 %v1753, %v1745
  %v2010 = vpack.c.b16 %v1754, %v1746
  %v2011 = vpack.c.b16 %v1755, %v1747
  %v2012 = vpack.c.b16 %v1756, %v1748
  %v2013 = vpack.c.b16 %v1757, %v1749
  %v2014 = vpack.c.b16 %v1758, %v1750
  %v2015 = vpack.c.b16 %v1759, %v1751
  %v2016 = vpack.c.b16 %v1760, %v1752
  %2273 = vmatprep.subr.bf16.mxu0 %v1818
  %2274 = vmatpush1.bf16.msra.mxu0 %v1817
  %2275 = vmatprep.subr.bf16.mxu0 %v1810
  %2276 = vmatpush1.bf16.msra.mxu0 %v1809
  %2277 = vmatprep.subr.bf16.mxu0 %v1802
  %2278 = vmatpush1.bf16.msra.mxu0 %v1801
  %2279 = vmatprep.subr.bf16.mxu0 %v1794
  %2280 = vmatpush1.bf16.msra.mxu0 %v1793
  %2281 = vmatprep.subr.bf16.mxu0 %v1786
  %2282 = vmatpush1.bf16.msra.mxu0 %v1785
  %2283 = vmatprep.subr.bf16.mxu0 %v1778
  %2284 = vmatpush1.bf16.msra.mxu0 %v1777
  %2285 = vmatprep.subr.bf16.mxu0 %v1770
  %2286 = vmatpush1.bf16.msra.mxu0 %v1769
  %2287 = vmatprep.subr.bf16.mxu0 %v1762
  %2288 = vmatpush1.bf16.msra.mxu0 %v1761
  %2289 = vmatprep.subr.bf16.mxu0 %v1882
  %2290 = vmatpush2.bf16.msra.mxu0 %v1881
  %2291 = vmatprep.subr.bf16.mxu0 %v1874
  %2292 = vmatpush2.bf16.msra.mxu0 %v1873
  %2293 = vmatprep.subr.bf16.mxu0 %v1866
  %2294 = vmatpush2.bf16.msra.mxu0 %v1865
  %2295 = vmatprep.subr.bf16.mxu0 %v1858
  %2296 = vmatpush2.bf16.msra.mxu0 %v1857
  %2297 = vmatprep.subr.bf16.mxu0 %v1850
  %2298 = vmatpush2.bf16.msra.mxu0 %v1849
  %2299 = vmatprep.subr.bf16.mxu0 %v1842
  %2300 = vmatpush2.bf16.msra.mxu0 %v1841
  %2301 = vmatprep.subr.bf16.mxu0 %v1834
  %2302 = vmatpush2.bf16.msra.mxu0 %v1833
  %2303 = vmatprep.subr.bf16.mxu0 %v1826
  %2304 = vmatpush2.bf16.msra.mxu0 %v1825
  %2305 = vmatprep.mubr.bf16.mxu0 %v692
  %2306 = vmatmul.mubr.bf16.gmra.mxu0 %v691
  %v2307 = vpop.f32.mrf.mxu0
  %v2308 = vadd.f32 %v956, %v2307
  %v2309 = vpop.f32.mrf.mxu0
  %v2310 = vadd.f32 %v960, %v2309
  %v2311 = vpop.f32.mrf.mxu0
  %v2312 = vpop.f32.mrf.mxu0
  %2313 = vdwg.mxu0
  %2314 = vmatprep.subr.bf16.mxu0 %v1946
  %2315 = vmatpush1.bf16.msra.mxu0 %v1945
  %2316 = vmatprep.subr.bf16.mxu0 %v1938
  %2317 = vmatpush1.bf16.msra.mxu0 %v1937
  %2318 = vmatprep.subr.bf16.mxu0 %v1930
  %2319 = vmatpush1.bf16.msra.mxu0 %v1929
  %2320 = vmatprep.subr.bf16.mxu0 %v1922
  %2321 = vmatpush1.bf16.msra.mxu0 %v1921
  %2322 = vmatprep.subr.bf16.mxu0 %v1914
  %2323 = vmatpush1.bf16.msra.mxu0 %v1913
  %2324 = vmatprep.subr.bf16.mxu0 %v1906
  %2325 = vmatpush1.bf16.msra.mxu0 %v1905
  %2326 = vmatprep.subr.bf16.mxu0 %v1898
  %2327 = vmatpush1.bf16.msra.mxu0 %v1897
  %2328 = vmatprep.subr.bf16.mxu0 %v1890
  %2329 = vmatpush1.bf16.msra.mxu0 %v1889
  %2330 = vmatprep.subr.bf16.mxu0 %v2010
  %2331 = vmatpush2.bf16.msra.mxu0 %v2009
  %2332 = vmatprep.subr.bf16.mxu0 %v2002
  %2333 = vmatpush2.bf16.msra.mxu0 %v2001
  %2334 = vmatprep.subr.bf16.mxu0 %v1994
  %2335 = vmatpush2.bf16.msra.mxu0 %v1993
  %2336 = vmatprep.subr.bf16.mxu0 %v1986
  %2337 = vmatpush2.bf16.msra.mxu0 %v1985
  %2338 = vmatprep.subr.bf16.mxu0 %v1978
  %2339 = vmatpush2.bf16.msra.mxu0 %v1977
  %2340 = vmatprep.subr.bf16.mxu0 %v1970
  %2341 = vmatpush2.bf16.msra.mxu0 %v1969
  %2342 = vmatprep.subr.bf16.mxu0 %v1962
  %2343 = vmatpush2.bf16.msra.mxu0 %v1961
  %2344 = vmatprep.subr.bf16.mxu0 %v1954
  %2345 = vmatpush2.bf16.msra.mxu0 %v1953
  %2346 = vmatprep.mubr.bf16.mxu0 %v694
  %2347 = vmatmul.mubr.bf16.gmra.mxu0 %v693
  %v2348 = vpop.f32.mrf.mxu0
  %v2349 = vadd.f32 %v2308, %v2348
  %v2350 = vpop.f32.mrf.mxu0
  %v2351 = vadd.f32 %v2310, %v2350
  %v2352 = vpop.f32.mrf.mxu0
  %v2353 = vpop.f32.mrf.mxu0
  %2354 = vdwg.mxu0
  %2355 = vmatprep.subr.bf16.mxu0 %v1820
  %2356 = vmatpush1.bf16.msra.mxu0 %v1819
  %2357 = vmatprep.subr.bf16.mxu0 %v1812
  %2358 = vmatpush1.bf16.msra.mxu0 %v1811
  %2359 = vmatprep.subr.bf16.mxu0 %v1804
  %2360 = vmatpush1.bf16.msra.mxu0 %v1803
  %2361 = vmatprep.subr.bf16.mxu0 %v1796
  %2362 = vmatpush1.bf16.msra.mxu0 %v1795
  %2363 = vmatprep.subr.bf16.mxu0 %v1788
  %2364 = vmatpush1.bf16.msra.mxu0 %v1787
  %2365 = vmatprep.subr.bf16.mxu0 %v1780
  %2366 = vmatpush1.bf16.msra.mxu0 %v1779
  %2367 = vmatprep.subr.bf16.mxu0 %v1772
  %2368 = vmatpush1.bf16.msra.mxu0 %v1771
  %2369 = vmatprep.subr.bf16.mxu0 %v1764
  %2370 = vmatpush1.bf16.msra.mxu0 %v1763
  %2371 = vmatprep.subr.bf16.mxu0 %v1884
  %2372 = vmatpush2.bf16.msra.mxu0 %v1883
  %2373 = vmatprep.subr.bf16.mxu0 %v1876
  %2374 = vmatpush2.bf16.msra.mxu0 %v1875
  %2375 = vmatprep.subr.bf16.mxu0 %v1868
  %2376 = vmatpush2.bf16.msra.mxu0 %v1867
  %2377 = vmatprep.subr.bf16.mxu0 %v1860
  %2378 = vmatpush2.bf16.msra.mxu0 %v1859
  %2379 = vmatprep.subr.bf16.mxu0 %v1852
  %2380 = vmatpush2.bf16.msra.mxu0 %v1851
  %2381 = vmatprep.subr.bf16.mxu0 %v1844
  %2382 = vmatpush2.bf16.msra.mxu0 %v1843
  %2383 = vmatprep.subr.bf16.mxu0 %v1836
  %2384 = vmatpush2.bf16.msra.mxu0 %v1835
  %2385 = vmatprep.subr.bf16.mxu0 %v1828
  %2386 = vmatpush2.bf16.msra.mxu0 %v1827
  %2387 = vmatprep.mubr.bf16.mxu0 %v692
  %2388 = vmatmul.mubr.bf16.gmra.mxu0 %v691
  %v2389 = vpop.f32.mrf.mxu0
  %v2390 = vadd.f32 %v964, %v2389
  %v2391 = vpop.f32.mrf.mxu0
  %v2392 = vadd.f32 %v968, %v2391
  %v2393 = vpop.f32.mrf.mxu0
  %v2394 = vpop.f32.mrf.mxu0
  %2395 = vdwg.mxu0
  %2396 = vmatprep.subr.bf16.mxu0 %v1948
  %2397 = vmatpush1.bf16.msra.mxu0 %v1947
  %2398 = vmatprep.subr.bf16.mxu0 %v1940
  %2399 = vmatpush1.bf16.msra.mxu0 %v1939
  %2400 = vmatprep.subr.bf16.mxu0 %v1932
  %2401 = vmatpush1.bf16.msra.mxu0 %v1931
  %2402 = vmatprep.subr.bf16.mxu0 %v1924
  %2403 = vmatpush1.bf16.msra.mxu0 %v1923
  %2404 = vmatprep.subr.bf16.mxu0 %v1916
  %2405 = vmatpush1.bf16.msra.mxu0 %v1915
  %2406 = vmatprep.subr.bf16.mxu0 %v1908
  %2407 = vmatpush1.bf16.msra.mxu0 %v1907
  %2408 = vmatprep.subr.bf16.mxu0 %v1900
  %2409 = vmatpush1.bf16.msra.mxu0 %v1899
  %2410 = vmatprep.subr.bf16.mxu0 %v1892
  %2411 = vmatpush1.bf16.msra.mxu0 %v1891
  %2412 = vmatprep.subr.bf16.mxu0 %v2012
  %2413 = vmatpush2.bf16.msra.mxu0 %v2011
  %2414 = vmatprep.subr.bf16.mxu0 %v2004
  %2415 = vmatpush2.bf16.msra.mxu0 %v2003
  %2416 = vmatprep.subr.bf16.mxu0 %v1996
  %2417 = vmatpush2.bf16.msra.mxu0 %v1995
  %2418 = vmatprep.subr.bf16.mxu0 %v1988
  %2419 = vmatpush2.bf16.msra.mxu0 %v1987
  %2420 = vmatprep.subr.bf16.mxu0 %v1980
  %2421 = vmatpush2.bf16.msra.mxu0 %v1979
  %2422 = vmatprep.subr.bf16.mxu0 %v1972
  %2423 = vmatpush2.bf16.msra.mxu0 %v1971
  %2424 = vmatprep.subr.bf16.mxu0 %v1964
  %2425 = vmatpush2.bf16.msra.mxu0 %v1963
  %2426 = vmatprep.subr.bf16.mxu0 %v1956
  %2427 = vmatpush2.bf16.msra.mxu0 %v1955
  %2428 = vmatprep.mubr.bf16.mxu0 %v694
  %2429 = vmatmul.mubr.bf16.gmra.mxu0 %v693
  %v2430 = vpop.f32.mrf.mxu0
  %v2431 = vadd.f32 %v2390, %v2430
  %v2432 = vpop.f32.mrf.mxu0
  %v2433 = vadd.f32 %v2392, %v2432
  %v2434 = vpop.f32.mrf.mxu0
  %v2435 = vpop.f32.mrf.mxu0
  %2436 = vdwg.mxu0
  %2437 = vmatprep.subr.bf16.mxu0 %v1822
  %2438 = vmatpush1.bf16.msra.mxu0 %v1821
  %2439 = vmatprep.subr.bf16.mxu0 %v1814
  %2440 = vmatpush1.bf16.msra.mxu0 %v1813
  %2441 = vmatprep.subr.bf16.mxu0 %v1806
  %2442 = vmatpush1.bf16.msra.mxu0 %v1805
  %2443 = vmatprep.subr.bf16.mxu0 %v1798
  %2444 = vmatpush1.bf16.msra.mxu0 %v1797
  %2445 = vmatprep.subr.bf16.mxu0 %v1790
  %2446 = vmatpush1.bf16.msra.mxu0 %v1789
  %2447 = vmatprep.subr.bf16.mxu0 %v1782
  %2448 = vmatpush1.bf16.msra.mxu0 %v1781
  %2449 = vmatprep.subr.bf16.mxu0 %v1774
  %2450 = vmatpush1.bf16.msra.mxu0 %v1773
  %2451 = vmatprep.subr.bf16.mxu0 %v1766
  %2452 = vmatpush1.bf16.msra.mxu0 %v1765
  %2453 = vmatprep.subr.bf16.mxu0 %v1886
  %2454 = vmatpush2.bf16.msra.mxu0 %v1885
  %2455 = vmatprep.subr.bf16.mxu0 %v1878
  %2456 = vmatpush2.bf16.msra.mxu0 %v1877
  %2457 = vmatprep.subr.bf16.mxu0 %v1870
  %2458 = vmatpush2.bf16.msra.mxu0 %v1869
  %2459 = vmatprep.subr.bf16.mxu0 %v1862
  %2460 = vmatpush2.bf16.msra.mxu0 %v1861
  %2461 = vmatprep.subr.bf16.mxu0 %v1854
  %2462 = vmatpush2.bf16.msra.mxu0 %v1853
  %2463 = vmatprep.subr.bf16.mxu0 %v1846
  %2464 = vmatpush2.bf16.msra.mxu0 %v1845
  %2465 = vmatprep.subr.bf16.mxu0 %v1838
  %2466 = vmatpush2.bf16.msra.mxu0 %v1837
  %2467 = vmatprep.subr.bf16.mxu0 %v1830
  %2468 = vmatpush2.bf16.msra.mxu0 %v1829
  %2469 = vmatprep.mubr.bf16.mxu0 %v692
  %2470 = vmatmul.mubr.bf16.gmra.mxu0 %v691
  %v2471 = vpop.f32.mrf.mxu0
  %v2472 = vadd.f32 %v972, %v2471
  %v2473 = vpop.f32.mrf.mxu0
  %v2474 = vadd.f32 %v976, %v2473
  %v2475 = vpop.f32.mrf.mxu0
  %v2476 = vpop.f32.mrf.mxu0
  %2477 = vdwg.mxu0
  %2478 = vmatprep.subr.bf16.mxu0 %v1950
  %2479 = vmatpush1.bf16.msra.mxu0 %v1949
  %2480 = vmatprep.subr.bf16.mxu0 %v1942
  %2481 = vmatpush1.bf16.msra.mxu0 %v1941
  %2482 = vmatprep.subr.bf16.mxu0 %v1934
  %2483 = vmatpush1.bf16.msra.mxu0 %v1933
  %2484 = vmatprep.subr.bf16.mxu0 %v1926
  %2485 = vmatpush1.bf16.msra.mxu0 %v1925
  %2486 = vmatprep.subr.bf16.mxu0 %v1918
  %2487 = vmatpush1.bf16.msra.mxu0 %v1917
  %2488 = vmatprep.subr.bf16.mxu0 %v1910
  %2489 = vmatpush1.bf16.msra.mxu0 %v1909
  %2490 = vmatprep.subr.bf16.mxu0 %v1902
  %2491 = vmatpush1.bf16.msra.mxu0 %v1901
  %2492 = vmatprep.subr.bf16.mxu0 %v1894
  %2493 = vmatpush1.bf16.msra.mxu0 %v1893
  %2494 = vmatprep.subr.bf16.mxu0 %v2014
  %2495 = vmatpush2.bf16.msra.mxu0 %v2013
  %2496 = vmatprep.subr.bf16.mxu0 %v2006
  %2497 = vmatpush2.bf16.msra.mxu0 %v2005
  %2498 = vmatprep.subr.bf16.mxu0 %v1998
  %2499 = vmatpush2.bf16.msra.mxu0 %v1997
  %2500 = vmatprep.subr.bf16.mxu0 %v1990
  %2501 = vmatpush2.bf16.msra.mxu0 %v1989
  %2502 = vmatprep.subr.bf16.mxu0 %v1982
  %2503 = vmatpush2.bf16.msra.mxu0 %v1981
  %2504 = vmatprep.subr.bf16.mxu0 %v1974
  %2505 = vmatpush2.bf16.msra.mxu0 %v1973
  %2506 = vmatprep.subr.bf16.mxu0 %v1966
  %2507 = vmatpush2.bf16.msra.mxu0 %v1965
  %2508 = vmatprep.subr.bf16.mxu0 %v1958
  %2509 = vmatpush2.bf16.msra.mxu0 %v1957
  %2510 = vmatprep.mubr.bf16.mxu0 %v694
  %2511 = vmatmul.mubr.bf16.gmra.mxu0 %v693
  %v2512 = vpop.f32.mrf.mxu0
  %v2513 = vadd.f32 %v2472, %v2512
  %v2514 = vpop.f32.mrf.mxu0
  %v2515 = vadd.f32 %v2474, %v2514
  %v2516 = vpop.f32.mrf.mxu0
  %v2517 = vpop.f32.mrf.mxu0
  %2518 = vdwg.mxu0
  %2519 = vmatprep.subr.bf16.mxu0 %v1824
  %2520 = vmatpush1.bf16.msra.mxu0 %v1823
  %2521 = vmatprep.subr.bf16.mxu0 %v1816
  %2522 = vmatpush1.bf16.msra.mxu0 %v1815
  %2523 = vmatprep.subr.bf16.mxu0 %v1808
  %2524 = vmatpush1.bf16.msra.mxu0 %v1807
  %2525 = vmatprep.subr.bf16.mxu0 %v1800
  %2526 = vmatpush1.bf16.msra.mxu0 %v1799
  %2527 = vmatprep.subr.bf16.mxu0 %v1792
  %2528 = vmatpush1.bf16.msra.mxu0 %v1791
  %2529 = vmatprep.subr.bf16.mxu0 %v1784
  %2530 = vmatpush1.bf16.msra.mxu0 %v1783
  %2531 = vmatprep.subr.bf16.mxu0 %v1776
  %2532 = vmatpush1.bf16.msra.mxu0 %v1775
  %2533 = vmatprep.subr.bf16.mxu0 %v1768
  %2534 = vmatpush1.bf16.msra.mxu0 %v1767
  %2535 = vmatprep.subr.bf16.mxu0 %v1888
  %2536 = vmatpush2.bf16.msra.mxu0 %v1887
  %2537 = vmatprep.subr.bf16.mxu0 %v1880
  %2538 = vmatpush2.bf16.msra.mxu0 %v1879
  %2539 = vmatprep.subr.bf16.mxu0 %v1872
  %2540 = vmatpush2.bf16.msra.mxu0 %v1871
  %2541 = vmatprep.subr.bf16.mxu0 %v1864
  %2542 = vmatpush2.bf16.msra.mxu0 %v1863
  %2543 = vmatprep.subr.bf16.mxu0 %v1856
  %2544 = vmatpush2.bf16.msra.mxu0 %v1855
  %2545 = vmatprep.subr.bf16.mxu0 %v1848
  %2546 = vmatpush2.bf16.msra.mxu0 %v1847
  %2547 = vmatprep.subr.bf16.mxu0 %v1840
  %2548 = vmatpush2.bf16.msra.mxu0 %v1839
  %2549 = vmatprep.subr.bf16.mxu0 %v1832
  %2550 = vmatpush2.bf16.msra.mxu0 %v1831
  %2551 = vmatprep.mubr.bf16.mxu0 %v692
  %2552 = vmatmul.mubr.bf16.gmra.mxu0 %v691
  %v2553 = vpop.f32.mrf.mxu0
  %v2554 = vadd.f32 %v980, %v2553
  %v2555 = vpop.f32.mrf.mxu0
  %v2556 = vadd.f32 %v984, %v2555
  %v2557 = vpop.f32.mrf.mxu0
  %v2558 = vpop.f32.mrf.mxu0
  %2559 = vdwg.mxu0
  %2560 = vmatprep.subr.bf16.mxu0 %v1952
  %2561 = vmatpush1.bf16.msra.mxu0 %v1951
  %2562 = vmatprep.subr.bf16.mxu0 %v1944
  %2563 = vmatpush1.bf16.msra.mxu0 %v1943
  %2564 = vmatprep.subr.bf16.mxu0 %v1936
  %2565 = vmatpush1.bf16.msra.mxu0 %v1935
  %2566 = vmatprep.subr.bf16.mxu0 %v1928
  %2567 = vmatpush1.bf16.msra.mxu0 %v1927
  %2568 = vmatprep.subr.bf16.mxu0 %v1920
  %2569 = vmatpush1.bf16.msra.mxu0 %v1919
  %2570 = vmatprep.subr.bf16.mxu0 %v1912
  %2571 = vmatpush1.bf16.msra.mxu0 %v1911
  %2572 = vmatprep.subr.bf16.mxu0 %v1904
  %2573 = vmatpush1.bf16.msra.mxu0 %v1903
  %2574 = vmatprep.subr.bf16.mxu0 %v1896
  %2575 = vmatpush1.bf16.msra.mxu0 %v1895
  %2576 = vmatprep.subr.bf16.mxu0 %v2016
  %2577 = vmatpush2.bf16.msra.mxu0 %v2015
  %2578 = vmatprep.subr.bf16.mxu0 %v2008
  %2579 = vmatpush2.bf16.msra.mxu0 %v2007
  %2580 = vmatprep.subr.bf16.mxu0 %v2000
  %2581 = vmatpush2.bf16.msra.mxu0 %v1999
  %2582 = vmatprep.subr.bf16.mxu0 %v1992
  %2583 = vmatpush2.bf16.msra.mxu0 %v1991
  %2584 = vmatprep.subr.bf16.mxu0 %v1984
  %2585 = vmatpush2.bf16.msra.mxu0 %v1983
  %2586 = vmatprep.subr.bf16.mxu0 %v1976
  %2587 = vmatpush2.bf16.msra.mxu0 %v1975
  %2588 = vmatprep.subr.bf16.mxu0 %v1968
  %2589 = vmatpush2.bf16.msra.mxu0 %v1967
  %2590 = vmatprep.subr.bf16.mxu0 %v1960
  %2591 = vmatpush2.bf16.msra.mxu0 %v1959
  %2592 = vmatprep.mubr.bf16.mxu0 %v694
  %2593 = vmatmul.mubr.bf16.gmra.mxu0 %v693
  %v2594 = vpop.f32.mrf.mxu0
  %v2595 = vadd.f32 %v2554, %v2594
  %v2596 = vpop.f32.mrf.mxu0
  %v2597 = vadd.f32 %v2556, %v2596
  %v2598 = vpop.f32.mrf.mxu0
  %v2599 = vpop.f32.mrf.mxu0
  %2600 = vdwg.mxu0
  %vm2601 = vcmp.gt.f32.partialorder %v2349, 0.0
  %vm2602 = vcmp.gt.f32.partialorder %v2351, 0.0
  %vm2603 = vcmp.gt.f32.partialorder %v2431, 0.0
  %vm2604 = vcmp.gt.f32.partialorder %v2433, 0.0
  %vm2605 = vcmp.gt.f32.partialorder %v2513, 0.0
  %vm2606 = vcmp.gt.f32.partialorder %v2515, 0.0
  %vm2607 = vcmp.gt.f32.partialorder %v2595, 0.0
  %vm2608 = vcmp.gt.f32.partialorder %v2597, 0.0
  %v2609 = vmul.f32 %v2349, 0.2
  %v2610 = vmul.f32 %v2351, 0.2
  %v2611 = vmul.f32 %v2431, 0.2
  %v2612 = vmul.f32 %v2433, 0.2
  %v2613 = vmul.f32 %v2513, 0.2
  %v2614 = vmul.f32 %v2515, 0.2
  %v2615 = vmul.f32 %v2595, 0.2
  %v2616 = vmul.f32 %v2597, 0.2
  %v2617 = vsel %vm2601, %v2349, %v2609
  %v2618 = vsel %vm2602, %v2351, %v2610
  %v2619 = vsel %vm2603, %v2431, %v2611
  %v2620 = vsel %vm2604, %v2433, %v2612
  %v2621 = vsel %vm2605, %v2513, %v2613
  %v2622 = vsel %vm2606, %v2515, %v2614
  %v2623 = vsel %vm2607, %v2595, %v2615
  %v2624 = vsel %vm2608, %v2597, %v2616
  %v2625 = vpack.c.bf16 %v2617, %v2617
  %v2626 = vpack.c.bf16 %v2618, %v2618
  %v2627 = vpack.c.bf16 %v2619, %v2619
  %v2628 = vpack.c.bf16 %v2620, %v2620
  %v2629 = vpack.c.bf16 %v2621, %v2621
  %v2630 = vpack.c.bf16 %v2622, %v2622
  %v2631 = vpack.c.bf16 %v2623, %v2623
  %v2632 = vpack.c.bf16 %v2624, %v2624
  %v2633 = vld [vmem:[%s7] sm:$0xff]
  %v2634 = vld [vmem:[%s7 + $0x8] sm:$0xff]
  %v2635 = vld [vmem:[%s7 + $0x10] sm:$0xff]
  %v2636 = vld [vmem:[%s7 + $0x18] sm:$0xf]
  %v2637 = vld [vmem:[%s7 + $0x1c] sm:$0xff]
  %v2638 = vld [vmem:[%s7 + $0x24] sm:$0xff]
  %v2639 = vld [vmem:[%s7 + $0x2c] sm:$0xff]
  %v2640 = vld [vmem:[%s7 + $0x34] sm:$0xf]
  %v2641 = vld [vmem:[%s7 + $0x38] sm:$0xff]
  %v2642 = vld [vmem:[%s7 + $0x40] sm:$0xff]
  %v2643 = vld [vmem:[%s7 + $0x48] sm:$0xff]
  %v2644 = vld [vmem:[%s7 + $0x50] sm:$0xf]
  %v2645 = vld [vmem:[%s7 + $0x54] sm:$0xff]
  %v2646 = vld [vmem:[%s7 + $0x5c] sm:$0xff]
  %v2647 = vld [vmem:[%s7 + $0x64] sm:$0xff]
  %v2648 = vld [vmem:[%s7 + $0x6c] sm:$0xf]
  %v2649 = vld [vmem:[%s7 + $0x70] sm:$0xff]
  %v2650 = vld [vmem:[%s7 + $0x78] sm:$0xff]
  %v2651 = vld [vmem:[%s7 + $0x80] sm:$0xff]
  %v2652 = vld [vmem:[%s7 + $0x88] sm:$0xf]
  %v2653 = vld [vmem:[%s7 + $0x8c] sm:$0xff]
  %v2654 = vld [vmem:[%s7 + $0x94] sm:$0xff]
  %v2655 = vld [vmem:[%s7 + $0x9c] sm:$0xff]
  %v2656 = vld [vmem:[%s7 + $0xa4] sm:$0xf]
  %v2657 = vld [vmem:[%s7 + $0xa8] sm:$0xff]
  %v2658 = vld [vmem:[%s7 + $0xb0] sm:$0xff]
  %v2659 = vld [vmem:[%s7 + $0xb8] sm:$0xff]
  %v2660 = vld [vmem:[%s7 + $0xc0] sm:$0xf]
  %v2661 = vld [vmem:[%s7 + $0xc4] sm:$0xff]
  %v2662 = vld [vmem:[%s7 + $0xcc] sm:$0xff]
  %v2663 = vld [vmem:[%s7 + $0xd4] sm:$0xff]
  %v2664 = vld [vmem:[%s7 + $0xdc] sm:$0xf]
  %v2665 = vld [vmem:[%s7 + $0xe0] sm:$0xff]
  %v2666 = vld [vmem:[%s7 + $0xe8] sm:$0xff]
  %v2667 = vld [vmem:[%s7 + $0xf0] sm:$0xff]
  %v2668 = vld [vmem:[%s7 + $0xf8] sm:$0xf]
  %v2669 = vld [vmem:[%s7 + $0xfc] sm:$0xff]
  %v2670 = vld [vmem:[%s7 + $0x104] sm:$0xff]
  %v2671 = vld [vmem:[%s7 + $0x10c] sm:$0xff]
  %v2672 = vld [vmem:[%s7 + $0x114] sm:$0xf]
  %v2673 = vld [vmem:[%s7 + $0x118] sm:$0xff]
  %v2674 = vld [vmem:[%s7 + $0x120] sm:$0xff]
  %v2675 = vld [vmem:[%s7 + $0x128] sm:$0xff]
  %v2676 = vld [vmem:[%s7 + $0x130] sm:$0xf]
  %v2677 = vld [vmem:[%s7 + $0x134] sm:$0xff]
  %v2678 = vld [vmem:[%s7 + $0x13c] sm:$0xff]
  %v2679 = vld [vmem:[%s7 + $0x144] sm:$0xff]
  %v2680 = vld [vmem:[%s7 + $0x14c] sm:$0xf]
  %v2681 = vld [vmem:[%s7 + $0x150] sm:$0xff]
  %v2682 = vld [vmem:[%s7 + $0x158] sm:$0xff]
  %v2683 = vld [vmem:[%s7 + $0x160] sm:$0xff]
  %v2684 = vld [vmem:[%s7 + $0x168] sm:$0xf]
  %v2685 = vld [vmem:[%s7 + $0x16c] sm:$0xff]
  %v2686 = vld [vmem:[%s7 + $0x174] sm:$0xff]
  %v2687 = vld [vmem:[%s7 + $0x17c] sm:$0xff]
  %v2688 = vld [vmem:[%s7 + $0x184] sm:$0xf]
  %v2689 = vld [vmem:[%s7 + $0x188] sm:$0xff]
  %v2690 = vld [vmem:[%s7 + $0x190] sm:$0xff]
  %v2691 = vld [vmem:[%s7 + $0x198] sm:$0xff]
  %v2692 = vld [vmem:[%s7 + $0x1a0] sm:$0xf]
  %v2693 = vld [vmem:[%s7 + $0x1a4] sm:$0xff]
  %v2694 = vld [vmem:[%s7 + $0x1ac] sm:$0xff]
  %v2695 = vld [vmem:[%s7 + $0x1b4] sm:$0xff]
  %v2696 = vld [vmem:[%s7 + $0x1bc] sm:$0xf]
  %v2697 = vld [vmem:[%s7 + $0x1c0] sm:$0xff]
  %v2698 = vld [vmem:[%s7 + $0x1c8] sm:$0xff]
  %v2699 = vld [vmem:[%s7 + $0x1d0] sm:$0xff]
  %v2700 = vld [vmem:[%s7 + $0x1d8] sm:$0xf]
  %v2701 = vld [vmem:[%s7 + $0x1dc] sm:$0xff]
  %v2702 = vld [vmem:[%s7 + $0x1e4] sm:$0xff]
  %v2703 = vld [vmem:[%s7 + $0x1ec] sm:$0xff]
  %v2704 = vld [vmem:[%s7 + $0x1f4] sm:$0xf]
  %v2705 = vld [vmem:[%s7 + $0x1f8] sm:$0xff]
  %v2706 = vld [vmem:[%s7 + $0x200] sm:$0xff]
  %v2707 = vld [vmem:[%s7 + $0x208] sm:$0xff]
  %v2708 = vld [vmem:[%s7 + $0x210] sm:$0xf]
  %v2709 = vld [vmem:[%s7 + $0x214] sm:$0xff]
  %v2710 = vld [vmem:[%s7 + $0x21c] sm:$0xff]
  %v2711 = vld [vmem:[%s7 + $0x224] sm:$0xff]
  %v2712 = vld [vmem:[%s7 + $0x22c] sm:$0xf]
  %v2713 = vld [vmem:[%s7 + $0x230] sm:$0xff]
  %v2714 = vld [vmem:[%s7 + $0x238] sm:$0xff]
  %v2715 = vld [vmem:[%s7 + $0x240] sm:$0xff]
  %v2716 = vld [vmem:[%s7 + $0x248] sm:$0xf]
  %v2717 = vld [vmem:[%s7 + $0x24c] sm:$0xff]
  %v2718 = vld [vmem:[%s7 + $0x254] sm:$0xff]
  %v2719 = vld [vmem:[%s7 + $0x25c] sm:$0xff]
  %v2720 = vld [vmem:[%s7 + $0x264] sm:$0xf]
  %v2721 = vld [vmem:[%s7 + $0x268] sm:$0xff]
  %v2722 = vld [vmem:[%s7 + $0x270] sm:$0xff]
  %v2723 = vld [vmem:[%s7 + $0x278] sm:$0xff]
  %v2724 = vld [vmem:[%s7 + $0x280] sm:$0xf]
  %v2725 = vld [vmem:[%s7 + $0x284] sm:$0xff]
  %v2726 = vld [vmem:[%s7 + $0x28c] sm:$0xff]
  %v2727 = vld [vmem:[%s7 + $0x294] sm:$0xff]
  %v2728 = vld [vmem:[%s7 + $0x29c] sm:$0xf]
  %v2729 = vld [vmem:[%s7 + $0x2a0] sm:$0xff]
  %v2730 = vld [vmem:[%s7 + $0x2a8] sm:$0xff]
  %v2731 = vld [vmem:[%s7 + $0x2b0] sm:$0xff]
  %v2732 = vld [vmem:[%s7 + $0x2b8] sm:$0xf]
  %v2733 = vld [vmem:[%s7 + $0x2bc] sm:$0xff]
  %v2734 = vld [vmem:[%s7 + $0x2c4] sm:$0xff]
  %v2735 = vld [vmem:[%s7 + $0x2cc] sm:$0xff]
  %v2736 = vld [vmem:[%s7 + $0x2d4] sm:$0xf]
  %v2737 = vld [vmem:[%s7 + $0x2d8] sm:$0xff]
  %v2738 = vld [vmem:[%s7 + $0x2e0] sm:$0xff]
  %v2739 = vld [vmem:[%s7 + $0x2e8] sm:$0xff]
  %v2740 = vld [vmem:[%s7 + $0x2f0] sm:$0xf]
  %v2741 = vld [vmem:[%s7 + $0x2f4] sm:$0xff]
  %v2742 = vld [vmem:[%s7 + $0x2fc] sm:$0xff]
  %v2743 = vld [vmem:[%s7 + $0x304] sm:$0xff]
  %v2744 = vld [vmem:[%s7 + $0x30c] sm:$0xf]
  %v2745 = vld [vmem:[%s7 + $0x310] sm:$0xff]
  %v2746 = vld [vmem:[%s7 + $0x318] sm:$0xff]
  %v2747 = vld [vmem:[%s7 + $0x320] sm:$0xff]
  %v2748 = vld [vmem:[%s7 + $0x328] sm:$0xf]
  %v2749 = vld [vmem:[%s7 + $0x32c] sm:$0xff]
  %v2750 = vld [vmem:[%s7 + $0x334] sm:$0xff]
  %v2751 = vld [vmem:[%s7 + $0x33c] sm:$0xff]
  %v2752 = vld [vmem:[%s7 + $0x344] sm:$0xf]
  %v2753 = vld [vmem:[%s7 + $0x348] sm:$0xff]
  %v2754 = vld [vmem:[%s7 + $0x350] sm:$0xff]
  %v2755 = vld [vmem:[%s7 + $0x358] sm:$0xff]
  %v2756 = vld [vmem:[%s7 + $0x360] sm:$0xf]
  %v2757 = vld [vmem:[%s7 + $0x364] sm:$0xff]
  %v2758 = vld [vmem:[%s7 + $0x36c] sm:$0xff]
  %v2759 = vld [vmem:[%s7 + $0x374] sm:$0xff]
  %v2760 = vld [vmem:[%s7 + $0x37c] sm:$0xf]
  %v2761 = vld [vmem:[%s7 + $0x380] sm:$0xff]
  %v2762 = vld [vmem:[%s7 + $0x388] sm:$0xff]
  %v2763 = vld [vmem:[%s7 + $0x390] sm:$0xff]
  %v2764 = vld [vmem:[%s7 + $0x398] sm:$0xf]
  %v2765 = vld [vmem:[%s7 + $0x39c] sm:$0xff]
  %v2766 = vld [vmem:[%s7 + $0x3a4] sm:$0xff]
  %v2767 = vld [vmem:[%s7 + $0x3ac] sm:$0xff]
  %v2768 = vld [vmem:[%s7 + $0x3b4] sm:$0xf]
  %v2769 = vld [vmem:[%s7 + $0x3b8] sm:$0xff]
  %v2770 = vld [vmem:[%s7 + $0x3c0] sm:$0xff]
  %v2771 = vld [vmem:[%s7 + $0x3c8] sm:$0xff]
  %v2772 = vld [vmem:[%s7 + $0x3d0] sm:$0xf]
  %v2773 = vld [vmem:[%s7 + $0x3d4] sm:$0xff]
  %v2774 = vld [vmem:[%s7 + $0x3dc] sm:$0xff]
  %v2775 = vld [vmem:[%s7 + $0x3e4] sm:$0xff]
  %v2776 = vld [vmem:[%s7 + $0x3ec] sm:$0xf]
  %v2777 = vld [vmem:[%s7 + $0x3f0] sm:$0xff]
  %v2778 = vld [vmem:[%s7 + $0x3f8] sm:$0xff]
  %v2779 = vld [vmem:[%s7 + $0x400] sm:$0xff]
  %v2780 = vld [vmem:[%s7 + $0x408] sm:$0xf]
  %v2781 = vld [vmem:[%s7 + $0x40c] sm:$0xff]
  %v2782 = vld [vmem:[%s7 + $0x414] sm:$0xff]
  %v2783 = vld [vmem:[%s7 + $0x41c] sm:$0xff]
  %v2784 = vld [vmem:[%s7 + $0x424] sm:$0xf]
  %v2785 = vld [vmem:[%s7 + $0x428] sm:$0xff]
  %v2786 = vld [vmem:[%s7 + $0x430] sm:$0xff]
  %v2787 = vld [vmem:[%s7 + $0x438] sm:$0xff]
  %v2788 = vld [vmem:[%s7 + $0x440] sm:$0xf]
  %v2789 = vld [vmem:[%s7 + $0x444] sm:$0xff]
  %v2790 = vld [vmem:[%s7 + $0x44c] sm:$0xff]
  %v2791 = vld [vmem:[%s7 + $0x454] sm:$0xff]
  %v2792 = vld [vmem:[%s7 + $0x45c] sm:$0xf]
  %v2793 = vld [vmem:[%s7 + $0x460] sm:$0xff]
  %v2794 = vld [vmem:[%s7 + $0x468] sm:$0xff]
  %v2795 = vld [vmem:[%s7 + $0x470] sm:$0xff]
  %v2796 = vld [vmem:[%s7 + $0x478] sm:$0xf]
  %v2797 = vld [vmem:[%s7 + $0x47c] sm:$0xff]
  %v2798 = vld [vmem:[%s7 + $0x484] sm:$0xff]
  %v2799 = vld [vmem:[%s7 + $0x48c] sm:$0xff]
  %v2800 = vld [vmem:[%s7 + $0x494] sm:$0xf]
  %v2801 = vld [vmem:[%s7 + $0x498] sm:$0xff]
  %v2802 = vld [vmem:[%s7 + $0x4a0] sm:$0xff]
  %v2803 = vld [vmem:[%s7 + $0x4a8] sm:$0xff]
  %v2804 = vld [vmem:[%s7 + $0x4b0] sm:$0xf]
  %v2805 = vld [vmem:[%s7 + $0x4b4] sm:$0xff]
  %v2806 = vld [vmem:[%s7 + $0x4bc] sm:$0xff]
  %v2807 = vld [vmem:[%s7 + $0x4c4] sm:$0xff]
  %v2808 = vld [vmem:[%s7 + $0x4cc] sm:$0xf]
  %v2809 = vld [vmem:[%s7 + $0x4d0] sm:$0xff]
  %v2810 = vld [vmem:[%s7 + $0x4d8] sm:$0xff]
  %v2811 = vld [vmem:[%s7 + $0x4e0] sm:$0xff]
  %v2812 = vld [vmem:[%s7 + $0x4e8] sm:$0xf]
  %v2813 = vld [vmem:[%s7 + $0x4ec] sm:$0xff]
  %v2814 = vld [vmem:[%s7 + $0x4f4] sm:$0xff]
  %v2815 = vld [vmem:[%s7 + $0x4fc] sm:$0xff]
  %v2816 = vld [vmem:[%s7 + $0x504] sm:$0xf]
  %v2817 = vld [vmem:[%s7 + $0x508] sm:$0xff]
  %v2818 = vld [vmem:[%s7 + $0x510] sm:$0xff]
  %v2819 = vld [vmem:[%s7 + $0x518] sm:$0xff]
  %v2820 = vld [vmem:[%s7 + $0x520] sm:$0xf]
  %v2821 = vld [vmem:[%s7 + $0x524] sm:$0xff]
  %v2822 = vld [vmem:[%s7 + $0x52c] sm:$0xff]
  %v2823 = vld [vmem:[%s7 + $0x534] sm:$0xff]
  %v2824 = vld [vmem:[%s7 + $0x53c] sm:$0xf]
  %v2825 = vld [vmem:[%s7 + $0x540] sm:$0xff]
  %v2826 = vld [vmem:[%s7 + $0x548] sm:$0xff]
  %v2827 = vld [vmem:[%s7 + $0x550] sm:$0xff]
  %v2828 = vld [vmem:[%s7 + $0x558] sm:$0xf]
  %v2829 = vld [vmem:[%s7 + $0x55c] sm:$0xff]
  %v2830 = vld [vmem:[%s7 + $0x564] sm:$0xff]
  %v2831 = vld [vmem:[%s7 + $0x56c] sm:$0xff]
  %v2832 = vld [vmem:[%s7 + $0x574] sm:$0xf]
  %v2833 = vld [vmem:[%s7 + $0x578] sm:$0xff]
  %v2834 = vld [vmem:[%s7 + $0x580] sm:$0xff]
  %v2835 = vld [vmem:[%s7 + $0x588] sm:$0xff]
  %v2836 = vld [vmem:[%s7 + $0x590] sm:$0xf]
  %v2837 = vld [vmem:[%s7 + $0x594] sm:$0xff]
  %v2838 = vld [vmem:[%s7 + $0x59c] sm:$0xff]
  %v2839 = vld [vmem:[%s7 + $0x5a4] sm:$0xff]
  %v2840 = vld [vmem:[%s7 + $0x5ac] sm:$0xf]
  %v2841 = vld [vmem:[%s7 + $0x5b0] sm:$0xff]
  %v2842 = vld [vmem:[%s7 + $0x5b8] sm:$0xff]
  %v2843 = vld [vmem:[%s7 + $0x5c0] sm:$0xff]
  %v2844 = vld [vmem:[%s7 + $0x5c8] sm:$0xf]
  %v2845 = vld [vmem:[%s7 + $0x5cc] sm:$0xff]
  %v2846 = vld [vmem:[%s7 + $0x5d4] sm:$0xff]
  %v2847 = vld [vmem:[%s7 + $0x5dc] sm:$0xff]
  %v2848 = vld [vmem:[%s7 + $0x5e4] sm:$0xf]
  %v2849 = vld [vmem:[%s7 + $0x5e8] sm:$0xff]
  %v2850 = vld [vmem:[%s7 + $0x5f0] sm:$0xff]
  %v2851 = vld [vmem:[%s7 + $0x5f8] sm:$0xff]
  %v2852 = vld [vmem:[%s7 + $0x600] sm:$0xf]
  %v2853 = vld [vmem:[%s7 + $0x604] sm:$0xff]
  %v2854 = vld [vmem:[%s7 + $0x60c] sm:$0xff]
  %v2855 = vld [vmem:[%s7 + $0x614] sm:$0xff]
  %v2856 = vld [vmem:[%s7 + $0x61c] sm:$0xf]
  %v2857 = vld [vmem:[%s7 + $0x620] sm:$0xff]
  %v2858 = vld [vmem:[%s7 + $0x628] sm:$0xff]
  %v2859 = vld [vmem:[%s7 + $0x630] sm:$0xff]
  %v2860 = vld [vmem:[%s7 + $0x638] sm:$0xf]
  %v2861 = vld [vmem:[%s7 + $0x63c] sm:$0xff]
  %v2862 = vld [vmem:[%s7 + $0x644] sm:$0xff]
  %v2863 = vld [vmem:[%s7 + $0x64c] sm:$0xff]
  %v2864 = vld [vmem:[%s7 + $0x654] sm:$0xf]
  %v2865 = vld [vmem:[%s7 + $0x658] sm:$0xff]
  %v2866 = vld [vmem:[%s7 + $0x660] sm:$0xff]
  %v2867 = vld [vmem:[%s7 + $0x668] sm:$0xff]
  %v2868 = vld [vmem:[%s7 + $0x670] sm:$0xf]
  %v2869 = vld [vmem:[%s7 + $0x674] sm:$0xff]
  %v2870 = vld [vmem:[%s7 + $0x67c] sm:$0xff]
  %v2871 = vld [vmem:[%s7 + $0x684] sm:$0xff]
  %v2872 = vld [vmem:[%s7 + $0x68c] sm:$0xf]
  %v2873 = vld [vmem:[%s7 + $0x690] sm:$0xff]
  %v2874 = vld [vmem:[%s7 + $0x698] sm:$0xff]
  %v2875 = vld [vmem:[%s7 + $0x6a0] sm:$0xff]
  %v2876 = vld [vmem:[%s7 + $0x6a8] sm:$0xf]
  %v2877 = vld [vmem:[%s7 + $0x6ac] sm:$0xff]
  %v2878 = vld [vmem:[%s7 + $0x6b4] sm:$0xff]
  %v2879 = vld [vmem:[%s7 + $0x6bc] sm:$0xff]
  %v2880 = vld [vmem:[%s7 + $0x6c4] sm:$0xf]
  %v2881 = vld [vmem:[%s7 + $0x6c8] sm:$0xff]
  %v2882 = vld [vmem:[%s7 + $0x6d0] sm:$0xff]
  %v2883 = vld [vmem:[%s7 + $0x6d8] sm:$0xff]
  %v2884 = vld [vmem:[%s7 + $0x6e0] sm:$0xf]
  %v2885 = vld [vmem:[%s7 + $0x6e4] sm:$0xff]
  %v2886 = vld [vmem:[%s7 + $0x6ec] sm:$0xff]
  %v2887 = vld [vmem:[%s7 + $0x6f4] sm:$0xff]
  %v2888 = vld [vmem:[%s7 + $0x6fc] sm:$0xf]
  %v2889 = vld [vmem:[%s7 + $0x700] sm:$0xff]
  %v2890 = vld [vmem:[%s7 + $0x708] sm:$0xff]
  %v2891 = vld [vmem:[%s7 + $0x710] sm:$0xff]
  %v2892 = vld [vmem:[%s7 + $0x718] sm:$0xf]
  %v2893 = vld [vmem:[%s7 + $0x71c] sm:$0xff]
  %v2894 = vld [vmem:[%s7 + $0x724] sm:$0xff]
  %v2895 = vld [vmem:[%s7 + $0x72c] sm:$0xff]
  %v2896 = vld [vmem:[%s7 + $0x734] sm:$0xf]
  %v2897 = vld [vmem:[%s7 + $0x738] sm:$0xff]
  %v2898 = vld [vmem:[%s7 + $0x740] sm:$0xff]
  %v2899 = vld [vmem:[%s7 + $0x748] sm:$0xff]
  %v2900 = vld [vmem:[%s7 + $0x750] sm:$0xf]
  %v2901 = vld [vmem:[%s7 + $0x754] sm:$0xff]
  %v2902 = vld [vmem:[%s7 + $0x75c] sm:$0xff]
  %v2903 = vld [vmem:[%s7 + $0x764] sm:$0xff]
  %v2904 = vld [vmem:[%s7 + $0x76c] sm:$0xf]
  %v2905 = vld [vmem:[%s7 + $0x770] sm:$0xff]
  %v2906 = vld [vmem:[%s7 + $0x778] sm:$0xff]
  %v2907 = vld [vmem:[%s7 + $0x780] sm:$0xff]
  %v2908 = vld [vmem:[%s7 + $0x788] sm:$0xf]
  %v2909 = vld [vmem:[%s7 + $0x78c] sm:$0xff]
  %v2910 = vld [vmem:[%s7 + $0x794] sm:$0xff]
  %v2911 = vld [vmem:[%s7 + $0x79c] sm:$0xff]
  %v2912 = vld [vmem:[%s7 + $0x7a4] sm:$0xf]
  %v2913 = vld [vmem:[%s7 + $0x7a8] sm:$0xff]
  %v2914 = vld [vmem:[%s7 + $0x7b0] sm:$0xff]
  %v2915 = vld [vmem:[%s7 + $0x7b8] sm:$0xff]
  %v2916 = vld [vmem:[%s7 + $0x7c0] sm:$0xf]
  %v2917 = vld [vmem:[%s7 + $0x7c4] sm:$0xff]
  %v2918 = vld [vmem:[%s7 + $0x7cc] sm:$0xff]
  %v2919 = vld [vmem:[%s7 + $0x7d4] sm:$0xff]
  %v2920 = vld [vmem:[%s7 + $0x7dc] sm:$0xf]
  %v2921 = vld [vmem:[%s7 + $0x7e0] sm:$0xff]
  %v2922 = vld [vmem:[%s7 + $0x7e8] sm:$0xff]
  %v2923 = vld [vmem:[%s7 + $0x7f0] sm:$0xff]
  %v2924 = vld [vmem:[%s7 + $0x7f8] sm:$0xf]
  %v2925 = vld [vmem:[%s7 + $0x7fc] sm:$0xff]
  %v2926 = vld [vmem:[%s7 + $0x804] sm:$0xff]
  %v2927 = vld [vmem:[%s7 + $0x80c] sm:$0xff]
  %v2928 = vld [vmem:[%s7 + $0x814] sm:$0xf]
  %v2929 = vld [vmem:[%s7 + $0x818] sm:$0xff]
  %v2930 = vld [vmem:[%s7 + $0x820] sm:$0xff]
  %v2931 = vld [vmem:[%s7 + $0x828] sm:$0xff]
  %v2932 = vld [vmem:[%s7 + $0x830] sm:$0xf]
  %v2933 = vld [vmem:[%s7 + $0x834] sm:$0xff]
  %v2934 = vld [vmem:[%s7 + $0x83c] sm:$0xff]
  %v2935 = vld [vmem:[%s7 + $0x844] sm:$0xff]
  %v2936 = vld [vmem:[%s7 + $0x84c] sm:$0xf]
  %v2937 = vld [vmem:[%s7 + $0x850] sm:$0xff]
  %v2938 = vld [vmem:[%s7 + $0x858] sm:$0xff]
  %v2939 = vld [vmem:[%s7 + $0x860] sm:$0xff]
  %v2940 = vld [vmem:[%s7 + $0x868] sm:$0xf]
  %v2941 = vld [vmem:[%s7 + $0x86c] sm:$0xff]
  %v2942 = vld [vmem:[%s7 + $0x874] sm:$0xff]
  %v2943 = vld [vmem:[%s7 + $0x87c] sm:$0xff]
  %v2944 = vld [vmem:[%s7 + $0x884] sm:$0xf]
  %v2945 = vld [vmem:[%s7 + $0x888] sm:$0xff]
  %v2946 = vld [vmem:[%s7 + $0x890] sm:$0xff]
  %v2947 = vld [vmem:[%s7 + $0x898] sm:$0xff]
  %v2948 = vld [vmem:[%s7 + $0x8a0] sm:$0xf]
  %v2949 = vld [vmem:[%s7 + $0x8a4] sm:$0xff]
  %v2950 = vld [vmem:[%s7 + $0x8ac] sm:$0xff]
  %v2951 = vld [vmem:[%s7 + $0x8b4] sm:$0xff]
  %v2952 = vld [vmem:[%s7 + $0x8bc] sm:$0xf]
  %v2953 = vld [vmem:[%s7 + $0x8c0] sm:$0xff]
  %v2954 = vld [vmem:[%s7 + $0x8c8] sm:$0xff]
  %v2955 = vld [vmem:[%s7 + $0x8d0] sm:$0xff]
  %v2956 = vld [vmem:[%s7 + $0x8d8] sm:$0xf]
  %v2957 = vld [vmem:[%s7 + $0x8dc] sm:$0xff]
  %v2958 = vld [vmem:[%s7 + $0x8e4] sm:$0xff]
  %v2959 = vld [vmem:[%s7 + $0x8ec] sm:$0xff]
  %v2960 = vld [vmem:[%s7 + $0x8f4] sm:$0xf]
  %v2961 = vld [vmem:[%s7 + $0x8f8] sm:$0xff]
  %v2962 = vld [vmem:[%s7 + $0x900] sm:$0xff]
  %v2963 = vld [vmem:[%s7 + $0x908] sm:$0xff]
  %v2964 = vld [vmem:[%s7 + $0x910] sm:$0xf]
  %v2965 = vld [vmem:[%s7 + $0x914] sm:$0xff]
  %v2966 = vld [vmem:[%s7 + $0x91c] sm:$0xff]
  %v2967 = vld [vmem:[%s7 + $0x924] sm:$0xff]
  %v2968 = vld [vmem:[%s7 + $0x92c] sm:$0xf]
  %v2969 = vld [vmem:[%s7 + $0x930] sm:$0xff]
  %v2970 = vld [vmem:[%s7 + $0x938] sm:$0xff]
  %v2971 = vld [vmem:[%s7 + $0x940] sm:$0xff]
  %v2972 = vld [vmem:[%s7 + $0x948] sm:$0xf]
  %v2973 = vld [vmem:[%s7 + $0x94c] sm:$0xff]
  %v2974 = vld [vmem:[%s7 + $0x954] sm:$0xff]
  %v2975 = vld [vmem:[%s7 + $0x95c] sm:$0xff]
  %v2976 = vld [vmem:[%s7 + $0x964] sm:$0xf]
  %v2977 = vld [vmem:[%s7 + $0x968] sm:$0xff]
  %v2978 = vld [vmem:[%s7 + $0x970] sm:$0xff]
  %v2979 = vld [vmem:[%s7 + $0x978] sm:$0xff]
  %v2980 = vld [vmem:[%s7 + $0x980] sm:$0xf]
  %v2981 = vld [vmem:[%s7 + $0x984] sm:$0xff]
  %v2982 = vld [vmem:[%s7 + $0x98c] sm:$0xff]
  %v2983 = vld [vmem:[%s7 + $0x994] sm:$0xff]
  %v2984 = vld [vmem:[%s7 + $0x99c] sm:$0xf]
  %v2985 = vld [vmem:[%s7 + $0x9a0] sm:$0xff]
  %v2986 = vld [vmem:[%s7 + $0x9a8] sm:$0xff]
  %v2987 = vld [vmem:[%s7 + $0x9b0] sm:$0xff]
  %v2988 = vld [vmem:[%s7 + $0x9b8] sm:$0xf]
  %v2989 = vld [vmem:[%s7 + $0x9bc] sm:$0xff]
  %v2990 = vld [vmem:[%s7 + $0x9c4] sm:$0xff]
  %v2991 = vld [vmem:[%s7 + $0x9cc] sm:$0xff]
  %v2992 = vld [vmem:[%s7 + $0x9d4] sm:$0xf]
  %v2993 = vld [vmem:[%s7 + $0x9d8] sm:$0xff]
  %v2994 = vld [vmem:[%s7 + $0x9e0] sm:$0xff]
  %v2995 = vld [vmem:[%s7 + $0x9e8] sm:$0xff]
  %v2996 = vld [vmem:[%s7 + $0x9f0] sm:$0xf]
  %v2997 = vld [vmem:[%s7 + $0x9f4] sm:$0xff]
  %v2998 = vld [vmem:[%s7 + $0x9fc] sm:$0xff]
  %v2999 = vld [vmem:[%s7 + $0xa04] sm:$0xff]
  %v3000 = vld [vmem:[%s7 + $0xa0c] sm:$0xf]
  %v3001 = vld [vmem:[%s7 + $0xa10] sm:$0xff]
  %v3002 = vld [vmem:[%s7 + $0xa18] sm:$0xff]
  %v3003 = vld [vmem:[%s7 + $0xa20] sm:$0xff]
  %v3004 = vld [vmem:[%s7 + $0xa28] sm:$0xf]
  %v3005 = vld [vmem:[%s7 + $0xa2c] sm:$0xff]
  %v3006 = vld [vmem:[%s7 + $0xa34] sm:$0xff]
  %v3007 = vld [vmem:[%s7 + $0xa3c] sm:$0xff]
  %v3008 = vld [vmem:[%s7 + $0xa44] sm:$0xf]
  %v3009 = vld [vmem:[%s7 + $0xa48] sm:$0xff]
  %v3010 = vld [vmem:[%s7 + $0xa50] sm:$0xff]
  %v3011 = vld [vmem:[%s7 + $0xa58] sm:$0xff]
  %v3012 = vld [vmem:[%s7 + $0xa60] sm:$0xf]
  %v3013 = vld [vmem:[%s7 + $0xa64] sm:$0xff]
  %v3014 = vld [vmem:[%s7 + $0xa6c] sm:$0xff]
  %v3015 = vld [vmem:[%s7 + $0xa74] sm:$0xff]
  %v3016 = vld [vmem:[%s7 + $0xa7c] sm:$0xf]
  %v3017 = vld [vmem:[%s7 + $0xa80] sm:$0xff]
  %v3018 = vld [vmem:[%s7 + $0xa88] sm:$0xff]
  %v3019 = vld [vmem:[%s7 + $0xa90] sm:$0xff]
  %v3020 = vld [vmem:[%s7 + $0xa98] sm:$0xf]
  %v3021 = vld [vmem:[%s7 + $0xa9c] sm:$0xff]
  %v3022 = vld [vmem:[%s7 + $0xaa4] sm:$0xff]
  %v3023 = vld [vmem:[%s7 + $0xaac] sm:$0xff]
  %v3024 = vld [vmem:[%s7 + $0xab4] sm:$0xf]
  %v3025 = vld [vmem:[%s7 + $0xab8] sm:$0xff]
  %v3026 = vld [vmem:[%s7 + $0xac0] sm:$0xff]
  %v3027 = vld [vmem:[%s7 + $0xac8] sm:$0xff]
  %v3028 = vld [vmem:[%s7 + $0xad0] sm:$0xf]
  %v3029 = vld [vmem:[%s7 + $0xad4] sm:$0xff]
  %v3030 = vld [vmem:[%s7 + $0xadc] sm:$0xff]
  %v3031 = vld [vmem:[%s7 + $0xae4] sm:$0xff]
  %v3032 = vld [vmem:[%s7 + $0xaec] sm:$0xf]
  %v3033 = vld [vmem:[%s7 + $0xaf0] sm:$0xff]
  %v3034 = vld [vmem:[%s7 + $0xaf8] sm:$0xff]
  %v3035 = vld [vmem:[%s7 + $0xb00] sm:$0xff]
  %v3036 = vld [vmem:[%s7 + $0xb08] sm:$0xf]
  %v3037 = vld [vmem:[%s7 + $0xb0c] sm:$0xff]
  %v3038 = vld [vmem:[%s7 + $0xb14] sm:$0xff]
  %v3039 = vld [vmem:[%s7 + $0xb1c] sm:$0xff]
  %v3040 = vld [vmem:[%s7 + $0xb24] sm:$0xf]
  %v3041 = vld [vmem:[%s7 + $0xb28] sm:$0xff]
  %v3042 = vld [vmem:[%s7 + $0xb30] sm:$0xff]
  %v3043 = vld [vmem:[%s7 + $0xb38] sm:$0xff]
  %v3044 = vld [vmem:[%s7 + $0xb40] sm:$0xf]
  %v3045 = vld [vmem:[%s7 + $0xb44] sm:$0xff]
  %v3046 = vld [vmem:[%s7 + $0xb4c] sm:$0xff]
  %v3047 = vld [vmem:[%s7 + $0xb54] sm:$0xff]
  %v3048 = vld [vmem:[%s7 + $0xb5c] sm:$0xf]
  %v3049 = vld [vmem:[%s7 + $0xb60] sm:$0xff]
  %v3050 = vld [vmem:[%s7 + $0xb68] sm:$0xff]
  %v3051 = vld [vmem:[%s7 + $0xb70] sm:$0xff]
  %v3052 = vld [vmem:[%s7 + $0xb78] sm:$0xf]
  %v3053 = vld [vmem:[%s7 + $0xb7c] sm:$0xff]
  %v3054 = vld [vmem:[%s7 + $0xb84] sm:$0xff]
  %v3055 = vld [vmem:[%s7 + $0xb8c] sm:$0xff]
  %v3056 = vld [vmem:[%s7 + $0xb94] sm:$0xf]
  %v3057 = vld [vmem:[%s7 + $0xb98] sm:$0xff]
  %v3058 = vld [vmem:[%s7 + $0xba0] sm:$0xff]
  %v3059 = vld [vmem:[%s7 + $0xba8] sm:$0xff]
  %v3060 = vld [vmem:[%s7 + $0xbb0] sm:$0xf]
  %v3061 = vld [vmem:[%s7 + $0xbb4] sm:$0xff]
  %v3062 = vld [vmem:[%s7 + $0xbbc] sm:$0xff]
  %v3063 = vld [vmem:[%s7 + $0xbc4] sm:$0xff]
  %v3064 = vld [vmem:[%s7 + $0xbcc] sm:$0xf]
  %v3065 = vld [vmem:[%s7 + $0xbd0] sm:$0xff]
  %v3066 = vld [vmem:[%s7 + $0xbd8] sm:$0xff]
  %v3067 = vld [vmem:[%s7 + $0xbe0] sm:$0xff]
  %v3068 = vld [vmem:[%s7 + $0xbe8] sm:$0xf]
  %v3069 = vld [vmem:[%s7 + $0xbec] sm:$0xff]
  %v3070 = vld [vmem:[%s7 + $0xbf4] sm:$0xff]
  %v3071 = vld [vmem:[%s7 + $0xbfc] sm:$0xff]
  %v3072 = vld [vmem:[%s7 + $0xc04] sm:$0xf]
  %v3073 = vld [vmem:[%s7 + $0xc08] sm:$0xff]
  %v3074 = vld [vmem:[%s7 + $0xc10] sm:$0xff]
  %v3075 = vld [vmem:[%s7 + $0xc18] sm:$0xff]
  %v3076 = vld [vmem:[%s7 + $0xc20] sm:$0xf]
  %v3077 = vld [vmem:[%s7 + $0xc24] sm:$0xff]
  %v3078 = vld [vmem:[%s7 + $0xc2c] sm:$0xff]
  %v3079 = vld [vmem:[%s7 + $0xc34] sm:$0xff]
  %v3080 = vld [vmem:[%s7 + $0xc3c] sm:$0xf]
  %v3081 = vld [vmem:[%s7 + $0xc40] sm:$0xff]
  %v3082 = vld [vmem:[%s7 + $0xc48] sm:$0xff]
  %v3083 = vld [vmem:[%s7 + $0xc50] sm:$0xff]
  %v3084 = vld [vmem:[%s7 + $0xc58] sm:$0xf]
  %v3085 = vld [vmem:[%s7 + $0xc5c] sm:$0xff]
  %v3086 = vld [vmem:[%s7 + $0xc64] sm:$0xff]
  %v3087 = vld [vmem:[%s7 + $0xc6c] sm:$0xff]
  %v3088 = vld [vmem:[%s7 + $0xc74] sm:$0xf]
  %v3089 = vld [vmem:[%s7 + $0xc78] sm:$0xff]
  %v3090 = vld [vmem:[%s7 + $0xc80] sm:$0xff]
  %v3091 = vld [vmem:[%s7 + $0xc88] sm:$0xff]
  %v3092 = vld [vmem:[%s7 + $0xc90] sm:$0xf]
  %v3093 = vld [vmem:[%s7 + $0xc94] sm:$0xff]
  %v3094 = vld [vmem:[%s7 + $0xc9c] sm:$0xff]
  %v3095 = vld [vmem:[%s7 + $0xca4] sm:$0xff]
  %v3096 = vld [vmem:[%s7 + $0xcac] sm:$0xf]
  %v3097 = vld [vmem:[%s7 + $0xcb0] sm:$0xff]
  %v3098 = vld [vmem:[%s7 + $0xcb8] sm:$0xff]
  %v3099 = vld [vmem:[%s7 + $0xcc0] sm:$0xff]
  %v3100 = vld [vmem:[%s7 + $0xcc8] sm:$0xf]
  %v3101 = vld [vmem:[%s7 + $0xccc] sm:$0xff]
  %v3102 = vld [vmem:[%s7 + $0xcd4] sm:$0xff]
  %v3103 = vld [vmem:[%s7 + $0xcdc] sm:$0xff]
  %v3104 = vld [vmem:[%s7 + $0xce4] sm:$0xf]
  %v3105 = vld [vmem:[%s7 + $0xce8] sm:$0xff]
  %v3106 = vld [vmem:[%s7 + $0xcf0] sm:$0xff]
  %v3107 = vld [vmem:[%s7 + $0xcf8] sm:$0xff]
  %v3108 = vld [vmem:[%s7 + $0xd00] sm:$0xf]
  %v3109 = vld [vmem:[%s7 + $0xd04] sm:$0xff]
  %v3110 = vld [vmem:[%s7 + $0xd0c] sm:$0xff]
  %v3111 = vld [vmem:[%s7 + $0xd14] sm:$0xff]
  %v3112 = vld [vmem:[%s7 + $0xd1c] sm:$0xf]
  %v3113 = vld [vmem:[%s7 + $0xd20] sm:$0xff]
  %v3114 = vld [vmem:[%s7 + $0xd28] sm:$0xff]
  %v3115 = vld [vmem:[%s7 + $0xd30] sm:$0xff]
  %v3116 = vld [vmem:[%s7 + $0xd38] sm:$0xf]
  %v3117 = vld [vmem:[%s7 + $0xd3c] sm:$0xff]
  %v3118 = vld [vmem:[%s7 + $0xd44] sm:$0xff]
  %v3119 = vld [vmem:[%s7 + $0xd4c] sm:$0xff]
  %v3120 = vld [vmem:[%s7 + $0xd54] sm:$0xf]
  %v3121 = vld [vmem:[%s7 + $0xd58] sm:$0xff]
  %v3122 = vld [vmem:[%s7 + $0xd60] sm:$0xff]
  %v3123 = vld [vmem:[%s7 + $0xd68] sm:$0xff]
  %v3124 = vld [vmem:[%s7 + $0xd70] sm:$0xf]
  %v3125 = vld [vmem:[%s7 + $0xd74] sm:$0xff]
  %v3126 = vld [vmem:[%s7 + $0xd7c] sm:$0xff]
  %v3127 = vld [vmem:[%s7 + $0xd84] sm:$0xff]
  %v3128 = vld [vmem:[%s7 + $0xd8c] sm:$0xf]
  %v3129 = vld [vmem:[%s7 + $0xd90] sm:$0xff]
  %v3130 = vld [vmem:[%s7 + $0xd98] sm:$0xff]
  %v3131 = vld [vmem:[%s7 + $0xda0] sm:$0xff]
  %v3132 = vld [vmem:[%s7 + $0xda8] sm:$0xf]
  %v3133 = vld [vmem:[%s7 + $0xdac] sm:$0xff]
  %v3134 = vld [vmem:[%s7 + $0xdb4] sm:$0xff]
  %v3135 = vld [vmem:[%s7 + $0xdbc] sm:$0xff]
  %v3136 = vld [vmem:[%s7 + $0xdc4] sm:$0xf]
  %v3137 = vld [vmem:[%s7 + $0xdc8] sm:$0xff]
  %v3138 = vld [vmem:[%s7 + $0xdd0] sm:$0xff]
  %v3139 = vld [vmem:[%s7 + $0xdd8] sm:$0xff]
  %v3140 = vld [vmem:[%s7 + $0xde0] sm:$0xf]
  %v3141 = vld [vmem:[%s7 + $0xde4] sm:$0xff]
  %v3142 = vld [vmem:[%s7 + $0xdec] sm:$0xff]
  %v3143 = vld [vmem:[%s7 + $0xdf4] sm:$0xff]
  %v3144 = vld [vmem:[%s7 + $0xdfc] sm:$0xf]
  %v3145 = vld [vmem:[%s8] sm:$0x7f]
  %v3147 = vlaneseq
  %v3148 = vshrl.u32 %v3147, 7
  %v3149 = vsub.s32 0, %v3148
  %v3150 = vrot.slane %v3145, %v3149
  %v3151 = vlaneseq
  %v3152 = vshrl.u32 %v3151, 7
  %v3153 = vsub.s32 1, %v3152
  %v3154 = vrot.slane %v3145, %v3153
  %v3155 = vlaneseq
  %v3156 = vshrl.u32 %v3155, 7
  %v3157 = vsub.s32 2, %v3156
  %v3158 = vrot.slane %v3145, %v3157
  %v3159 = vlaneseq
  %v3160 = vshrl.u32 %v3159, 7
  %v3161 = vsub.s32 3, %v3160
  %v3162 = vrot.slane %v3145, %v3161
  %v3163 = vlaneseq
  %v3164 = vshrl.u32 %v3163, 7
  %v3165 = vsub.s32 4, %v3164
  %v3166 = vrot.slane %v3145, %v3165
  %v3167 = vlaneseq
  %v3168 = vshrl.u32 %v3167, 7
  %v3169 = vsub.s32 5, %v3168
  %v3170 = vrot.slane %v3145, %v3169
  %v3171 = vlaneseq
  %v3172 = vshrl.u32 %v3171, 7
  %v3173 = vsub.s32 6, %v3172
  %v3174 = vrot.slane %v3145, %v3173
  %v3694 = vunpack.c.l.b16 %v2633
  %v3695 = vunpack.c.h.b16 %v2633
  %v3696 = vunpack.c.l.b16 %v2634
  %v3697 = vunpack.c.h.b16 %v2634
  %v3698 = vunpack.c.l.b16 %v2635
  %v3699 = vunpack.c.h.b16 %v2635
  %v3700 = vunpack.c.l.b16 %v2636
  %v3701 = vunpack.c.l.b16 %v2637
  %v3702 = vunpack.c.h.b16 %v2637
  %v3703 = vunpack.c.l.b16 %v2638
  %v3704 = vunpack.c.h.b16 %v2638
  %v3705 = vunpack.c.l.b16 %v2639
  %v3706 = vunpack.c.h.b16 %v2639
  %v3707 = vunpack.c.l.b16 %v2640
  %v3708 = vunpack.c.l.b16 %v2641
  %v3709 = vunpack.c.h.b16 %v2641
  %v3710 = vunpack.c.l.b16 %v2642
  %v3711 = vunpack.c.h.b16 %v2642
  %v3712 = vunpack.c.l.b16 %v2643
  %v3713 = vunpack.c.h.b16 %v2643
  %v3714 = vunpack.c.l.b16 %v2644
  %v3715 = vunpack.c.l.b16 %v2645
  %v3716 = vunpack.c.h.b16 %v2645
  %v3717 = vunpack.c.l.b16 %v2646
  %v3718 = vunpack.c.h.b16 %v2646
  %v3719 = vunpack.c.l.b16 %v2647
  %v3720 = vunpack.c.h.b16 %v2647
  %v3721 = vunpack.c.l.b16 %v2648
  %v3722 = vunpack.c.l.b16 %v2649
  %v3723 = vunpack.c.h.b16 %v2649
  %v3724 = vunpack.c.l.b16 %v2650
  %v3725 = vunpack.c.h.b16 %v2650
  %v3726 = vunpack.c.l.b16 %v2651
  %v3727 = vunpack.c.h.b16 %v2651
  %v3728 = vunpack.c.l.b16 %v2652
  %v3729 = vunpack.c.l.b16 %v2653
  %v3730 = vunpack.c.h.b16 %v2653
  %v3731 = vunpack.c.l.b16 %v2654
  %v3732 = vunpack.c.h.b16 %v2654
  %v3733 = vunpack.c.l.b16 %v2655
  %v3734 = vunpack.c.h.b16 %v2655
  %v3735 = vunpack.c.l.b16 %v2656
  %v3736 = vunpack.c.l.b16 %v2657
  %v3737 = vunpack.c.h.b16 %v2657
  %v3738 = vunpack.c.l.b16 %v2658
  %v3739 = vunpack.c.h.b16 %v2658
  %v3740 = vunpack.c.l.b16 %v2659
  %v3741 = vunpack.c.h.b16 %v2659
  %v3742 = vunpack.c.l.b16 %v2660
  %v3743 = vunpack.c.l.b16 %v2661
  %v3744 = vunpack.c.h.b16 %v2661
  %v3745 = vunpack.c.l.b16 %v2662
  %v3746 = vunpack.c.h.b16 %v2662
  %v3747 = vunpack.c.l.b16 %v2663
  %v3748 = vunpack.c.h.b16 %v2663
  %v3749 = vunpack.c.l.b16 %v2664
  %v3750 = vunpack.c.l.b16 %v2665
  %v3751 = vunpack.c.h.b16 %v2665
  %v3752 = vunpack.c.l.b16 %v2666
  %v3753 = vunpack.c.h.b16 %v2666
  %v3754 = vunpack.c.l.b16 %v2667
  %v3755 = vunpack.c.h.b16 %v2667
  %v3756 = vunpack.c.l.b16 %v2668
  %v3757 = vunpack.c.l.b16 %v2669
  %v3758 = vunpack.c.h.b16 %v2669
  %v3759 = vunpack.c.l.b16 %v2670
  %v3760 = vunpack.c.h.b16 %v2670
  %v3761 = vunpack.c.l.b16 %v2671
  %v3762 = vunpack.c.h.b16 %v2671
  %v3763 = vunpack.c.l.b16 %v2672
  %v3764 = vunpack.c.l.b16 %v2673
  %v3765 = vunpack.c.h.b16 %v2673
  %v3766 = vunpack.c.l.b16 %v2674
  %v3767 = vunpack.c.h.b16 %v2674
  %v3768 = vunpack.c.l.b16 %v2675
  %v3769 = vunpack.c.h.b16 %v2675
  %v3770 = vunpack.c.l.b16 %v2676
  %v3771 = vunpack.c.l.b16 %v2677
  %v3772 = vunpack.c.h.b16 %v2677
  %v3773 = vunpack.c.l.b16 %v2678
  %v3774 = vunpack.c.h.b16 %v2678
  %v3775 = vunpack.c.l.b16 %v2679
  %v3776 = vunpack.c.h.b16 %v2679
  %v3777 = vunpack.c.l.b16 %v2680
  %v3778 = vunpack.c.l.b16 %v2681
  %v3779 = vunpack.c.h.b16 %v2681
  %v3780 = vunpack.c.l.b16 %v2682
  %v3781 = vunpack.c.h.b16 %v2682
  %v3782 = vunpack.c.l.b16 %v2683
  %v3783 = vunpack.c.h.b16 %v2683
  %v3784 = vunpack.c.l.b16 %v2684
  %v3785 = vunpack.c.l.b16 %v2685
  %v3786 = vunpack.c.h.b16 %v2685
  %v3787 = vunpack.c.l.b16 %v2686
  %v3788 = vunpack.c.h.b16 %v2686
  %v3789 = vunpack.c.l.b16 %v2687
  %v3790 = vunpack.c.h.b16 %v2687
  %v3791 = vunpack.c.l.b16 %v2688
  %v3792 = vunpack.c.l.b16 %v2689
  %v3793 = vunpack.c.h.b16 %v2689
  %v3794 = vunpack.c.l.b16 %v2690
  %v3795 = vunpack.c.h.b16 %v2690
  %v3796 = vunpack.c.l.b16 %v2691
  %v3797 = vunpack.c.h.b16 %v2691
  %v3798 = vunpack.c.l.b16 %v2692
  %v3799 = vunpack.c.l.b16 %v2693
  %v3800 = vunpack.c.h.b16 %v2693
  %v3801 = vunpack.c.l.b16 %v2694
  %v3802 = vunpack.c.h.b16 %v2694
  %v3803 = vunpack.c.l.b16 %v2695
  %v3804 = vunpack.c.h.b16 %v2695
  %v3805 = vunpack.c.l.b16 %v2696
  %v3806 = vunpack.c.l.b16 %v2697
  %v3807 = vunpack.c.h.b16 %v2697
  %v3808 = vunpack.c.l.b16 %v2698
  %v3809 = vunpack.c.h.b16 %v2698
  %v3810 = vunpack.c.l.b16 %v2699
  %v3811 = vunpack.c.h.b16 %v2699
  %v3812 = vunpack.c.l.b16 %v2700
  %v3813 = vunpack.c.l.b16 %v2701
  %v3814 = vunpack.c.h.b16 %v2701
  %v3815 = vunpack.c.l.b16 %v2702
  %v3816 = vunpack.c.h.b16 %v2702
  %v3817 = vunpack.c.l.b16 %v2703
  %v3818 = vunpack.c.h.b16 %v2703
  %v3819 = vunpack.c.l.b16 %v2704
  %v3820 = vunpack.c.l.b16 %v2705
  %v3821 = vunpack.c.h.b16 %v2705
  %v3822 = vunpack.c.l.b16 %v2706
  %v3823 = vunpack.c.h.b16 %v2706
  %v3824 = vunpack.c.l.b16 %v2707
  %v3825 = vunpack.c.h.b16 %v2707
  %v3826 = vunpack.c.l.b16 %v2708
  %v3827 = vunpack.c.l.b16 %v2709
  %v3828 = vunpack.c.h.b16 %v2709
  %v3829 = vunpack.c.l.b16 %v2710
  %v3830 = vunpack.c.h.b16 %v2710
  %v3831 = vunpack.c.l.b16 %v2711
  %v3832 = vunpack.c.h.b16 %v2711
  %v3833 = vunpack.c.l.b16 %v2712
  %v3834 = vunpack.c.l.b16 %v2713
  %v3835 = vunpack.c.h.b16 %v2713
  %v3836 = vunpack.c.l.b16 %v2714
  %v3837 = vunpack.c.h.b16 %v2714
  %v3838 = vunpack.c.l.b16 %v2715
  %v3839 = vunpack.c.h.b16 %v2715
  %v3840 = vunpack.c.l.b16 %v2716
  %v3841 = vunpack.c.l.b16 %v2717
  %v3842 = vunpack.c.h.b16 %v2717
  %v3843 = vunpack.c.l.b16 %v2718
  %v3844 = vunpack.c.h.b16 %v2718
  %v3845 = vunpack.c.l.b16 %v2719
  %v3846 = vunpack.c.h.b16 %v2719
  %v3847 = vunpack.c.l.b16 %v2720
  %v3848 = vunpack.c.l.b16 %v2721
  %v3849 = vunpack.c.h.b16 %v2721
  %v3850 = vunpack.c.l.b16 %v2722
  %v3851 = vunpack.c.h.b16 %v2722
  %v3852 = vunpack.c.l.b16 %v2723
  %v3853 = vunpack.c.h.b16 %v2723
  %v3854 = vunpack.c.l.b16 %v2724
  %v3855 = vunpack.c.l.b16 %v2725
  %v3856 = vunpack.c.h.b16 %v2725
  %v3857 = vunpack.c.l.b16 %v2726
  %v3858 = vunpack.c.h.b16 %v2726
  %v3859 = vunpack.c.l.b16 %v2727
  %v3860 = vunpack.c.h.b16 %v2727
  %v3861 = vunpack.c.l.b16 %v2728
  %v3862 = vunpack.c.l.b16 %v2729
  %v3863 = vunpack.c.h.b16 %v2729
  %v3864 = vunpack.c.l.b16 %v2730
  %v3865 = vunpack.c.h.b16 %v2730
  %v3866 = vunpack.c.l.b16 %v2731
  %v3867 = vunpack.c.h.b16 %v2731
  %v3868 = vunpack.c.l.b16 %v2732
  %v3869 = vunpack.c.l.b16 %v2733
  %v3870 = vunpack.c.h.b16 %v2733
  %v3871 = vunpack.c.l.b16 %v2734
  %v3872 = vunpack.c.h.b16 %v2734
  %v3873 = vunpack.c.l.b16 %v2735
  %v3874 = vunpack.c.h.b16 %v2735
  %v3875 = vunpack.c.l.b16 %v2736
  %v3876 = vunpack.c.l.b16 %v2737
  %v3877 = vunpack.c.h.b16 %v2737
  %v3878 = vunpack.c.l.b16 %v2738
  %v3879 = vunpack.c.h.b16 %v2738
  %v3880 = vunpack.c.l.b16 %v2739
  %v3881 = vunpack.c.h.b16 %v2739
  %v3882 = vunpack.c.l.b16 %v2740
  %v3883 = vunpack.c.l.b16 %v2741
  %v3884 = vunpack.c.h.b16 %v2741
  %v3885 = vunpack.c.l.b16 %v2742
  %v3886 = vunpack.c.h.b16 %v2742
  %v3887 = vunpack.c.l.b16 %v2743
  %v3888 = vunpack.c.h.b16 %v2743
  %v3889 = vunpack.c.l.b16 %v2744
  %v3890 = vunpack.c.l.b16 %v2745
  %v3891 = vunpack.c.h.b16 %v2745
  %v3892 = vunpack.c.l.b16 %v2746
  %v3893 = vunpack.c.h.b16 %v2746
  %v3894 = vunpack.c.l.b16 %v2747
  %v3895 = vunpack.c.h.b16 %v2747
  %v3896 = vunpack.c.l.b16 %v2748
  %v3897 = vunpack.c.l.b16 %v2749
  %v3898 = vunpack.c.h.b16 %v2749
  %v3899 = vunpack.c.l.b16 %v2750
  %v3900 = vunpack.c.h.b16 %v2750
  %v3901 = vunpack.c.l.b16 %v2751
  %v3902 = vunpack.c.h.b16 %v2751
  %v3903 = vunpack.c.l.b16 %v2752
  %v3904 = vunpack.c.l.b16 %v2753
  %v3905 = vunpack.c.h.b16 %v2753
  %v3906 = vunpack.c.l.b16 %v2754
  %v3907 = vunpack.c.h.b16 %v2754
  %v3908 = vunpack.c.l.b16 %v2755
  %v3909 = vunpack.c.h.b16 %v2755
  %v3910 = vunpack.c.l.b16 %v2756
  %v3911 = vunpack.c.l.b16 %v2757
  %v3912 = vunpack.c.h.b16 %v2757
  %v3913 = vunpack.c.l.b16 %v2758
  %v3914 = vunpack.c.h.b16 %v2758
  %v3915 = vunpack.c.l.b16 %v2759
  %v3916 = vunpack.c.h.b16 %v2759
  %v3917 = vunpack.c.l.b16 %v2760
  %v3918 = vunpack.c.l.b16 %v2761
  %v3919 = vunpack.c.h.b16 %v2761
  %v3920 = vunpack.c.l.b16 %v2762
  %v3921 = vunpack.c.h.b16 %v2762
  %v3922 = vunpack.c.l.b16 %v2763
  %v3923 = vunpack.c.h.b16 %v2763
  %v3924 = vunpack.c.l.b16 %v2764
  %v3925 = vunpack.c.l.b16 %v2765
  %v3926 = vunpack.c.h.b16 %v2765
  %v3927 = vunpack.c.l.b16 %v2766
  %v3928 = vunpack.c.h.b16 %v2766
  %v3929 = vunpack.c.l.b16 %v2767
  %v3930 = vunpack.c.h.b16 %v2767
  %v3931 = vunpack.c.l.b16 %v2768
  %v3932 = vunpack.c.l.b16 %v2769
  %v3933 = vunpack.c.h.b16 %v2769
  %v3934 = vunpack.c.l.b16 %v2770
  %v3935 = vunpack.c.h.b16 %v2770
  %v3936 = vunpack.c.l.b16 %v2771
  %v3937 = vunpack.c.h.b16 %v2771
  %v3938 = vunpack.c.l.b16 %v2772
  %v3939 = vunpack.c.l.b16 %v2773
  %v3940 = vunpack.c.h.b16 %v2773
  %v3941 = vunpack.c.l.b16 %v2774
  %v3942 = vunpack.c.h.b16 %v2774
  %v3943 = vunpack.c.l.b16 %v2775
  %v3944 = vunpack.c.h.b16 %v2775
  %v3945 = vunpack.c.l.b16 %v2776
  %v3946 = vunpack.c.l.b16 %v2777
  %v3947 = vunpack.c.h.b16 %v2777
  %v3948 = vunpack.c.l.b16 %v2778
  %v3949 = vunpack.c.h.b16 %v2778
  %v3950 = vunpack.c.l.b16 %v2779
  %v3951 = vunpack.c.h.b16 %v2779
  %v3952 = vunpack.c.l.b16 %v2780
  %v3953 = vunpack.c.l.b16 %v2781
  %v3954 = vunpack.c.h.b16 %v2781
  %v3955 = vunpack.c.l.b16 %v2782
  %v3956 = vunpack.c.h.b16 %v2782
  %v3957 = vunpack.c.l.b16 %v2783
  %v3958 = vunpack.c.h.b16 %v2783
  %v3959 = vunpack.c.l.b16 %v2784
  %v3960 = vunpack.c.l.b16 %v2785
  %v3961 = vunpack.c.h.b16 %v2785
  %v3962 = vunpack.c.l.b16 %v2786
  %v3963 = vunpack.c.h.b16 %v2786
  %v3964 = vunpack.c.l.b16 %v2787
  %v3965 = vunpack.c.h.b16 %v2787
  %v3966 = vunpack.c.l.b16 %v2788
  %v3967 = vunpack.c.l.b16 %v2789
  %v3968 = vunpack.c.h.b16 %v2789
  %v3969 = vunpack.c.l.b16 %v2790
  %v3970 = vunpack.c.h.b16 %v2790
  %v3971 = vunpack.c.l.b16 %v2791
  %v3972 = vunpack.c.h.b16 %v2791
  %v3973 = vunpack.c.l.b16 %v2792
  %v3974 = vunpack.c.l.b16 %v2793
  %v3975 = vunpack.c.h.b16 %v2793
  %v3976 = vunpack.c.l.b16 %v2794
  %v3977 = vunpack.c.h.b16 %v2794
  %v3978 = vunpack.c.l.b16 %v2795
  %v3979 = vunpack.c.h.b16 %v2795
  %v3980 = vunpack.c.l.b16 %v2796
  %v3981 = vunpack.c.l.b16 %v2797
  %v3982 = vunpack.c.h.b16 %v2797
  %v3983 = vunpack.c.l.b16 %v2798
  %v3984 = vunpack.c.h.b16 %v2798
  %v3985 = vunpack.c.l.b16 %v2799
  %v3986 = vunpack.c.h.b16 %v2799
  %v3987 = vunpack.c.l.b16 %v2800
  %v3988 = vunpack.c.l.b16 %v2801
  %v3989 = vunpack.c.h.b16 %v2801
  %v3990 = vunpack.c.l.b16 %v2802
  %v3991 = vunpack.c.h.b16 %v2802
  %v3992 = vunpack.c.l.b16 %v2803
  %v3993 = vunpack.c.h.b16 %v2803
  %v3994 = vunpack.c.l.b16 %v2804
  %v3995 = vunpack.c.l.b16 %v2805
  %v3996 = vunpack.c.h.b16 %v2805
  %v3997 = vunpack.c.l.b16 %v2806
  %v3998 = vunpack.c.h.b16 %v2806
  %v3999 = vunpack.c.l.b16 %v2807
  %v4000 = vunpack.c.h.b16 %v2807
  %v4001 = vunpack.c.l.b16 %v2808
  %v4002 = vunpack.c.l.b16 %v2809
  %v4003 = vunpack.c.h.b16 %v2809
  %v4004 = vunpack.c.l.b16 %v2810
  %v4005 = vunpack.c.h.b16 %v2810
  %v4006 = vunpack.c.l.b16 %v2811
  %v4007 = vunpack.c.h.b16 %v2811
  %v4008 = vunpack.c.l.b16 %v2812
  %v4009 = vunpack.c.l.b16 %v2813
  %v4010 = vunpack.c.h.b16 %v2813
  %v4011 = vunpack.c.l.b16 %v2814
  %v4012 = vunpack.c.h.b16 %v2814
  %v4013 = vunpack.c.l.b16 %v2815
  %v4014 = vunpack.c.h.b16 %v2815
  %v4015 = vunpack.c.l.b16 %v2816
  %v4016 = vunpack.c.l.b16 %v2817
  %v4017 = vunpack.c.h.b16 %v2817
  %v4018 = vunpack.c.l.b16 %v2818
  %v4019 = vunpack.c.h.b16 %v2818
  %v4020 = vunpack.c.l.b16 %v2819
  %v4021 = vunpack.c.h.b16 %v2819
  %v4022 = vunpack.c.l.b16 %v2820
  %v4023 = vunpack.c.l.b16 %v2821
  %v4024 = vunpack.c.h.b16 %v2821
  %v4025 = vunpack.c.l.b16 %v2822
  %v4026 = vunpack.c.h.b16 %v2822
  %v4027 = vunpack.c.l.b16 %v2823
  %v4028 = vunpack.c.h.b16 %v2823
  %v4029 = vunpack.c.l.b16 %v2824
  %v4030 = vunpack.c.l.b16 %v2825
  %v4031 = vunpack.c.h.b16 %v2825
  %v4032 = vunpack.c.l.b16 %v2826
  %v4033 = vunpack.c.h.b16 %v2826
  %v4034 = vunpack.c.l.b16 %v2827
  %v4035 = vunpack.c.h.b16 %v2827
  %v4036 = vunpack.c.l.b16 %v2828
  %v4037 = vunpack.c.l.b16 %v2829
  %v4038 = vunpack.c.h.b16 %v2829
  %v4039 = vunpack.c.l.b16 %v2830
  %v4040 = vunpack.c.h.b16 %v2830
  %v4041 = vunpack.c.l.b16 %v2831
  %v4042 = vunpack.c.h.b16 %v2831
  %v4043 = vunpack.c.l.b16 %v2832
  %v4044 = vunpack.c.l.b16 %v2833
  %v4045 = vunpack.c.h.b16 %v2833
  %v4046 = vunpack.c.l.b16 %v2834
  %v4047 = vunpack.c.h.b16 %v2834
  %v4048 = vunpack.c.l.b16 %v2835
  %v4049 = vunpack.c.h.b16 %v2835
  %v4050 = vunpack.c.l.b16 %v2836
  %v4051 = vunpack.c.l.b16 %v2837
  %v4052 = vunpack.c.h.b16 %v2837
  %v4053 = vunpack.c.l.b16 %v2838
  %v4054 = vunpack.c.h.b16 %v2838
  %v4055 = vunpack.c.l.b16 %v2839
  %v4056 = vunpack.c.h.b16 %v2839
  %v4057 = vunpack.c.l.b16 %v2840
  %v4058 = vunpack.c.l.b16 %v2841
  %v4059 = vunpack.c.h.b16 %v2841
  %v4060 = vunpack.c.l.b16 %v2842
  %v4061 = vunpack.c.h.b16 %v2842
  %v4062 = vunpack.c.l.b16 %v2843
  %v4063 = vunpack.c.h.b16 %v2843
  %v4064 = vunpack.c.l.b16 %v2844
  %v4065 = vunpack.c.l.b16 %v2845
  %v4066 = vunpack.c.h.b16 %v2845
  %v4067 = vunpack.c.l.b16 %v2846
  %v4068 = vunpack.c.h.b16 %v2846
  %v4069 = vunpack.c.l.b16 %v2847
  %v4070 = vunpack.c.h.b16 %v2847
  %v4071 = vunpack.c.l.b16 %v2848
  %v4072 = vunpack.c.l.b16 %v2849
  %v4073 = vunpack.c.h.b16 %v2849
  %v4074 = vunpack.c.l.b16 %v2850
  %v4075 = vunpack.c.h.b16 %v2850
  %v4076 = vunpack.c.l.b16 %v2851
  %v4077 = vunpack.c.h.b16 %v2851
  %v4078 = vunpack.c.l.b16 %v2852
  %v4079 = vunpack.c.l.b16 %v2853
  %v4080 = vunpack.c.h.b16 %v2853
  %v4081 = vunpack.c.l.b16 %v2854
  %v4082 = vunpack.c.h.b16 %v2854
  %v4083 = vunpack.c.l.b16 %v2855
  %v4084 = vunpack.c.h.b16 %v2855
  %v4085 = vunpack.c.l.b16 %v2856
  %v4086 = vunpack.c.l.b16 %v2857
  %v4087 = vunpack.c.h.b16 %v2857
  %v4088 = vunpack.c.l.b16 %v2858
  %v4089 = vunpack.c.h.b16 %v2858
  %v4090 = vunpack.c.l.b16 %v2859
  %v4091 = vunpack.c.h.b16 %v2859
  %v4092 = vunpack.c.l.b16 %v2860
  %v4093 = vunpack.c.l.b16 %v2861
  %v4094 = vunpack.c.h.b16 %v2861
  %v4095 = vunpack.c.l.b16 %v2862
  %v4096 = vunpack.c.h.b16 %v2862
  %v4097 = vunpack.c.l.b16 %v2863
  %v4098 = vunpack.c.h.b16 %v2863
  %v4099 = vunpack.c.l.b16 %v2864
  %v4100 = vunpack.c.l.b16 %v2865
  %v4101 = vunpack.c.h.b16 %v2865
  %v4102 = vunpack.c.l.b16 %v2866
  %v4103 = vunpack.c.h.b16 %v2866
  %v4104 = vunpack.c.l.b16 %v2867
  %v4105 = vunpack.c.h.b16 %v2867
  %v4106 = vunpack.c.l.b16 %v2868
  %v4107 = vunpack.c.l.b16 %v2869
  %v4108 = vunpack.c.h.b16 %v2869
  %v4109 = vunpack.c.l.b16 %v2870
  %v4110 = vunpack.c.h.b16 %v2870
  %v4111 = vunpack.c.l.b16 %v2871
  %v4112 = vunpack.c.h.b16 %v2871
  %v4113 = vunpack.c.l.b16 %v2872
  %v4114 = vunpack.c.l.b16 %v2873
  %v4115 = vunpack.c.h.b16 %v2873
  %v4116 = vunpack.c.l.b16 %v2874
  %v4117 = vunpack.c.h.b16 %v2874
  %v4118 = vunpack.c.l.b16 %v2875
  %v4119 = vunpack.c.h.b16 %v2875
  %v4120 = vunpack.c.l.b16 %v2876
  %v4121 = vunpack.c.l.b16 %v2877
  %v4122 = vunpack.c.h.b16 %v2877
  %v4123 = vunpack.c.l.b16 %v2878
  %v4124 = vunpack.c.h.b16 %v2878
  %v4125 = vunpack.c.l.b16 %v2879
  %v4126 = vunpack.c.h.b16 %v2879
  %v4127 = vunpack.c.l.b16 %v2880
  %v4128 = vunpack.c.l.b16 %v2881
  %v4129 = vunpack.c.h.b16 %v2881
  %v4130 = vunpack.c.l.b16 %v2882
  %v4131 = vunpack.c.h.b16 %v2882
  %v4132 = vunpack.c.l.b16 %v2883
  %v4133 = vunpack.c.h.b16 %v2883
  %v4134 = vunpack.c.l.b16 %v2884
  %v4135 = vunpack.c.l.b16 %v2885
  %v4136 = vunpack.c.h.b16 %v2885
  %v4137 = vunpack.c.l.b16 %v2886
  %v4138 = vunpack.c.h.b16 %v2886
  %v4139 = vunpack.c.l.b16 %v2887
  %v4140 = vunpack.c.h.b16 %v2887
  %v4141 = vunpack.c.l.b16 %v2888
  %v4142 = vunpack.c.l.b16 %v2889
  %v4143 = vunpack.c.h.b16 %v2889
  %v4144 = vunpack.c.l.b16 %v2890
  %v4145 = vunpack.c.h.b16 %v2890
  %v4146 = vunpack.c.l.b16 %v2891
  %v4147 = vunpack.c.h.b16 %v2891
  %v4148 = vunpack.c.l.b16 %v2892
  %v4149 = vunpack.c.l.b16 %v2893
  %v4150 = vunpack.c.h.b16 %v2893
  %v4151 = vunpack.c.l.b16 %v2894
  %v4152 = vunpack.c.h.b16 %v2894
  %v4153 = vunpack.c.l.b16 %v2895
  %v4154 = vunpack.c.h.b16 %v2895
  %v4155 = vunpack.c.l.b16 %v2896
  %v4156 = vunpack.c.l.b16 %v2897
  %v4157 = vunpack.c.h.b16 %v2897
  %v4158 = vunpack.c.l.b16 %v2898
  %v4159 = vunpack.c.h.b16 %v2898
  %v4160 = vunpack.c.l.b16 %v2899
  %v4161 = vunpack.c.h.b16 %v2899
  %v4162 = vunpack.c.l.b16 %v2900
  %v4163 = vunpack.c.l.b16 %v2901
  %v4164 = vunpack.c.h.b16 %v2901
  %v4165 = vunpack.c.l.b16 %v2902
  %v4166 = vunpack.c.h.b16 %v2902
  %v4167 = vunpack.c.l.b16 %v2903
  %v4168 = vunpack.c.h.b16 %v2903
  %v4169 = vunpack.c.l.b16 %v2904
  %v4170 = vunpack.c.l.b16 %v2905
  %v4171 = vunpack.c.h.b16 %v2905
  %v4172 = vunpack.c.l.b16 %v2906
  %v4173 = vunpack.c.h.b16 %v2906
  %v4174 = vunpack.c.l.b16 %v2907
  %v4175 = vunpack.c.h.b16 %v2907
  %v4176 = vunpack.c.l.b16 %v2908
  %v4177 = vunpack.c.l.b16 %v2909
  %v4178 = vunpack.c.h.b16 %v2909
  %v4179 = vunpack.c.l.b16 %v2910
  %v4180 = vunpack.c.h.b16 %v2910
  %v4181 = vunpack.c.l.b16 %v2911
  %v4182 = vunpack.c.h.b16 %v2911
  %v4183 = vunpack.c.l.b16 %v2912
  %v4184 = vunpack.c.l.b16 %v2913
  %v4185 = vunpack.c.h.b16 %v2913
  %v4186 = vunpack.c.l.b16 %v2914
  %v4187 = vunpack.c.h.b16 %v2914
  %v4188 = vunpack.c.l.b16 %v2915
  %v4189 = vunpack.c.h.b16 %v2915
  %v4190 = vunpack.c.l.b16 %v2916
  %v4191 = vunpack.c.l.b16 %v2917
  %v4192 = vunpack.c.h.b16 %v2917
  %v4193 = vunpack.c.l.b16 %v2918
  %v4194 = vunpack.c.h.b16 %v2918
  %v4195 = vunpack.c.l.b16 %v2919
  %v4196 = vunpack.c.h.b16 %v2919
  %v4197 = vunpack.c.l.b16 %v2920
  %v4198 = vunpack.c.l.b16 %v2921
  %v4199 = vunpack.c.h.b16 %v2921
  %v4200 = vunpack.c.l.b16 %v2922
  %v4201 = vunpack.c.h.b16 %v2922
  %v4202 = vunpack.c.l.b16 %v2923
  %v4203 = vunpack.c.h.b16 %v2923
  %v4204 = vunpack.c.l.b16 %v2924
  %v4205 = vunpack.c.l.b16 %v2925
  %v4206 = vunpack.c.h.b16 %v2925
  %v4207 = vunpack.c.l.b16 %v2926
  %v4208 = vunpack.c.h.b16 %v2926
  %v4209 = vunpack.c.l.b16 %v2927
  %v4210 = vunpack.c.h.b16 %v2927
  %v4211 = vunpack.c.l.b16 %v2928
  %v4212 = vunpack.c.l.b16 %v2929
  %v4213 = vunpack.c.h.b16 %v2929
  %v4214 = vunpack.c.l.b16 %v2930
  %v4215 = vunpack.c.h.b16 %v2930
  %v4216 = vunpack.c.l.b16 %v2931
  %v4217 = vunpack.c.h.b16 %v2931
  %v4218 = vunpack.c.l.b16 %v2932
  %v4219 = vunpack.c.l.b16 %v2933
  %v4220 = vunpack.c.h.b16 %v2933
  %v4221 = vunpack.c.l.b16 %v2934
  %v4222 = vunpack.c.h.b16 %v2934
  %v4223 = vunpack.c.l.b16 %v2935
  %v4224 = vunpack.c.h.b16 %v2935
  %v4225 = vunpack.c.l.b16 %v2936
  %v4226 = vunpack.c.l.b16 %v2937
  %v4227 = vunpack.c.h.b16 %v2937
  %v4228 = vunpack.c.l.b16 %v2938
  %v4229 = vunpack.c.h.b16 %v2938
  %v4230 = vunpack.c.l.b16 %v2939
  %v4231 = vunpack.c.h.b16 %v2939
  %v4232 = vunpack.c.l.b16 %v2940
  %v4233 = vunpack.c.l.b16 %v2941
  %v4234 = vunpack.c.h.b16 %v2941
  %v4235 = vunpack.c.l.b16 %v2942
  %v4236 = vunpack.c.h.b16 %v2942
  %v4237 = vunpack.c.l.b16 %v2943
  %v4238 = vunpack.c.h.b16 %v2943
  %v4239 = vunpack.c.l.b16 %v2944
  %v4240 = vunpack.c.l.b16 %v2945
  %v4241 = vunpack.c.h.b16 %v2945
  %v4242 = vunpack.c.l.b16 %v2946
  %v4243 = vunpack.c.h.b16 %v2946
  %v4244 = vunpack.c.l.b16 %v2947
  %v4245 = vunpack.c.h.b16 %v2947
  %v4246 = vunpack.c.l.b16 %v2948
  %v4247 = vunpack.c.l.b16 %v2949
  %v4248 = vunpack.c.h.b16 %v2949
  %v4249 = vunpack.c.l.b16 %v2950
  %v4250 = vunpack.c.h.b16 %v2950
  %v4251 = vunpack.c.l.b16 %v2951
  %v4252 = vunpack.c.h.b16 %v2951
  %v4253 = vunpack.c.l.b16 %v2952
  %v4254 = vunpack.c.l.b16 %v2953
  %v4255 = vunpack.c.h.b16 %v2953
  %v4256 = vunpack.c.l.b16 %v2954
  %v4257 = vunpack.c.h.b16 %v2954
  %v4258 = vunpack.c.l.b16 %v2955
  %v4259 = vunpack.c.h.b16 %v2955
  %v4260 = vunpack.c.l.b16 %v2956
  %v4261 = vunpack.c.l.b16 %v2957
  %v4262 = vunpack.c.h.b16 %v2957
  %v4263 = vunpack.c.l.b16 %v2958
  %v4264 = vunpack.c.h.b16 %v2958
  %v4265 = vunpack.c.l.b16 %v2959
  %v4266 = vunpack.c.h.b16 %v2959
  %v4267 = vunpack.c.l.b16 %v2960
  %v4268 = vunpack.c.l.b16 %v2961
  %v4269 = vunpack.c.h.b16 %v2961
  %v4270 = vunpack.c.l.b16 %v2962
  %v4271 = vunpack.c.h.b16 %v2962
  %v4272 = vunpack.c.l.b16 %v2963
  %v4273 = vunpack.c.h.b16 %v2963
  %v4274 = vunpack.c.l.b16 %v2964
  %v4275 = vunpack.c.l.b16 %v2965
  %v4276 = vunpack.c.h.b16 %v2965
  %v4277 = vunpack.c.l.b16 %v2966
  %v4278 = vunpack.c.h.b16 %v2966
  %v4279 = vunpack.c.l.b16 %v2967
  %v4280 = vunpack.c.h.b16 %v2967
  %v4281 = vunpack.c.l.b16 %v2968
  %v4282 = vunpack.c.l.b16 %v2969
  %v4283 = vunpack.c.h.b16 %v2969
  %v4284 = vunpack.c.l.b16 %v2970
  %v4285 = vunpack.c.h.b16 %v2970
  %v4286 = vunpack.c.l.b16 %v2971
  %v4287 = vunpack.c.h.b16 %v2971
  %v4288 = vunpack.c.l.b16 %v2972
  %v4289 = vunpack.c.l.b16 %v2973
  %v4290 = vunpack.c.h.b16 %v2973
  %v4291 = vunpack.c.l.b16 %v2974
  %v4292 = vunpack.c.h.b16 %v2974
  %v4293 = vunpack.c.l.b16 %v2975
  %v4294 = vunpack.c.h.b16 %v2975
  %v4295 = vunpack.c.l.b16 %v2976
  %v4296 = vunpack.c.l.b16 %v2977
  %v4297 = vunpack.c.h.b16 %v2977
  %v4298 = vunpack.c.l.b16 %v2978
  %v4299 = vunpack.c.h.b16 %v2978
  %v4300 = vunpack.c.l.b16 %v2979
  %v4301 = vunpack.c.h.b16 %v2979
  %v4302 = vunpack.c.l.b16 %v2980
  %v4303 = vunpack.c.l.b16 %v2981
  %v4304 = vunpack.c.h.b16 %v2981
  %v4305 = vunpack.c.l.b16 %v2982
  %v4306 = vunpack.c.h.b16 %v2982
  %v4307 = vunpack.c.l.b16 %v2983
  %v4308 = vunpack.c.h.b16 %v2983
  %v4309 = vunpack.c.l.b16 %v2984
  %v4310 = vunpack.c.l.b16 %v2985
  %v4311 = vunpack.c.h.b16 %v2985
  %v4312 = vunpack.c.l.b16 %v2986
  %v4313 = vunpack.c.h.b16 %v2986
  %v4314 = vunpack.c.l.b16 %v2987
  %v4315 = vunpack.c.h.b16 %v2987
  %v4316 = vunpack.c.l.b16 %v2988
  %v4317 = vunpack.c.l.b16 %v2989
  %v4318 = vunpack.c.h.b16 %v2989
  %v4319 = vunpack.c.l.b16 %v2990
  %v4320 = vunpack.c.h.b16 %v2990
  %v4321 = vunpack.c.l.b16 %v2991
  %v4322 = vunpack.c.h.b16 %v2991
  %v4323 = vunpack.c.l.b16 %v2992
  %v4324 = vunpack.c.l.b16 %v2993
  %v4325 = vunpack.c.h.b16 %v2993
  %v4326 = vunpack.c.l.b16 %v2994
  %v4327 = vunpack.c.h.b16 %v2994
  %v4328 = vunpack.c.l.b16 %v2995
  %v4329 = vunpack.c.h.b16 %v2995
  %v4330 = vunpack.c.l.b16 %v2996
  %v4331 = vunpack.c.l.b16 %v2997
  %v4332 = vunpack.c.h.b16 %v2997
  %v4333 = vunpack.c.l.b16 %v2998
  %v4334 = vunpack.c.h.b16 %v2998
  %v4335 = vunpack.c.l.b16 %v2999
  %v4336 = vunpack.c.h.b16 %v2999
  %v4337 = vunpack.c.l.b16 %v3000
  %v4338 = vunpack.c.l.b16 %v3001
  %v4339 = vunpack.c.h.b16 %v3001
  %v4340 = vunpack.c.l.b16 %v3002
  %v4341 = vunpack.c.h.b16 %v3002
  %v4342 = vunpack.c.l.b16 %v3003
  %v4343 = vunpack.c.h.b16 %v3003
  %v4344 = vunpack.c.l.b16 %v3004
  %v4345 = vunpack.c.l.b16 %v3005
  %v4346 = vunpack.c.h.b16 %v3005
  %v4347 = vunpack.c.l.b16 %v3006
  %v4348 = vunpack.c.h.b16 %v3006
  %v4349 = vunpack.c.l.b16 %v3007
  %v4350 = vunpack.c.h.b16 %v3007
  %v4351 = vunpack.c.l.b16 %v3008
  %v4352 = vunpack.c.l.b16 %v3009
  %v4353 = vunpack.c.h.b16 %v3009
  %v4354 = vunpack.c.l.b16 %v3010
  %v4355 = vunpack.c.h.b16 %v3010
  %v4356 = vunpack.c.l.b16 %v3011
  %v4357 = vunpack.c.h.b16 %v3011
  %v4358 = vunpack.c.l.b16 %v3012
  %v4359 = vunpack.c.l.b16 %v3013
  %v4360 = vunpack.c.h.b16 %v3013
  %v4361 = vunpack.c.l.b16 %v3014
  %v4362 = vunpack.c.h.b16 %v3014
  %v4363 = vunpack.c.l.b16 %v3015
  %v4364 = vunpack.c.h.b16 %v3015
  %v4365 = vunpack.c.l.b16 %v3016
  %v4366 = vunpack.c.l.b16 %v3017
  %v4367 = vunpack.c.h.b16 %v3017
  %v4368 = vunpack.c.l.b16 %v3018
  %v4369 = vunpack.c.h.b16 %v3018
  %v4370 = vunpack.c.l.b16 %v3019
  %v4371 = vunpack.c.h.b16 %v3019
  %v4372 = vunpack.c.l.b16 %v3020
  %v4373 = vunpack.c.l.b16 %v3021
  %v4374 = vunpack.c.h.b16 %v3021
  %v4375 = vunpack.c.l.b16 %v3022
  %v4376 = vunpack.c.h.b16 %v3022
  %v4377 = vunpack.c.l.b16 %v3023
  %v4378 = vunpack.c.h.b16 %v3023
  %v4379 = vunpack.c.l.b16 %v3024
  %v4380 = vunpack.c.l.b16 %v3025
  %v4381 = vunpack.c.h.b16 %v3025
  %v4382 = vunpack.c.l.b16 %v3026
  %v4383 = vunpack.c.h.b16 %v3026
  %v4384 = vunpack.c.l.b16 %v3027
  %v4385 = vunpack.c.h.b16 %v3027
  %v4386 = vunpack.c.l.b16 %v3028
  %v4387 = vunpack.c.l.b16 %v3029
  %v4388 = vunpack.c.h.b16 %v3029
  %v4389 = vunpack.c.l.b16 %v3030
  %v4390 = vunpack.c.h.b16 %v3030
  %v4391 = vunpack.c.l.b16 %v3031
  %v4392 = vunpack.c.h.b16 %v3031
  %v4393 = vunpack.c.l.b16 %v3032
  %v4394 = vunpack.c.l.b16 %v3033
  %v4395 = vunpack.c.h.b16 %v3033
  %v4396 = vunpack.c.l.b16 %v3034
  %v4397 = vunpack.c.h.b16 %v3034
  %v4398 = vunpack.c.l.b16 %v3035
  %v4399 = vunpack.c.h.b16 %v3035
  %v4400 = vunpack.c.l.b16 %v3036
  %v4401 = vunpack.c.l.b16 %v3037
  %v4402 = vunpack.c.h.b16 %v3037
  %v4403 = vunpack.c.l.b16 %v3038
  %v4404 = vunpack.c.h.b16 %v3038
  %v4405 = vunpack.c.l.b16 %v3039
  %v4406 = vunpack.c.h.b16 %v3039
  %v4407 = vunpack.c.l.b16 %v3040
  %v4408 = vunpack.c.l.b16 %v3041
  %v4409 = vunpack.c.h.b16 %v3041
  %v4410 = vunpack.c.l.b16 %v3042
  %v4411 = vunpack.c.h.b16 %v3042
  %v4412 = vunpack.c.l.b16 %v3043
  %v4413 = vunpack.c.h.b16 %v3043
  %v4414 = vunpack.c.l.b16 %v3044
  %v4415 = vunpack.c.l.b16 %v3045
  %v4416 = vunpack.c.h.b16 %v3045
  %v4417 = vunpack.c.l.b16 %v3046
  %v4418 = vunpack.c.h.b16 %v3046
  %v4419 = vunpack.c.l.b16 %v3047
  %v4420 = vunpack.c.h.b16 %v3047
  %v4421 = vunpack.c.l.b16 %v3048
  %v4422 = vunpack.c.l.b16 %v3049
  %v4423 = vunpack.c.h.b16 %v3049
  %v4424 = vunpack.c.l.b16 %v3050
  %v4425 = vunpack.c.h.b16 %v3050
  %v4426 = vunpack.c.l.b16 %v3051
  %v4427 = vunpack.c.h.b16 %v3051
  %v4428 = vunpack.c.l.b16 %v3052
  %v4429 = vunpack.c.l.b16 %v3053
  %v4430 = vunpack.c.h.b16 %v3053
  %v4431 = vunpack.c.l.b16 %v3054
  %v4432 = vunpack.c.h.b16 %v3054
  %v4433 = vunpack.c.l.b16 %v3055
  %v4434 = vunpack.c.h.b16 %v3055
  %v4435 = vunpack.c.l.b16 %v3056
  %v4436 = vunpack.c.l.b16 %v3057
  %v4437 = vunpack.c.h.b16 %v3057
  %v4438 = vunpack.c.l.b16 %v3058
  %v4439 = vunpack.c.h.b16 %v3058
  %v4440 = vunpack.c.l.b16 %v3059
  %v4441 = vunpack.c.h.b16 %v3059
  %v4442 = vunpack.c.l.b16 %v3060
  %v4443 = vunpack.c.l.b16 %v3061
  %v4444 = vunpack.c.h.b16 %v3061
  %v4445 = vunpack.c.l.b16 %v3062
  %v4446 = vunpack.c.h.b16 %v3062
  %v4447 = vunpack.c.l.b16 %v3063
  %v4448 = vunpack.c.h.b16 %v3063
  %v4449 = vunpack.c.l.b16 %v3064
  %v4450 = vunpack.c.l.b16 %v3065
  %v4451 = vunpack.c.h.b16 %v3065
  %v4452 = vunpack.c.l.b16 %v3066
  %v4453 = vunpack.c.h.b16 %v3066
  %v4454 = vunpack.c.l.b16 %v3067
  %v4455 = vunpack.c.h.b16 %v3067
  %v4456 = vunpack.c.l.b16 %v3068
  %v4457 = vunpack.c.l.b16 %v3069
  %v4458 = vunpack.c.h.b16 %v3069
  %v4459 = vunpack.c.l.b16 %v3070
  %v4460 = vunpack.c.h.b16 %v3070
  %v4461 = vunpack.c.l.b16 %v3071
  %v4462 = vunpack.c.h.b16 %v3071
  %v4463 = vunpack.c.l.b16 %v3072
  %v4464 = vunpack.c.l.b16 %v3073
  %v4465 = vunpack.c.h.b16 %v3073
  %v4466 = vunpack.c.l.b16 %v3074
  %v4467 = vunpack.c.h.b16 %v3074
  %v4468 = vunpack.c.l.b16 %v3075
  %v4469 = vunpack.c.h.b16 %v3075
  %v4470 = vunpack.c.l.b16 %v3076
  %v4471 = vunpack.c.l.b16 %v3077
  %v4472 = vunpack.c.h.b16 %v3077
  %v4473 = vunpack.c.l.b16 %v3078
  %v4474 = vunpack.c.h.b16 %v3078
  %v4475 = vunpack.c.l.b16 %v3079
  %v4476 = vunpack.c.h.b16 %v3079
  %v4477 = vunpack.c.l.b16 %v3080
  %v4478 = vunpack.c.l.b16 %v3081
  %v4479 = vunpack.c.h.b16 %v3081
  %v4480 = vunpack.c.l.b16 %v3082
  %v4481 = vunpack.c.h.b16 %v3082
  %v4482 = vunpack.c.l.b16 %v3083
  %v4483 = vunpack.c.h.b16 %v3083
  %v4484 = vunpack.c.l.b16 %v3084
  %v4485 = vunpack.c.l.b16 %v3085
  %v4486 = vunpack.c.h.b16 %v3085
  %v4487 = vunpack.c.l.b16 %v3086
  %v4488 = vunpack.c.h.b16 %v3086
  %v4489 = vunpack.c.l.b16 %v3087
  %v4490 = vunpack.c.h.b16 %v3087
  %v4491 = vunpack.c.l.b16 %v3088
  %v4492 = vunpack.c.l.b16 %v3089
  %v4493 = vunpack.c.h.b16 %v3089
  %v4494 = vunpack.c.l.b16 %v3090
  %v4495 = vunpack.c.h.b16 %v3090
  %v4496 = vunpack.c.l.b16 %v3091
  %v4497 = vunpack.c.h.b16 %v3091
  %v4498 = vunpack.c.l.b16 %v3092
  %v4499 = vunpack.c.l.b16 %v3093
  %v4500 = vunpack.c.h.b16 %v3093
  %v4501 = vunpack.c.l.b16 %v3094
  %v4502 = vunpack.c.h.b16 %v3094
  %v4503 = vunpack.c.l.b16 %v3095
  %v4504 = vunpack.c.h.b16 %v3095
  %v4505 = vunpack.c.l.b16 %v3096
  %v4506 = vunpack.c.l.b16 %v3097
  %v4507 = vunpack.c.h.b16 %v3097
  %v4508 = vunpack.c.l.b16 %v3098
  %v4509 = vunpack.c.h.b16 %v3098
  %v4510 = vunpack.c.l.b16 %v3099
  %v4511 = vunpack.c.h.b16 %v3099
  %v4512 = vunpack.c.l.b16 %v3100
  %v4513 = vunpack.c.l.b16 %v3101
  %v4514 = vunpack.c.h.b16 %v3101
  %v4515 = vunpack.c.l.b16 %v3102
  %v4516 = vunpack.c.h.b16 %v3102
  %v4517 = vunpack.c.l.b16 %v3103
  %v4518 = vunpack.c.h.b16 %v3103
  %v4519 = vunpack.c.l.b16 %v3104
  %v4520 = vunpack.c.l.b16 %v3105
  %v4521 = vunpack.c.h.b16 %v3105
  %v4522 = vunpack.c.l.b16 %v3106
  %v4523 = vunpack.c.h.b16 %v3106
  %v4524 = vunpack.c.l.b16 %v3107
  %v4525 = vunpack.c.h.b16 %v3107
  %v4526 = vunpack.c.l.b16 %v3108
  %v4527 = vunpack.c.l.b16 %v3109
  %v4528 = vunpack.c.h.b16 %v3109
  %v4529 = vunpack.c.l.b16 %v3110
  %v4530 = vunpack.c.h.b16 %v3110
  %v4531 = vunpack.c.l.b16 %v3111
  %v4532 = vunpack.c.h.b16 %v3111
  %v4533 = vunpack.c.l.b16 %v3112
  %v4534 = vunpack.c.l.b16 %v3113
  %v4535 = vunpack.c.h.b16 %v3113
  %v4536 = vunpack.c.l.b16 %v3114
  %v4537 = vunpack.c.h.b16 %v3114
  %v4538 = vunpack.c.l.b16 %v3115
  %v4539 = vunpack.c.h.b16 %v3115
  %v4540 = vunpack.c.l.b16 %v3116
  %v4541 = vunpack.c.l.b16 %v3117
  %v4542 = vunpack.c.h.b16 %v3117
  %v4543 = vunpack.c.l.b16 %v3118
  %v4544 = vunpack.c.h.b16 %v3118
  %v4545 = vunpack.c.l.b16 %v3119
  %v4546 = vunpack.c.h.b16 %v3119
  %v4547 = vunpack.c.l.b16 %v3120
  %v4548 = vunpack.c.l.b16 %v3121
  %v4549 = vunpack.c.h.b16 %v3121
  %v4550 = vunpack.c.l.b16 %v3122
  %v4551 = vunpack.c.h.b16 %v3122
  %v4552 = vunpack.c.l.b16 %v3123
  %v4553 = vunpack.c.h.b16 %v3123
  %v4554 = vunpack.c.l.b16 %v3124
  %v4555 = vunpack.c.l.b16 %v3125
  %v4556 = vunpack.c.h.b16 %v3125
  %v4557 = vunpack.c.l.b16 %v3126
  %v4558 = vunpack.c.h.b16 %v3126
  %v4559 = vunpack.c.l.b16 %v3127
  %v4560 = vunpack.c.h.b16 %v3127
  %v4561 = vunpack.c.l.b16 %v3128
  %v4562 = vunpack.c.l.b16 %v3129
  %v4563 = vunpack.c.h.b16 %v3129
  %v4564 = vunpack.c.l.b16 %v3130
  %v4565 = vunpack.c.h.b16 %v3130
  %v4566 = vunpack.c.l.b16 %v3131
  %v4567 = vunpack.c.h.b16 %v3131
  %v4568 = vunpack.c.l.b16 %v3132
  %v4569 = vunpack.c.l.b16 %v3133
  %v4570 = vunpack.c.h.b16 %v3133
  %v4571 = vunpack.c.l.b16 %v3134
  %v4572 = vunpack.c.h.b16 %v3134
  %v4573 = vunpack.c.l.b16 %v3135
  %v4574 = vunpack.c.h.b16 %v3135
  %v4575 = vunpack.c.l.b16 %v3136
  %v4576 = vunpack.c.l.b16 %v3137
  %v4577 = vunpack.c.h.b16 %v3137
  %v4578 = vunpack.c.l.b16 %v3138
  %v4579 = vunpack.c.h.b16 %v3138
  %v4580 = vunpack.c.l.b16 %v3139
  %v4581 = vunpack.c.h.b16 %v3139
  %v4582 = vunpack.c.l.b16 %v3140
  %v4583 = vunpack.c.l.b16 %v3141
  %v4584 = vunpack.c.h.b16 %v3141
  %v4585 = vunpack.c.l.b16 %v3142
  %v4586 = vunpack.c.h.b16 %v3142
  %v4587 = vunpack.c.l.b16 %v3143
  %v4588 = vunpack.c.h.b16 %v3143
  %v4589 = vunpack.c.l.b16 %v3144
  %v4590 = vpack.c.b16 %v3701, %v3694
  %v4591 = vpack.c.b16 %v3702, %v3695
  %v4592 = vpack.c.b16 %v3703, %v3696
  %v4593 = vpack.c.b16 %v3704, %v3697
  %v4594 = vpack.c.b16 %v3705, %v3698
  %v4595 = vpack.c.b16 %v3706, %v3699
  %v4596 = vpack.c.b16 %v3707, %v3700
  %v4597 = vpack.c.b16 %v3715, %v3708
  %v4598 = vpack.c.b16 %v3716, %v3709
  %v4599 = vpack.c.b16 %v3717, %v3710
  %v4600 = vpack.c.b16 %v3718, %v3711
  %v4601 = vpack.c.b16 %v3719, %v3712
  %v4602 = vpack.c.b16 %v3720, %v3713
  %v4603 = vpack.c.b16 %v3721, %v3714
  %v4604 = vpack.c.b16 %v3729, %v3722
  %v4605 = vpack.c.b16 %v3730, %v3723
  %v4606 = vpack.c.b16 %v3731, %v3724
  %v4607 = vpack.c.b16 %v3732, %v3725
  %v4608 = vpack.c.b16 %v3733, %v3726
  %v4609 = vpack.c.b16 %v3734, %v3727
  %v4610 = vpack.c.b16 %v3735, %v3728
  %v4611 = vpack.c.b16 %v3743, %v3736
  %v4612 = vpack.c.b16 %v3744, %v3737
  %v4613 = vpack.c.b16 %v3745, %v3738
  %v4614 = vpack.c.b16 %v3746, %v3739
  %v4615 = vpack.c.b16 %v3747, %v3740
  %v4616 = vpack.c.b16 %v3748, %v3741
  %v4617 = vpack.c.b16 %v3749, %v3742
  %v4618 = vpack.c.b16 %v3757, %v3750
  %v4619 = vpack.c.b16 %v3758, %v3751
  %v4620 = vpack.c.b16 %v3759, %v3752
  %v4621 = vpack.c.b16 %v3760, %v3753
  %v4622 = vpack.c.b16 %v3761, %v3754
  %v4623 = vpack.c.b16 %v3762, %v3755
  %v4624 = vpack.c.b16 %v3763, %v3756
  %v4625 = vpack.c.b16 %v3771, %v3764
  %v4626 = vpack.c.b16 %v3772, %v3765
  %v4627 = vpack.c.b16 %v3773, %v3766
  %v4628 = vpack.c.b16 %v3774, %v3767
  %v4629 = vpack.c.b16 %v3775, %v3768
  %v4630 = vpack.c.b16 %v3776, %v3769
  %v4631 = vpack.c.b16 %v3777, %v3770
  %v4632 = vpack.c.b16 %v3785, %v3778
  %v4633 = vpack.c.b16 %v3786, %v3779
  %v4634 = vpack.c.b16 %v3787, %v3780
  %v4635 = vpack.c.b16 %v3788, %v3781
  %v4636 = vpack.c.b16 %v3789, %v3782
  %v4637 = vpack.c.b16 %v3790, %v3783
  %v4638 = vpack.c.b16 %v3791, %v3784
  %v4639 = vpack.c.b16 %v3799, %v3792
  %v4640 = vpack.c.b16 %v3800, %v3793
  %v4641 = vpack.c.b16 %v3801, %v3794
  %v4642 = vpack.c.b16 %v3802, %v3795
  %v4643 = vpack.c.b16 %v3803, %v3796
  %v4644 = vpack.c.b16 %v3804, %v3797
  %v4645 = vpack.c.b16 %v3805, %v3798
  %v4646 = vpack.c.b16 %v3813, %v3806
  %v4647 = vpack.c.b16 %v3814, %v3807
  %v4648 = vpack.c.b16 %v3815, %v3808
  %v4649 = vpack.c.b16 %v3816, %v3809
  %v4650 = vpack.c.b16 %v3817, %v3810
  %v4651 = vpack.c.b16 %v3818, %v3811
  %v4652 = vpack.c.b16 %v3819, %v3812
  %v4653 = vpack.c.b16 %v3827, %v3820
  %v4654 = vpack.c.b16 %v3828, %v3821
  %v4655 = vpack.c.b16 %v3829, %v3822
  %v4656 = vpack.c.b16 %v3830, %v3823
  %v4657 = vpack.c.b16 %v3831, %v3824
  %v4658 = vpack.c.b16 %v3832, %v3825
  %v4659 = vpack.c.b16 %v3833, %v3826
  %v4660 = vpack.c.b16 %v3841, %v3834
  %v4661 = vpack.c.b16 %v3842, %v3835
  %v4662 = vpack.c.b16 %v3843, %v3836
  %v4663 = vpack.c.b16 %v3844, %v3837
  %v4664 = vpack.c.b16 %v3845, %v3838
  %v4665 = vpack.c.b16 %v3846, %v3839
  %v4666 = vpack.c.b16 %v3847, %v3840
  %v4667 = vpack.c.b16 %v3855, %v3848
  %v4668 = vpack.c.b16 %v3856, %v3849
  %v4669 = vpack.c.b16 %v3857, %v3850
  %v4670 = vpack.c.b16 %v3858, %v3851
  %v4671 = vpack.c.b16 %v3859, %v3852
  %v4672 = vpack.c.b16 %v3860, %v3853
  %v4673 = vpack.c.b16 %v3861, %v3854
  %v4674 = vpack.c.b16 %v3869, %v3862
  %v4675 = vpack.c.b16 %v3870, %v3863
  %v4676 = vpack.c.b16 %v3871, %v3864
  %v4677 = vpack.c.b16 %v3872, %v3865
  %v4678 = vpack.c.b16 %v3873, %v3866
  %v4679 = vpack.c.b16 %v3874, %v3867
  %v4680 = vpack.c.b16 %v3875, %v3868
  %v4681 = vpack.c.b16 %v3883, %v3876
  %v4682 = vpack.c.b16 %v3884, %v3877
  %v4683 = vpack.c.b16 %v3885, %v3878
  %v4684 = vpack.c.b16 %v3886, %v3879
  %v4685 = vpack.c.b16 %v3887, %v3880
  %v4686 = vpack.c.b16 %v3888, %v3881
  %v4687 = vpack.c.b16 %v3889, %v3882
  %v4688 = vpack.c.b16 %v3897, %v3890
  %v4689 = vpack.c.b16 %v3898, %v3891
  %v4690 = vpack.c.b16 %v3899, %v3892
  %v4691 = vpack.c.b16 %v3900, %v3893
  %v4692 = vpack.c.b16 %v3901, %v3894
  %v4693 = vpack.c.b16 %v3902, %v3895
  %v4694 = vpack.c.b16 %v3903, %v3896
  %v4695 = vpack.c.b16 %v3911, %v3904
  %v4696 = vpack.c.b16 %v3912, %v3905
  %v4697 = vpack.c.b16 %v3913, %v3906
  %v4698 = vpack.c.b16 %v3914, %v3907
  %v4699 = vpack.c.b16 %v3915, %v3908
  %v4700 = vpack.c.b16 %v3916, %v3909
  %v4701 = vpack.c.b16 %v3917, %v3910
  %v4702 = vpack.c.b16 %v3925, %v3918
  %v4703 = vpack.c.b16 %v3926, %v3919
  %v4704 = vpack.c.b16 %v3927, %v3920
  %v4705 = vpack.c.b16 %v3928, %v3921
  %v4706 = vpack.c.b16 %v3929, %v3922
  %v4707 = vpack.c.b16 %v3930, %v3923
  %v4708 = vpack.c.b16 %v3931, %v3924
  %v4709 = vpack.c.b16 %v3939, %v3932
  %v4710 = vpack.c.b16 %v3940, %v3933
  %v4711 = vpack.c.b16 %v3941, %v3934
  %v4712 = vpack.c.b16 %v3942, %v3935
  %v4713 = vpack.c.b16 %v3943, %v3936
  %v4714 = vpack.c.b16 %v3944, %v3937
  %v4715 = vpack.c.b16 %v3945, %v3938
  %v4716 = vpack.c.b16 %v3953, %v3946
  %v4717 = vpack.c.b16 %v3954, %v3947
  %v4718 = vpack.c.b16 %v3955, %v3948
  %v4719 = vpack.c.b16 %v3956, %v3949
  %v4720 = vpack.c.b16 %v3957, %v3950
  %v4721 = vpack.c.b16 %v3958, %v3951
  %v4722 = vpack.c.b16 %v3959, %v3952
  %v4723 = vpack.c.b16 %v3967, %v3960
  %v4724 = vpack.c.b16 %v3968, %v3961
  %v4725 = vpack.c.b16 %v3969, %v3962
  %v4726 = vpack.c.b16 %v3970, %v3963
  %v4727 = vpack.c.b16 %v3971, %v3964
  %v4728 = vpack.c.b16 %v3972, %v3965
  %v4729 = vpack.c.b16 %v3973, %v3966
  %v4730 = vpack.c.b16 %v3981, %v3974
  %v4731 = vpack.c.b16 %v3982, %v3975
  %v4732 = vpack.c.b16 %v3983, %v3976
  %v4733 = vpack.c.b16 %v3984, %v3977
  %v4734 = vpack.c.b16 %v3985, %v3978
  %v4735 = vpack.c.b16 %v3986, %v3979
  %v4736 = vpack.c.b16 %v3987, %v3980
  %v4737 = vpack.c.b16 %v3995, %v3988
  %v4738 = vpack.c.b16 %v3996, %v3989
  %v4739 = vpack.c.b16 %v3997, %v3990
  %v4740 = vpack.c.b16 %v3998, %v3991
  %v4741 = vpack.c.b16 %v3999, %v3992
  %v4742 = vpack.c.b16 %v4000, %v3993
  %v4743 = vpack.c.b16 %v4001, %v3994
  %v4744 = vpack.c.b16 %v4009, %v4002
  %v4745 = vpack.c.b16 %v4010, %v4003
  %v4746 = vpack.c.b16 %v4011, %v4004
  %v4747 = vpack.c.b16 %v4012, %v4005
  %v4748 = vpack.c.b16 %v4013, %v4006
  %v4749 = vpack.c.b16 %v4014, %v4007
  %v4750 = vpack.c.b16 %v4015, %v4008
  %v4751 = vpack.c.b16 %v4023, %v4016
  %v4752 = vpack.c.b16 %v4024, %v4017
  %v4753 = vpack.c.b16 %v4025, %v4018
  %v4754 = vpack.c.b16 %v4026, %v4019
  %v4755 = vpack.c.b16 %v4027, %v4020
  %v4756 = vpack.c.b16 %v4028, %v4021
  %v4757 = vpack.c.b16 %v4029, %v4022
  %v4758 = vpack.c.b16 %v4037, %v4030
  %v4759 = vpack.c.b16 %v4038, %v4031
  %v4760 = vpack.c.b16 %v4039, %v4032
  %v4761 = vpack.c.b16 %v4040, %v4033
  %v4762 = vpack.c.b16 %v4041, %v4034
  %v4763 = vpack.c.b16 %v4042, %v4035
  %v4764 = vpack.c.b16 %v4043, %v4036
  %v4765 = vpack.c.b16 %v4051, %v4044
  %v4766 = vpack.c.b16 %v4052, %v4045
  %v4767 = vpack.c.b16 %v4053, %v4046
  %v4768 = vpack.c.b16 %v4054, %v4047
  %v4769 = vpack.c.b16 %v4055, %v4048
  %v4770 = vpack.c.b16 %v4056, %v4049
  %v4771 = vpack.c.b16 %v4057, %v4050
  %v4772 = vpack.c.b16 %v4065, %v4058
  %v4773 = vpack.c.b16 %v4066, %v4059
  %v4774 = vpack.c.b16 %v4067, %v4060
  %v4775 = vpack.c.b16 %v4068, %v4061
  %v4776 = vpack.c.b16 %v4069, %v4062
  %v4777 = vpack.c.b16 %v4070, %v4063
  %v4778 = vpack.c.b16 %v4071, %v4064
  %v4779 = vpack.c.b16 %v4079, %v4072
  %v4780 = vpack.c.b16 %v4080, %v4073
  %v4781 = vpack.c.b16 %v4081, %v4074
  %v4782 = vpack.c.b16 %v4082, %v4075
  %v4783 = vpack.c.b16 %v4083, %v4076
  %v4784 = vpack.c.b16 %v4084, %v4077
  %v4785 = vpack.c.b16 %v4085, %v4078
  %v4786 = vpack.c.b16 %v4093, %v4086
  %v4787 = vpack.c.b16 %v4094, %v4087
  %v4788 = vpack.c.b16 %v4095, %v4088
  %v4789 = vpack.c.b16 %v4096, %v4089
  %v4790 = vpack.c.b16 %v4097, %v4090
  %v4791 = vpack.c.b16 %v4098, %v4091
  %v4792 = vpack.c.b16 %v4099, %v4092
  %v4793 = vpack.c.b16 %v4107, %v4100
  %v4794 = vpack.c.b16 %v4108, %v4101
  %v4795 = vpack.c.b16 %v4109, %v4102
  %v4796 = vpack.c.b16 %v4110, %v4103
  %v4797 = vpack.c.b16 %v4111, %v4104
  %v4798 = vpack.c.b16 %v4112, %v4105
  %v4799 = vpack.c.b16 %v4113, %v4106
  %v4800 = vpack.c.b16 %v4121, %v4114
  %v4801 = vpack.c.b16 %v4122, %v4115
  %v4802 = vpack.c.b16 %v4123, %v4116
  %v4803 = vpack.c.b16 %v4124, %v4117
  %v4804 = vpack.c.b16 %v4125, %v4118
  %v4805 = vpack.c.b16 %v4126, %v4119
  %v4806 = vpack.c.b16 %v4127, %v4120
  %v4807 = vpack.c.b16 %v4135, %v4128
  %v4808 = vpack.c.b16 %v4136, %v4129
  %v4809 = vpack.c.b16 %v4137, %v4130
  %v4810 = vpack.c.b16 %v4138, %v4131
  %v4811 = vpack.c.b16 %v4139, %v4132
  %v4812 = vpack.c.b16 %v4140, %v4133
  %v4813 = vpack.c.b16 %v4141, %v4134
  %v4814 = vpack.c.b16 %v4149, %v4142
  %v4815 = vpack.c.b16 %v4150, %v4143
  %v4816 = vpack.c.b16 %v4151, %v4144
  %v4817 = vpack.c.b16 %v4152, %v4145
  %v4818 = vpack.c.b16 %v4153, %v4146
  %v4819 = vpack.c.b16 %v4154, %v4147
  %v4820 = vpack.c.b16 %v4155, %v4148
  %v4821 = vpack.c.b16 %v4163, %v4156
  %v4822 = vpack.c.b16 %v4164, %v4157
  %v4823 = vpack.c.b16 %v4165, %v4158
  %v4824 = vpack.c.b16 %v4166, %v4159
  %v4825 = vpack.c.b16 %v4167, %v4160
  %v4826 = vpack.c.b16 %v4168, %v4161
  %v4827 = vpack.c.b16 %v4169, %v4162
  %v4828 = vpack.c.b16 %v4177, %v4170
  %v4829 = vpack.c.b16 %v4178, %v4171
  %v4830 = vpack.c.b16 %v4179, %v4172
  %v4831 = vpack.c.b16 %v4180, %v4173
  %v4832 = vpack.c.b16 %v4181, %v4174
  %v4833 = vpack.c.b16 %v4182, %v4175
  %v4834 = vpack.c.b16 %v4183, %v4176
  %v4835 = vpack.c.b16 %v4191, %v4184
  %v4836 = vpack.c.b16 %v4192, %v4185
  %v4837 = vpack.c.b16 %v4193, %v4186
  %v4838 = vpack.c.b16 %v4194, %v4187
  %v4839 = vpack.c.b16 %v4195, %v4188
  %v4840 = vpack.c.b16 %v4196, %v4189
  %v4841 = vpack.c.b16 %v4197, %v4190
  %v4842 = vpack.c.b16 %v4205, %v4198
  %v4843 = vpack.c.b16 %v4206, %v4199
  %v4844 = vpack.c.b16 %v4207, %v4200
  %v4845 = vpack.c.b16 %v4208, %v4201
  %v4846 = vpack.c.b16 %v4209, %v4202
  %v4847 = vpack.c.b16 %v4210, %v4203
  %v4848 = vpack.c.b16 %v4211, %v4204
  %v4849 = vpack.c.b16 %v4219, %v4212
  %v4850 = vpack.c.b16 %v4220, %v4213
  %v4851 = vpack.c.b16 %v4221, %v4214
  %v4852 = vpack.c.b16 %v4222, %v4215
  %v4853 = vpack.c.b16 %v4223, %v4216
  %v4854 = vpack.c.b16 %v4224, %v4217
  %v4855 = vpack.c.b16 %v4225, %v4218
  %v4856 = vpack.c.b16 %v4233, %v4226
  %v4857 = vpack.c.b16 %v4234, %v4227
  %v4858 = vpack.c.b16 %v4235, %v4228
  %v4859 = vpack.c.b16 %v4236, %v4229
  %v4860 = vpack.c.b16 %v4237, %v4230
  %v4861 = vpack.c.b16 %v4238, %v4231
  %v4862 = vpack.c.b16 %v4239, %v4232
  %v4863 = vpack.c.b16 %v4247, %v4240
  %v4864 = vpack.c.b16 %v4248, %v4241
  %v4865 = vpack.c.b16 %v4249, %v4242
  %v4866 = vpack.c.b16 %v4250, %v4243
  %v4867 = vpack.c.b16 %v4251, %v4244
  %v4868 = vpack.c.b16 %v4252, %v4245
  %v4869 = vpack.c.b16 %v4253, %v4246
  %v4870 = vpack.c.b16 %v4261, %v4254
  %v4871 = vpack.c.b16 %v4262, %v4255
  %v4872 = vpack.c.b16 %v4263, %v4256
  %v4873 = vpack.c.b16 %v4264, %v4257
  %v4874 = vpack.c.b16 %v4265, %v4258
  %v4875 = vpack.c.b16 %v4266, %v4259
  %v4876 = vpack.c.b16 %v4267, %v4260
  %v4877 = vpack.c.b16 %v4275, %v4268
  %v4878 = vpack.c.b16 %v4276, %v4269
  %v4879 = vpack.c.b16 %v4277, %v4270
  %v4880 = vpack.c.b16 %v4278, %v4271
  %v4881 = vpack.c.b16 %v4279, %v4272
  %v4882 = vpack.c.b16 %v4280, %v4273
  %v4883 = vpack.c.b16 %v4281, %v4274
  %v4884 = vpack.c.b16 %v4289, %v4282
  %v4885 = vpack.c.b16 %v4290, %v4283
  %v4886 = vpack.c.b16 %v4291, %v4284
  %v4887 = vpack.c.b16 %v4292, %v4285
  %v4888 = vpack.c.b16 %v4293, %v4286
  %v4889 = vpack.c.b16 %v4294, %v4287
  %v4890 = vpack.c.b16 %v4295, %v4288
  %v4891 = vpack.c.b16 %v4303, %v4296
  %v4892 = vpack.c.b16 %v4304, %v4297
  %v4893 = vpack.c.b16 %v4305, %v4298
  %v4894 = vpack.c.b16 %v4306, %v4299
  %v4895 = vpack.c.b16 %v4307, %v4300
  %v4896 = vpack.c.b16 %v4308, %v4301
  %v4897 = vpack.c.b16 %v4309, %v4302
  %v4898 = vpack.c.b16 %v4317, %v4310
  %v4899 = vpack.c.b16 %v4318, %v4311
  %v4900 = vpack.c.b16 %v4319, %v4312
  %v4901 = vpack.c.b16 %v4320, %v4313
  %v4902 = vpack.c.b16 %v4321, %v4314
  %v4903 = vpack.c.b16 %v4322, %v4315
  %v4904 = vpack.c.b16 %v4323, %v4316
  %v4905 = vpack.c.b16 %v4331, %v4324
  %v4906 = vpack.c.b16 %v4332, %v4325
  %v4907 = vpack.c.b16 %v4333, %v4326
  %v4908 = vpack.c.b16 %v4334, %v4327
  %v4909 = vpack.c.b16 %v4335, %v4328
  %v4910 = vpack.c.b16 %v4336, %v4329
  %v4911 = vpack.c.b16 %v4337, %v4330
  %v4912 = vpack.c.b16 %v4345, %v4338
  %v4913 = vpack.c.b16 %v4346, %v4339
  %v4914 = vpack.c.b16 %v4347, %v4340
  %v4915 = vpack.c.b16 %v4348, %v4341
  %v4916 = vpack.c.b16 %v4349, %v4342
  %v4917 = vpack.c.b16 %v4350, %v4343
  %v4918 = vpack.c.b16 %v4351, %v4344
  %v4919 = vpack.c.b16 %v4359, %v4352
  %v4920 = vpack.c.b16 %v4360, %v4353
  %v4921 = vpack.c.b16 %v4361, %v4354
  %v4922 = vpack.c.b16 %v4362, %v4355
  %v4923 = vpack.c.b16 %v4363, %v4356
  %v4924 = vpack.c.b16 %v4364, %v4357
  %v4925 = vpack.c.b16 %v4365, %v4358
  %v4926 = vpack.c.b16 %v4373, %v4366
  %v4927 = vpack.c.b16 %v4374, %v4367
  %v4928 = vpack.c.b16 %v4375, %v4368
  %v4929 = vpack.c.b16 %v4376, %v4369
  %v4930 = vpack.c.b16 %v4377, %v4370
  %v4931 = vpack.c.b16 %v4378, %v4371
  %v4932 = vpack.c.b16 %v4379, %v4372
  %v4933 = vpack.c.b16 %v4387, %v4380
  %v4934 = vpack.c.b16 %v4388, %v4381
  %v4935 = vpack.c.b16 %v4389, %v4382
  %v4936 = vpack.c.b16 %v4390, %v4383
  %v4937 = vpack.c.b16 %v4391, %v4384
  %v4938 = vpack.c.b16 %v4392, %v4385
  %v4939 = vpack.c.b16 %v4393, %v4386
  %v4940 = vpack.c.b16 %v4401, %v4394
  %v4941 = vpack.c.b16 %v4402, %v4395
  %v4942 = vpack.c.b16 %v4403, %v4396
  %v4943 = vpack.c.b16 %v4404, %v4397
  %v4944 = vpack.c.b16 %v4405, %v4398
  %v4945 = vpack.c.b16 %v4406, %v4399
  %v4946 = vpack.c.b16 %v4407, %v4400
  %v4947 = vpack.c.b16 %v4415, %v4408
  %v4948 = vpack.c.b16 %v4416, %v4409
  %v4949 = vpack.c.b16 %v4417, %v4410
  %v4950 = vpack.c.b16 %v4418, %v4411
  %v4951 = vpack.c.b16 %v4419, %v4412
  %v4952 = vpack.c.b16 %v4420, %v4413
  %v4953 = vpack.c.b16 %v4421, %v4414
  %v4954 = vpack.c.b16 %v4429, %v4422
  %v4955 = vpack.c.b16 %v4430, %v4423
  %v4956 = vpack.c.b16 %v4431, %v4424
  %v4957 = vpack.c.b16 %v4432, %v4425
  %v4958 = vpack.c.b16 %v4433, %v4426
  %v4959 = vpack.c.b16 %v4434, %v4427
  %v4960 = vpack.c.b16 %v4435, %v4428
  %v4961 = vpack.c.b16 %v4443, %v4436
  %v4962 = vpack.c.b16 %v4444, %v4437
  %v4963 = vpack.c.b16 %v4445, %v4438
  %v4964 = vpack.c.b16 %v4446, %v4439
  %v4965 = vpack.c.b16 %v4447, %v4440
  %v4966 = vpack.c.b16 %v4448, %v4441
  %v4967 = vpack.c.b16 %v4449, %v4442
  %v4968 = vpack.c.b16 %v4457, %v4450
  %v4969 = vpack.c.b16 %v4458, %v4451
  %v4970 = vpack.c.b16 %v4459, %v4452
  %v4971 = vpack.c.b16 %v4460, %v4453
  %v4972 = vpack.c.b16 %v4461, %v4454
  %v4973 = vpack.c.b16 %v4462, %v4455
  %v4974 = vpack.c.b16 %v4463, %v4456
  %v4975 = vpack.c.b16 %v4471, %v4464
  %v4976 = vpack.c.b16 %v4472, %v4465
  %v4977 = vpack.c.b16 %v4473, %v4466
  %v4978 = vpack.c.b16 %v4474, %v4467
  %v4979 = vpack.c.b16 %v4475, %v4468
  %v4980 = vpack.c.b16 %v4476, %v4469
  %v4981 = vpack.c.b16 %v4477, %v4470
  %v4982 = vpack.c.b16 %v4485, %v4478
  %v4983 = vpack.c.b16 %v4486, %v4479
  %v4984 = vpack.c.b16 %v4487, %v4480
  %v4985 = vpack.c.b16 %v4488, %v4481
  %v4986 = vpack.c.b16 %v4489, %v4482
  %v4987 = vpack.c.b16 %v4490, %v4483
  %v4988 = vpack.c.b16 %v4491, %v4484
  %v4989 = vpack.c.b16 %v4499, %v4492
  %v4990 = vpack.c.b16 %v4500, %v4493
  %v4991 = vpack.c.b16 %v4501, %v4494
  %v4992 = vpack.c.b16 %v4502, %v4495
  %v4993 = vpack.c.b16 %v4503, %v4496
  %v4994 = vpack.c.b16 %v4504, %v4497
  %v4995 = vpack.c.b16 %v4505, %v4498
  %v4996 = vpack.c.b16 %v4513, %v4506
  %v4997 = vpack.c.b16 %v4514, %v4507
  %v4998 = vpack.c.b16 %v4515, %v4508
  %v4999 = vpack.c.b16 %v4516, %v4509
  %v5000 = vpack.c.b16 %v4517, %v4510
  %v5001 = vpack.c.b16 %v4518, %v4511
  %v5002 = vpack.c.b16 %v4519, %v4512
  %v5003 = vpack.c.b16 %v4527, %v4520
  %v5004 = vpack.c.b16 %v4528, %v4521
  %v5005 = vpack.c.b16 %v4529, %v4522
  %v5006 = vpack.c.b16 %v4530, %v4523
  %v5007 = vpack.c.b16 %v4531, %v4524
  %v5008 = vpack.c.b16 %v4532, %v4525
  %v5009 = vpack.c.b16 %v4533, %v4526
  %v5010 = vpack.c.b16 %v4541, %v4534
  %v5011 = vpack.c.b16 %v4542, %v4535
  %v5012 = vpack.c.b16 %v4543, %v4536
  %v5013 = vpack.c.b16 %v4544, %v4537
  %v5014 = vpack.c.b16 %v4545, %v4538
  %v5015 = vpack.c.b16 %v4546, %v4539
  %v5016 = vpack.c.b16 %v4547, %v4540
  %v5017 = vpack.c.b16 %v4555, %v4548
  %v5018 = vpack.c.b16 %v4556, %v4549
  %v5019 = vpack.c.b16 %v4557, %v4550
  %v5020 = vpack.c.b16 %v4558, %v4551
  %v5021 = vpack.c.b16 %v4559, %v4552
  %v5022 = vpack.c.b16 %v4560, %v4553
  %v5023 = vpack.c.b16 %v4561, %v4554
  %v5024 = vpack.c.b16 %v4569, %v4562
  %v5025 = vpack.c.b16 %v4570, %v4563
  %v5026 = vpack.c.b16 %v4571, %v4564
  %v5027 = vpack.c.b16 %v4572, %v4565
  %v5028 = vpack.c.b16 %v4573, %v4566
  %v5029 = vpack.c.b16 %v4574, %v4567
  %v5030 = vpack.c.b16 %v4575, %v4568
  %v5031 = vpack.c.b16 %v4583, %v4576
  %v5032 = vpack.c.b16 %v4584, %v4577
  %v5033 = vpack.c.b16 %v4585, %v4578
  %v5034 = vpack.c.b16 %v4586, %v4579
  %v5035 = vpack.c.b16 %v4587, %v4580
  %v5036 = vpack.c.b16 %v4588, %v4581
  %v5037 = vpack.c.b16 %v4589, %v4582
  %5486 = vmatprep.subr.bf16.mxu0 %v4640
  %5487 = vmatpush1.bf16.msra.mxu0 %v4639
  %5488 = vmatprep.subr.bf16.mxu0 %v4633
  %5489 = vmatpush1.bf16.msra.mxu0 %v4632
  %5490 = vmatprep.subr.bf16.mxu0 %v4626
  %5491 = vmatpush1.bf16.msra.mxu0 %v4625
  %5492 = vmatprep.subr.bf16.mxu0 %v4619
  %5493 = vmatpush1.bf16.msra.mxu0 %v4618
  %5494 = vmatprep.subr.bf16.mxu0 %v4612
  %5495 = vmatpush1.bf16.msra.mxu0 %v4611
  %5496 = vmatprep.subr.bf16.mxu0 %v4605
  %5497 = vmatpush1.bf16.msra.mxu0 %v4604
  %5498 = vmatprep.subr.bf16.mxu0 %v4598
  %5499 = vmatpush1.bf16.msra.mxu0 %v4597
  %5500 = vmatprep.subr.bf16.mxu0 %v4591
  %5501 = vmatpush1.bf16.msra.mxu0 %v4590
  %5502 = vmatprep.subr.bf16.mxu0 %v4696
  %5503 = vmatpush2.bf16.msra.mxu0 %v4695
  %5504 = vmatprep.subr.bf16.mxu0 %v4689
  %5505 = vmatpush2.bf16.msra.mxu0 %v4688
  %5506 = vmatprep.subr.bf16.mxu0 %v4682
  %5507 = vmatpush2.bf16.msra.mxu0 %v4681
  %5508 = vmatprep.subr.bf16.mxu0 %v4675
  %5509 = vmatpush2.bf16.msra.mxu0 %v4674
  %5510 = vmatprep.subr.bf16.mxu0 %v4668
  %5511 = vmatpush2.bf16.msra.mxu0 %v4667
  %5512 = vmatprep.subr.bf16.mxu0 %v4661
  %5513 = vmatpush2.bf16.msra.mxu0 %v4660
  %5514 = vmatprep.subr.bf16.mxu0 %v4654
  %5515 = vmatpush2.bf16.msra.mxu0 %v4653
  %5516 = vmatprep.subr.bf16.mxu0 %v4647
  %5517 = vmatpush2.bf16.msra.mxu0 %v4646
  %5518 = vmatprep.mubr.bf16.mxu0 %v2626
  %5519 = vmatmul.mubr.bf16.gmra.mxu0 %v2625
  %v5520 = vpop.f32.mrf.mxu0
  %v5521 = vadd.f32 %v3150, %v5520
  %v5522 = vpop.f32.mrf.mxu0
  %v5523 = vadd.f32 %v3154, %v5522
  %v5524 = vpop.f32.mrf.mxu0
  %v5525 = vpop.f32.mrf.mxu0
  %5526 = vdwg.mxu0
  %5527 = vmatprep.subr.bf16.mxu0 %v4752
  %5528 = vmatpush1.bf16.msra.mxu0 %v4751
  %5529 = vmatprep.subr.bf16.mxu0 %v4745
  %5530 = vmatpush1.bf16.msra.mxu0 %v4744
  %5531 = vmatprep.subr.bf16.mxu0 %v4738
  %5532 = vmatpush1.bf16.msra.mxu0 %v4737
  %5533 = vmatprep.subr.bf16.mxu0 %v4731
  %5534 = vmatpush1.bf16.msra.mxu0 %v4730
  %5535 = vmatprep.subr.bf16.mxu0 %v4724
  %5536 = vmatpush1.bf16.msra.mxu0 %v4723
  %5537 = vmatprep.subr.bf16.mxu0 %v4717
  %5538 = vmatpush1.bf16.msra.mxu0 %v4716
  %5539 = vmatprep.subr.bf16.mxu0 %v4710
  %5540 = vmatpush1.bf16.msra.mxu0 %v4709
  %5541 = vmatprep.subr.bf16.mxu0 %v4703
  %5542 = vmatpush1.bf16.msra.mxu0 %v4702
  %5543 = vmatprep.subr.bf16.mxu0 %v4808
  %5544 = vmatpush2.bf16.msra.mxu0 %v4807
  %5545 = vmatprep.subr.bf16.mxu0 %v4801
  %5546 = vmatpush2.bf16.msra.mxu0 %v4800
  %5547 = vmatprep.subr.bf16.mxu0 %v4794
  %5548 = vmatpush2.bf16.msra.mxu0 %v4793
  %5549 = vmatprep.subr.bf16.mxu0 %v4787
  %5550 = vmatpush2.bf16.msra.mxu0 %v4786
  %5551 = vmatprep.subr.bf16.mxu0 %v4780
  %5552 = vmatpush2.bf16.msra.mxu0 %v4779
  %5553 = vmatprep.subr.bf16.mxu0 %v4773
  %5554 = vmatpush2.bf16.msra.mxu0 %v4772
  %5555 = vmatprep.subr.bf16.mxu0 %v4766
  %5556 = vmatpush2.bf16.msra.mxu0 %v4765
  %5557 = vmatprep.subr.bf16.mxu0 %v4759
  %5558 = vmatpush2.bf16.msra.mxu0 %v4758
  %5559 = vmatprep.mubr.bf16.mxu0 %v2628
  %5560 = vmatmul.mubr.bf16.gmra.mxu0 %v2627
  %v5561 = vpop.f32.mrf.mxu0
  %v5562 = vadd.f32 %v5521, %v5561
  %v5563 = vpop.f32.mrf.mxu0
  %v5564 = vadd.f32 %v5523, %v5563
  %v5565 = vpop.f32.mrf.mxu0
  %v5566 = vpop.f32.mrf.mxu0
  %5567 = vdwg.mxu0
  %5568 = vmatprep.subr.bf16.mxu0 %v4864
  %5569 = vmatpush1.bf16.msra.mxu0 %v4863
  %5570 = vmatprep.subr.bf16.mxu0 %v4857
  %5571 = vmatpush1.bf16.msra.mxu0 %v4856
  %5572 = vmatprep.subr.bf16.mxu0 %v4850
  %5573 = vmatpush1.bf16.msra.mxu0 %v4849
  %5574 = vmatprep.subr.bf16.mxu0 %v4843
  %5575 = vmatpush1.bf16.msra.mxu0 %v4842
  %5576 = vmatprep.subr.bf16.mxu0 %v4836
  %5577 = vmatpush1.bf16.msra.mxu0 %v4835
  %5578 = vmatprep.subr.bf16.mxu0 %v4829
  %5579 = vmatpush1.bf16.msra.mxu0 %v4828
  %5580 = vmatprep.subr.bf16.mxu0 %v4822
  %5581 = vmatpush1.bf16.msra.mxu0 %v4821
  %5582 = vmatprep.subr.bf16.mxu0 %v4815
  %5583 = vmatpush1.bf16.msra.mxu0 %v4814
  %5584 = vmatprep.subr.bf16.mxu0 %v4920
  %5585 = vmatpush2.bf16.msra.mxu0 %v4919
  %5586 = vmatprep.subr.bf16.mxu0 %v4913
  %5587 = vmatpush2.bf16.msra.mxu0 %v4912
  %5588 = vmatprep.subr.bf16.mxu0 %v4906
  %5589 = vmatpush2.bf16.msra.mxu0 %v4905
  %5590 = vmatprep.subr.bf16.mxu0 %v4899
  %5591 = vmatpush2.bf16.msra.mxu0 %v4898
  %5592 = vmatprep.subr.bf16.mxu0 %v4892
  %5593 = vmatpush2.bf16.msra.mxu0 %v4891
  %5594 = vmatprep.subr.bf16.mxu0 %v4885
  %5595 = vmatpush2.bf16.msra.mxu0 %v4884
  %5596 = vmatprep.subr.bf16.mxu0 %v4878
  %5597 = vmatpush2.bf16.msra.mxu0 %v4877
  %5598 = vmatprep.subr.bf16.mxu0 %v4871
  %5599 = vmatpush2.bf16.msra.mxu0 %v4870
  %5600 = vmatprep.mubr.bf16.mxu0 %v2630
  %5601 = vmatmul.mubr.bf16.gmra.mxu0 %v2629
  %v5602 = vpop.f32.mrf.mxu0
  %v5603 = vadd.f32 %v5562, %v5602
  %v5604 = vpop.f32.mrf.mxu0
  %v5605 = vadd.f32 %v5564, %v5604
  %v5606 = vpop.f32.mrf.mxu0
  %v5607 = vpop.f32.mrf.mxu0
  %5608 = vdwg.mxu0
  %5609 = vmatprep.subr.bf16.mxu0 %v4976
  %5610 = vmatpush1.bf16.msra.mxu0 %v4975
  %5611 = vmatprep.subr.bf16.mxu0 %v4969
  %5612 = vmatpush1.bf16.msra.mxu0 %v4968
  %5613 = vmatprep.subr.bf16.mxu0 %v4962
  %5614 = vmatpush1.bf16.msra.mxu0 %v4961
  %5615 = vmatprep.subr.bf16.mxu0 %v4955
  %5616 = vmatpush1.bf16.msra.mxu0 %v4954
  %5617 = vmatprep.subr.bf16.mxu0 %v4948
  %5618 = vmatpush1.bf16.msra.mxu0 %v4947
  %5619 = vmatprep.subr.bf16.mxu0 %v4941
  %5620 = vmatpush1.bf16.msra.mxu0 %v4940
  %5621 = vmatprep.subr.bf16.mxu0 %v4934
  %5622 = vmatpush1.bf16.msra.mxu0 %v4933
  %5623 = vmatprep.subr.bf16.mxu0 %v4927
  %5624 = vmatpush1.bf16.msra.mxu0 %v4926
  %5625 = vmatprep.subr.bf16.mxu0 %v5032
  %5626 = vmatpush2.bf16.msra.mxu0 %v5031
  %5627 = vmatprep.subr.bf16.mxu0 %v5025
  %5628 = vmatpush2.bf16.msra.mxu0 %v5024
  %5629 = vmatprep.subr.bf16.mxu0 %v5018
  %5630 = vmatpush2.bf16.msra.mxu0 %v5017
  %5631 = vmatprep.subr.bf16.mxu0 %v5011
  %5632 = vmatpush2.bf16.msra.mxu0 %v5010
  %5633 = vmatprep.subr.bf16.mxu0 %v5004
  %5634 = vmatpush2.bf16.msra.mxu0 %v5003
  %5635 = vmatprep.subr.bf16.mxu0 %v4997
  %5636 = vmatpush2.bf16.msra.mxu0 %v4996
  %5637 = vmatprep.subr.bf16.mxu0 %v4990
  %5638 = vmatpush2.bf16.msra.mxu0 %v4989
  %5639 = vmatprep.subr.bf16.mxu0 %v4983
  %5640 = vmatpush2.bf16.msra.mxu0 %v4982
  %5641 = vmatprep.mubr.bf16.mxu0 %v2632
  %5642 = vmatmul.mubr.bf16.gmra.mxu0 %v2631
  %v5643 = vpop.f32.mrf.mxu0
  %v5644 = vadd.f32 %v5603, %v5643
  %v5645 = vpop.f32.mrf.mxu0
  %v5646 = vadd.f32 %v5605, %v5645
  %v5647 = vpop.f32.mrf.mxu0
  %v5648 = vpop.f32.mrf.mxu0
  %5649 = vdwg.mxu0
  %5650 = vmatprep.subr.bf16.mxu0 %v4642
  %5651 = vmatpush1.bf16.msra.mxu0 %v4641
  %5652 = vmatprep.subr.bf16.mxu0 %v4635
  %5653 = vmatpush1.bf16.msra.mxu0 %v4634
  %5654 = vmatprep.subr.bf16.mxu0 %v4628
  %5655 = vmatpush1.bf16.msra.mxu0 %v4627
  %5656 = vmatprep.subr.bf16.mxu0 %v4621
  %5657 = vmatpush1.bf16.msra.mxu0 %v4620
  %5658 = vmatprep.subr.bf16.mxu0 %v4614
  %5659 = vmatpush1.bf16.msra.mxu0 %v4613
  %5660 = vmatprep.subr.bf16.mxu0 %v4607
  %5661 = vmatpush1.bf16.msra.mxu0 %v4606
  %5662 = vmatprep.subr.bf16.mxu0 %v4600
  %5663 = vmatpush1.bf16.msra.mxu0 %v4599
  %5664 = vmatprep.subr.bf16.mxu0 %v4593
  %5665 = vmatpush1.bf16.msra.mxu0 %v4592
  %5666 = vmatprep.subr.bf16.mxu0 %v4698
  %5667 = vmatpush2.bf16.msra.mxu0 %v4697
  %5668 = vmatprep.subr.bf16.mxu0 %v4691
  %5669 = vmatpush2.bf16.msra.mxu0 %v4690
  %5670 = vmatprep.subr.bf16.mxu0 %v4684
  %5671 = vmatpush2.bf16.msra.mxu0 %v4683
  %5672 = vmatprep.subr.bf16.mxu0 %v4677
  %5673 = vmatpush2.bf16.msra.mxu0 %v4676
  %5674 = vmatprep.subr.bf16.mxu0 %v4670
  %5675 = vmatpush2.bf16.msra.mxu0 %v4669
  %5676 = vmatprep.subr.bf16.mxu0 %v4663
  %5677 = vmatpush2.bf16.msra.mxu0 %v4662
  %5678 = vmatprep.subr.bf16.mxu0 %v4656
  %5679 = vmatpush2.bf16.msra.mxu0 %v4655
  %5680 = vmatprep.subr.bf16.mxu0 %v4649
  %5681 = vmatpush2.bf16.msra.mxu0 %v4648
  %5682 = vmatprep.mubr.bf16.mxu0 %v2626
  %5683 = vmatmul.mubr.bf16.gmra.mxu0 %v2625
  %v5684 = vpop.f32.mrf.mxu0
  %v5685 = vadd.f32 %v3158, %v5684
  %v5686 = vpop.f32.mrf.mxu0
  %v5687 = vadd.f32 %v3162, %v5686
  %v5688 = vpop.f32.mrf.mxu0
  %v5689 = vpop.f32.mrf.mxu0
  %5690 = vdwg.mxu0
  %5691 = vmatprep.subr.bf16.mxu0 %v4754
  %5692 = vmatpush1.bf16.msra.mxu0 %v4753
  %5693 = vmatprep.subr.bf16.mxu0 %v4747
  %5694 = vmatpush1.bf16.msra.mxu0 %v4746
  %5695 = vmatprep.subr.bf16.mxu0 %v4740
  %5696 = vmatpush1.bf16.msra.mxu0 %v4739
  %5697 = vmatprep.subr.bf16.mxu0 %v4733
  %5698 = vmatpush1.bf16.msra.mxu0 %v4732
  %5699 = vmatprep.subr.bf16.mxu0 %v4726
  %5700 = vmatpush1.bf16.msra.mxu0 %v4725
  %5701 = vmatprep.subr.bf16.mxu0 %v4719
  %5702 = vmatpush1.bf16.msra.mxu0 %v4718
  %5703 = vmatprep.subr.bf16.mxu0 %v4712
  %5704 = vmatpush1.bf16.msra.mxu0 %v4711
  %5705 = vmatprep.subr.bf16.mxu0 %v4705
  %5706 = vmatpush1.bf16.msra.mxu0 %v4704
  %5707 = vmatprep.subr.bf16.mxu0 %v4810
  %5708 = vmatpush2.bf16.msra.mxu0 %v4809
  %5709 = vmatprep.subr.bf16.mxu0 %v4803
  %5710 = vmatpush2.bf16.msra.mxu0 %v4802
  %5711 = vmatprep.subr.bf16.mxu0 %v4796
  %5712 = vmatpush2.bf16.msra.mxu0 %v4795
  %5713 = vmatprep.subr.bf16.mxu0 %v4789
  %5714 = vmatpush2.bf16.msra.mxu0 %v4788
  %5715 = vmatprep.subr.bf16.mxu0 %v4782
  %5716 = vmatpush2.bf16.msra.mxu0 %v4781
  %5717 = vmatprep.subr.bf16.mxu0 %v4775
  %5718 = vmatpush2.bf16.msra.mxu0 %v4774
  %5719 = vmatprep.subr.bf16.mxu0 %v4768
  %5720 = vmatpush2.bf16.msra.mxu0 %v4767
  %5721 = vmatprep.subr.bf16.mxu0 %v4761
  %5722 = vmatpush2.bf16.msra.mxu0 %v4760
  %5723 = vmatprep.mubr.bf16.mxu0 %v2628
  %5724 = vmatmul.mubr.bf16.gmra.mxu0 %v2627
  %v5725 = vpop.f32.mrf.mxu0
  %v5726 = vadd.f32 %v5685, %v5725
  %v5727 = vpop.f32.mrf.mxu0
  %v5728 = vadd.f32 %v5687, %v5727
  %v5729 = vpop.f32.mrf.mxu0
  %v5730 = vpop.f32.mrf.mxu0
  %5731 = vdwg.mxu0
  %5732 = vmatprep.subr.bf16.mxu0 %v4866
  %5733 = vmatpush1.bf16.msra.mxu0 %v4865
  %5734 = vmatprep.subr.bf16.mxu0 %v4859
  %5735 = vmatpush1.bf16.msra.mxu0 %v4858
  %5736 = vmatprep.subr.bf16.mxu0 %v4852
  %5737 = vmatpush1.bf16.msra.mxu0 %v4851
  %5738 = vmatprep.subr.bf16.mxu0 %v4845
  %5739 = vmatpush1.bf16.msra.mxu0 %v4844
  %5740 = vmatprep.subr.bf16.mxu0 %v4838
  %5741 = vmatpush1.bf16.msra.mxu0 %v4837
  %5742 = vmatprep.subr.bf16.mxu0 %v4831
  %5743 = vmatpush1.bf16.msra.mxu0 %v4830
  %5744 = vmatprep.subr.bf16.mxu0 %v4824
  %5745 = vmatpush1.bf16.msra.mxu0 %v4823
  %5746 = vmatprep.subr.bf16.mxu0 %v4817
  %5747 = vmatpush1.bf16.msra.mxu0 %v4816
  %5748 = vmatprep.subr.bf16.mxu0 %v4922
  %5749 = vmatpush2.bf16.msra.mxu0 %v4921
  %5750 = vmatprep.subr.bf16.mxu0 %v4915
  %5751 = vmatpush2.bf16.msra.mxu0 %v4914
  %5752 = vmatprep.subr.bf16.mxu0 %v4908
  %5753 = vmatpush2.bf16.msra.mxu0 %v4907
  %5754 = vmatprep.subr.bf16.mxu0 %v4901
  %5755 = vmatpush2.bf16.msra.mxu0 %v4900
  %5756 = vmatprep.subr.bf16.mxu0 %v4894
  %5757 = vmatpush2.bf16.msra.mxu0 %v4893
  %5758 = vmatprep.subr.bf16.mxu0 %v4887
  %5759 = vmatpush2.bf16.msra.mxu0 %v4886
  %5760 = vmatprep.subr.bf16.mxu0 %v4880
  %5761 = vmatpush2.bf16.msra.mxu0 %v4879
  %5762 = vmatprep.subr.bf16.mxu0 %v4873
  %5763 = vmatpush2.bf16.msra.mxu0 %v4872
  %5764 = vmatprep.mubr.bf16.mxu0 %v2630
  %5765 = vmatmul.mubr.bf16.gmra.mxu0 %v2629
  %v5766 = vpop.f32.mrf.mxu0
  %v5767 = vadd.f32 %v5726, %v5766
  %v5768 = vpop.f32.mrf.mxu0
  %v5769 = vadd.f32 %v5728, %v5768
  %v5770 = vpop.f32.mrf.mxu0
  %v5771 = vpop.f32.mrf.mxu0
  %5772 = vdwg.mxu0
  %5773 = vmatprep.subr.bf16.mxu0 %v4978
  %5774 = vmatpush1.bf16.msra.mxu0 %v4977
  %5775 = vmatprep.subr.bf16.mxu0 %v4971
  %5776 = vmatpush1.bf16.msra.mxu0 %v4970
  %5777 = vmatprep.subr.bf16.mxu0 %v4964
  %5778 = vmatpush1.bf16.msra.mxu0 %v4963
  %5779 = vmatprep.subr.bf16.mxu0 %v4957
  %5780 = vmatpush1.bf16.msra.mxu0 %v4956
  %5781 = vmatprep.subr.bf16.mxu0 %v4950
  %5782 = vmatpush1.bf16.msra.mxu0 %v4949
  %5783 = vmatprep.subr.bf16.mxu0 %v4943
  %5784 = vmatpush1.bf16.msra.mxu0 %v4942
  %5785 = vmatprep.subr.bf16.mxu0 %v4936
  %5786 = vmatpush1.bf16.msra.mxu0 %v4935
  %5787 = vmatprep.subr.bf16.mxu0 %v4929
  %5788 = vmatpush1.bf16.msra.mxu0 %v4928
  %5789 = vmatprep.subr.bf16.mxu0 %v5034
  %5790 = vmatpush2.bf16.msra.mxu0 %v5033
  %5791 = vmatprep.subr.bf16.mxu0 %v5027
  %5792 = vmatpush2.bf16.msra.mxu0 %v5026
  %5793 = vmatprep.subr.bf16.mxu0 %v5020
  %5794 = vmatpush2.bf16.msra.mxu0 %v5019
  %5795 = vmatprep.subr.bf16.mxu0 %v5013
  %5796 = vmatpush2.bf16.msra.mxu0 %v5012
  %5797 = vmatprep.subr.bf16.mxu0 %v5006
  %5798 = vmatpush2.bf16.msra.mxu0 %v5005
  %5799 = vmatprep.subr.bf16.mxu0 %v4999
  %5800 = vmatpush2.bf16.msra.mxu0 %v4998
  %5801 = vmatprep.subr.bf16.mxu0 %v4992
  %5802 = vmatpush2.bf16.msra.mxu0 %v4991
  %5803 = vmatprep.subr.bf16.mxu0 %v4985
  %5804 = vmatpush2.bf16.msra.mxu0 %v4984
  %5805 = vmatprep.mubr.bf16.mxu0 %v2632
  %5806 = vmatmul.mubr.bf16.gmra.mxu0 %v2631
  %v5807 = vpop.f32.mrf.mxu0
  %v5808 = vadd.f32 %v5767, %v5807
  %v5809 = vpop.f32.mrf.mxu0
  %v5810 = vadd.f32 %v5769, %v5809
  %v5811 = vpop.f32.mrf.mxu0
  %v5812 = vpop.f32.mrf.mxu0
  %5813 = vdwg.mxu0
  %5814 = vmatprep.subr.bf16.mxu0 %v4644
  %5815 = vmatpush1.bf16.msra.mxu0 %v4643
  %5816 = vmatprep.subr.bf16.mxu0 %v4637
  %5817 = vmatpush1.bf16.msra.mxu0 %v4636
  %5818 = vmatprep.subr.bf16.mxu0 %v4630
  %5819 = vmatpush1.bf16.msra.mxu0 %v4629
  %5820 = vmatprep.subr.bf16.mxu0 %v4623
  %5821 = vmatpush1.bf16.msra.mxu0 %v4622
  %5822 = vmatprep.subr.bf16.mxu0 %v4616
  %5823 = vmatpush1.bf16.msra.mxu0 %v4615
  %5824 = vmatprep.subr.bf16.mxu0 %v4609
  %5825 = vmatpush1.bf16.msra.mxu0 %v4608
  %5826 = vmatprep.subr.bf16.mxu0 %v4602
  %5827 = vmatpush1.bf16.msra.mxu0 %v4601
  %5828 = vmatprep.subr.bf16.mxu0 %v4595
  %5829 = vmatpush1.bf16.msra.mxu0 %v4594
  %5830 = vmatprep.subr.bf16.mxu0 %v4700
  %5831 = vmatpush2.bf16.msra.mxu0 %v4699
  %5832 = vmatprep.subr.bf16.mxu0 %v4693
  %5833 = vmatpush2.bf16.msra.mxu0 %v4692
  %5834 = vmatprep.subr.bf16.mxu0 %v4686
  %5835 = vmatpush2.bf16.msra.mxu0 %v4685
  %5836 = vmatprep.subr.bf16.mxu0 %v4679
  %5837 = vmatpush2.bf16.msra.mxu0 %v4678
  %5838 = vmatprep.subr.bf16.mxu0 %v4672
  %5839 = vmatpush2.bf16.msra.mxu0 %v4671
  %5840 = vmatprep.subr.bf16.mxu0 %v4665
  %5841 = vmatpush2.bf16.msra.mxu0 %v4664
  %5842 = vmatprep.subr.bf16.mxu0 %v4658
  %5843 = vmatpush2.bf16.msra.mxu0 %v4657
  %5844 = vmatprep.subr.bf16.mxu0 %v4651
  %5845 = vmatpush2.bf16.msra.mxu0 %v4650
  %5846 = vmatprep.mubr.bf16.mxu0 %v2626
  %5847 = vmatmul.mubr.bf16.gmra.mxu0 %v2625
  %v5848 = vpop.f32.mrf.mxu0
  %v5849 = vadd.f32 %v3166, %v5848
  %v5850 = vpop.f32.mrf.mxu0
  %v5851 = vadd.f32 %v3170, %v5850
  %v5852 = vpop.f32.mrf.mxu0
  %v5853 = vpop.f32.mrf.mxu0
  %5854 = vdwg.mxu0
  %5855 = vmatprep.subr.bf16.mxu0 %v4756
  %5856 = vmatpush1.bf16.msra.mxu0 %v4755
  %5857 = vmatprep.subr.bf16.mxu0 %v4749
  %5858 = vmatpush1.bf16.msra.mxu0 %v4748
  %5859 = vmatprep.subr.bf16.mxu0 %v4742
  %5860 = vmatpush1.bf16.msra.mxu0 %v4741
  %5861 = vmatprep.subr.bf16.mxu0 %v4735
  %5862 = vmatpush1.bf16.msra.mxu0 %v4734
  %5863 = vmatprep.subr.bf16.mxu0 %v4728
  %5864 = vmatpush1.bf16.msra.mxu0 %v4727
  %5865 = vmatprep.subr.bf16.mxu0 %v4721
  %5866 = vmatpush1.bf16.msra.mxu0 %v4720
  %5867 = vmatprep.subr.bf16.mxu0 %v4714
  %5868 = vmatpush1.bf16.msra.mxu0 %v4713
  %5869 = vmatprep.subr.bf16.mxu0 %v4707
  %5870 = vmatpush1.bf16.msra.mxu0 %v4706
  %5871 = vmatprep.subr.bf16.mxu0 %v4812
  %5872 = vmatpush2.bf16.msra.mxu0 %v4811
  %5873 = vmatprep.subr.bf16.mxu0 %v4805
  %5874 = vmatpush2.bf16.msra.mxu0 %v4804
  %5875 = vmatprep.subr.bf16.mxu0 %v4798
  %5876 = vmatpush2.bf16.msra.mxu0 %v4797
  %5877 = vmatprep.subr.bf16.mxu0 %v4791
  %5878 = vmatpush2.bf16.msra.mxu0 %v4790
  %5879 = vmatprep.subr.bf16.mxu0 %v4784
  %5880 = vmatpush2.bf16.msra.mxu0 %v4783
  %5881 = vmatprep.subr.bf16.mxu0 %v4777
  %5882 = vmatpush2.bf16.msra.mxu0 %v4776
  %5883 = vmatprep.subr.bf16.mxu0 %v4770
  %5884 = vmatpush2.bf16.msra.mxu0 %v4769
  %5885 = vmatprep.subr.bf16.mxu0 %v4763
  %5886 = vmatpush2.bf16.msra.mxu0 %v4762
  %5887 = vmatprep.mubr.bf16.mxu0 %v2628
  %5888 = vmatmul.mubr.bf16.gmra.mxu0 %v2627
  %v5889 = vpop.f32.mrf.mxu0
  %v5890 = vadd.f32 %v5849, %v5889
  %v5891 = vpop.f32.mrf.mxu0
  %v5892 = vadd.f32 %v5851, %v5891
  %v5893 = vpop.f32.mrf.mxu0
  %v5894 = vpop.f32.mrf.mxu0
  %5895 = vdwg.mxu0
  %5896 = vmatprep.subr.bf16.mxu0 %v4868
  %5897 = vmatpush1.bf16.msra.mxu0 %v4867
  %5898 = vmatprep.subr.bf16.mxu0 %v4861
  %5899 = vmatpush1.bf16.msra.mxu0 %v4860
  %5900 = vmatprep.subr.bf16.mxu0 %v4854
  %5901 = vmatpush1.bf16.msra.mxu0 %v4853
  %5902 = vmatprep.subr.bf16.mxu0 %v4847
  %5903 = vmatpush1.bf16.msra.mxu0 %v4846
  %5904 = vmatprep.subr.bf16.mxu0 %v4840
  %5905 = vmatpush1.bf16.msra.mxu0 %v4839
  %5906 = vmatprep.subr.bf16.mxu0 %v4833
  %5907 = vmatpush1.bf16.msra.mxu0 %v4832
  %5908 = vmatprep.subr.bf16.mxu0 %v4826
  %5909 = vmatpush1.bf16.msra.mxu0 %v4825
  %5910 = vmatprep.subr.bf16.mxu0 %v4819
  %5911 = vmatpush1.bf16.msra.mxu0 %v4818
  %5912 = vmatprep.subr.bf16.mxu0 %v4924
  %5913 = vmatpush2.bf16.msra.mxu0 %v4923
  %5914 = vmatprep.subr.bf16.mxu0 %v4917
  %5915 = vmatpush2.bf16.msra.mxu0 %v4916
  %5916 = vmatprep.subr.bf16.mxu0 %v4910
  %5917 = vmatpush2.bf16.msra.mxu0 %v4909
  %5918 = vmatprep.subr.bf16.mxu0 %v4903
  %5919 = vmatpush2.bf16.msra.mxu0 %v4902
  %5920 = vmatprep.subr.bf16.mxu0 %v4896
  %5921 = vmatpush2.bf16.msra.mxu0 %v4895
  %5922 = vmatprep.subr.bf16.mxu0 %v4889
  %5923 = vmatpush2.bf16.msra.mxu0 %v4888
  %5924 = vmatprep.subr.bf16.mxu0 %v4882
  %5925 = vmatpush2.bf16.msra.mxu0 %v4881
  %5926 = vmatprep.subr.bf16.mxu0 %v4875
  %5927 = vmatpush2.bf16.msra.mxu0 %v4874
  %5928 = vmatprep.mubr.bf16.mxu0 %v2630
  %5929 = vmatmul.mubr.bf16.gmra.mxu0 %v2629
  %v5930 = vpop.f32.mrf.mxu0
  %v5931 = vadd.f32 %v5890, %v5930
  %v5932 = vpop.f32.mrf.mxu0
  %v5933 = vadd.f32 %v5892, %v5932
  %v5934 = vpop.f32.mrf.mxu0
  %v5935 = vpop.f32.mrf.mxu0
  %5936 = vdwg.mxu0
  %5937 = vmatprep.subr.bf16.mxu0 %v4980
  %5938 = vmatpush1.bf16.msra.mxu0 %v4979
  %5939 = vmatprep.subr.bf16.mxu0 %v4973
  %5940 = vmatpush1.bf16.msra.mxu0 %v4972
  %5941 = vmatprep.subr.bf16.mxu0 %v4966
  %5942 = vmatpush1.bf16.msra.mxu0 %v4965
  %5943 = vmatprep.subr.bf16.mxu0 %v4959
  %5944 = vmatpush1.bf16.msra.mxu0 %v4958
  %5945 = vmatprep.subr.bf16.mxu0 %v4952
  %5946 = vmatpush1.bf16.msra.mxu0 %v4951
  %5947 = vmatprep.subr.bf16.mxu0 %v4945
  %5948 = vmatpush1.bf16.msra.mxu0 %v4944
  %5949 = vmatprep.subr.bf16.mxu0 %v4938
  %5950 = vmatpush1.bf16.msra.mxu0 %v4937
  %5951 = vmatprep.subr.bf16.mxu0 %v4931
  %5952 = vmatpush1.bf16.msra.mxu0 %v4930
  %5953 = vmatprep.subr.bf16.mxu0 %v5036
  %5954 = vmatpush2.bf16.msra.mxu0 %v5035
  %5955 = vmatprep.subr.bf16.mxu0 %v5029
  %5956 = vmatpush2.bf16.msra.mxu0 %v5028
  %5957 = vmatprep.subr.bf16.mxu0 %v5022
  %5958 = vmatpush2.bf16.msra.mxu0 %v5021
  %5959 = vmatprep.subr.bf16.mxu0 %v5015
  %5960 = vmatpush2.bf16.msra.mxu0 %v5014
  %5961 = vmatprep.subr.bf16.mxu0 %v5008
  %5962 = vmatpush2.bf16.msra.mxu0 %v5007
  %5963 = vmatprep.subr.bf16.mxu0 %v5001
  %5964 = vmatpush2.bf16.msra.mxu0 %v5000
  %5965 = vmatprep.subr.bf16.mxu0 %v4994
  %5966 = vmatpush2.bf16.msra.mxu0 %v4993
  %5967 = vmatprep.subr.bf16.mxu0 %v4987
  %5968 = vmatpush2.bf16.msra.mxu0 %v4986
  %5969 = vmatprep.mubr.bf16.mxu0 %v2632
  %5970 = vmatmul.mubr.bf16.gmra.mxu0 %v2631
  %v5971 = vpop.f32.mrf.mxu0
  %v5972 = vadd.f32 %v5931, %v5971
  %v5973 = vpop.f32.mrf.mxu0
  %v5974 = vadd.f32 %v5933, %v5973
  %v5975 = vpop.f32.mrf.mxu0
  %v5976 = vpop.f32.mrf.mxu0
  %5977 = vdwg.mxu0
  %5978 = vmatprep.subr.bf16.mxu0 0
  %5979 = vmatpush1.bf16.msra.mxu0 %v4645
  %5980 = vmatprep.subr.bf16.mxu0 0
  %5981 = vmatpush1.bf16.msra.mxu0 %v4638
  %5982 = vmatprep.subr.bf16.mxu0 0
  %5983 = vmatpush1.bf16.msra.mxu0 %v4631
  %5984 = vmatprep.subr.bf16.mxu0 0
  %5985 = vmatpush1.bf16.msra.mxu0 %v4624
  %5986 = vmatprep.subr.bf16.mxu0 0
  %5987 = vmatpush1.bf16.msra.mxu0 %v4617
  %5988 = vmatprep.subr.bf16.mxu0 0
  %5989 = vmatpush1.bf16.msra.mxu0 %v4610
  %5990 = vmatprep.subr.bf16.mxu0 0
  %5991 = vmatpush1.bf16.msra.mxu0 %v4603
  %5992 = vmatprep.subr.bf16.mxu0 0
  %5993 = vmatpush1.bf16.msra.mxu0 %v4596
  %5994 = vmatprep.subr.bf16.mxu0 0
  %5995 = vmatpush2.bf16.msra.mxu0 %v4701
  %5996 = vmatprep.subr.bf16.mxu0 0
  %5997 = vmatpush2.bf16.msra.mxu0 %v4694
  %5998 = vmatprep.subr.bf16.mxu0 0
  %5999 = vmatpush2.bf16.msra.mxu0 %v4687
  %6000 = vmatprep.subr.bf16.mxu0 0
  %6001 = vmatpush2.bf16.msra.mxu0 %v4680
  %6002 = vmatprep.subr.bf16.mxu0 0
  %6003 = vmatpush2.bf16.msra.mxu0 %v4673
  %6004 = vmatprep.subr.bf16.mxu0 0
  %6005 = vmatpush2.bf16.msra.mxu0 %v4666
  %6006 = vmatprep.subr.bf16.mxu0 0
  %6007 = vmatpush2.bf16.msra.mxu0 %v4659
  %6008 = vmatprep.subr.bf16.mxu0 0
  %6009 = vmatpush2.bf16.msra.mxu0 %v4652
  %6010 = vmatprep.mubr.bf16.mxu0 %v2626
  %6011 = vmatmul.mubr.bf16.gmra.mxu0 %v2625
  %v6012 = vpop.f32.mrf.mxu0
  %v6013 = vadd.f32 %v3174, %v6012
  %v6014 = vpop.f32.mrf.mxu0
  %v6015 = vpop.f32.mrf.mxu0
  %v6016 = vpop.f32.mrf.mxu0
  %6017 = vdwg.mxu0
  %6018 = vmatprep.subr.bf16.mxu0 0
  %6019 = vmatpush1.bf16.msra.mxu0 %v4757
  %6020 = vmatprep.subr.bf16.mxu0 0
  %6021 = vmatpush1.bf16.msra.mxu0 %v4750
  %6022 = vmatprep.subr.bf16.mxu0 0
  %6023 = vmatpush1.bf16.msra.mxu0 %v4743
  %6024 = vmatprep.subr.bf16.mxu0 0
  %6025 = vmatpush1.bf16.msra.mxu0 %v4736
  %6026 = vmatprep.subr.bf16.mxu0 0
  %6027 = vmatpush1.bf16.msra.mxu0 %v4729
  %6028 = vmatprep.subr.bf16.mxu0 0
  %6029 = vmatpush1.bf16.msra.mxu0 %v4722
  %6030 = vmatprep.subr.bf16.mxu0 0
  %6031 = vmatpush1.bf16.msra.mxu0 %v4715
  %6032 = vmatprep.subr.bf16.mxu0 0
  %6033 = vmatpush1.bf16.msra.mxu0 %v4708
  %6034 = vmatprep.subr.bf16.mxu0 0
  %6035 = vmatpush2.bf16.msra.mxu0 %v4813
  %6036 = vmatprep.subr.bf16.mxu0 0
  %6037 = vmatpush2.bf16.msra.mxu0 %v4806
  %6038 = vmatprep.subr.bf16.mxu0 0
  %6039 = vmatpush2.bf16.msra.mxu0 %v4799
  %6040 = vmatprep.subr.bf16.mxu0 0
  %6041 = vmatpush2.bf16.msra.mxu0 %v4792
  %6042 = vmatprep.subr.bf16.mxu0 0
  %6043 = vmatpush2.bf16.msra.mxu0 %v4785
  %6044 = vmatprep.subr.bf16.mxu0 0
  %6045 = vmatpush2.bf16.msra.mxu0 %v4778
  %6046 = vmatprep.subr.bf16.mxu0 0
  %6047 = vmatpush2.bf16.msra.mxu0 %v4771
  %6048 = vmatprep.subr.bf16.mxu0 0
  %6049 = vmatpush2.bf16.msra.mxu0 %v4764
  %6050 = vmatprep.mubr.bf16.mxu0 %v2628
  %6051 = vmatmul.mubr.bf16.gmra.mxu0 %v2627
  %v6052 = vpop.f32.mrf.mxu0
  %v6053 = vadd.f32 %v6013, %v6052
  %v6054 = vpop.f32.mrf.mxu0
  %v6055 = vpop.f32.mrf.mxu0
  %v6056 = vpop.f32.mrf.mxu0
  %6057 = vdwg.mxu0
  %6058 = vmatprep.subr.bf16.mxu0 0
  %6059 = vmatpush1.bf16.msra.mxu0 %v4869
  %6060 = vmatprep.subr.bf16.mxu0 0
  %6061 = vmatpush1.bf16.msra.mxu0 %v4862
  %6062 = vmatprep.subr.bf16.mxu0 0
  %6063 = vmatpush1.bf16.msra.mxu0 %v4855
  %6064 = vmatprep.subr.bf16.mxu0 0
  %6065 = vmatpush1.bf16.msra.mxu0 %v4848
  %6066 = vmatprep.subr.bf16.mxu0 0
  %6067 = vmatpush1.bf16.msra.mxu0 %v4841
  %6068 = vmatprep.subr.bf16.mxu0 0
  %6069 = vmatpush1.bf16.msra.mxu0 %v4834
  %6070 = vmatprep.subr.bf16.mxu0 0
  %6071 = vmatpush1.bf16.msra.mxu0 %v4827
  %6072 = vmatprep.subr.bf16.mxu0 0
  %6073 = vmatpush1.bf16.msra.mxu0 %v4820
  %6074 = vmatprep.subr.bf16.mxu0 0
  %6075 = vmatpush2.bf16.msra.mxu0 %v4925
  %6076 = vmatprep.subr.bf16.mxu0 0
  %6077 = vmatpush2.bf16.msra.mxu0 %v4918
  %6078 = vmatprep.subr.bf16.mxu0 0
  %6079 = vmatpush2.bf16.msra.mxu0 %v4911
  %6080 = vmatprep.subr.bf16.mxu0 0
  %6081 = vmatpush2.bf16.msra.mxu0 %v4904
  %6082 = vmatprep.subr.bf16.mxu0 0
  %6083 = vmatpush2.bf16.msra.mxu0 %v4897
  %6084 = vmatprep.subr.bf16.mxu0 0
  %6085 = vmatpush2.bf16.msra.mxu0 %v4890
  %6086 = vmatprep.subr.bf16.mxu0 0
  %6087 = vmatpush2.bf16.msra.mxu0 %v4883
  %6088 = vmatprep.subr.bf16.mxu0 0
  %6089 = vmatpush2.bf16.msra.mxu0 %v4876
  %6090 = vmatprep.mubr.bf16.mxu0 %v2630
  %6091 = vmatmul.mubr.bf16.gmra.mxu0 %v2629
  %v6092 = vpop.f32.mrf.mxu0
  %v6093 = vadd.f32 %v6053, %v6092
  %v6094 = vpop.f32.mrf.mxu0
  %v6095 = vpop.f32.mrf.mxu0
  %v6096 = vpop.f32.mrf.mxu0
  %6097 = vdwg.mxu0
  %6098 = vmatprep.subr.bf16.mxu0 0
  %6099 = vmatpush1.bf16.msra.mxu0 %v4981
  %6100 = vmatprep.subr.bf16.mxu0 0
  %6101 = vmatpush1.bf16.msra.mxu0 %v4974
  %6102 = vmatprep.subr.bf16.mxu0 0
  %6103 = vmatpush1.bf16.msra.mxu0 %v4967
  %6104 = vmatprep.subr.bf16.mxu0 0
  %6105 = vmatpush1.bf16.msra.mxu0 %v4960
  %6106 = vmatprep.subr.bf16.mxu0 0
  %6107 = vmatpush1.bf16.msra.mxu0 %v4953
  %6108 = vmatprep.subr.bf16.mxu0 0
  %6109 = vmatpush1.bf16.msra.mxu0 %v4946
  %6110 = vmatprep.subr.bf16.mxu0 0
  %6111 = vmatpush1.bf16.msra.mxu0 %v4939
  %6112 = vmatprep.subr.bf16.mxu0 0
  %6113 = vmatpush1.bf16.msra.mxu0 %v4932
  %6114 = vmatprep.subr.bf16.mxu0 0
  %6115 = vmatpush2.bf16.msra.mxu0 %v5037
  %6116 = vmatprep.subr.bf16.mxu0 0
  %6117 = vmatpush2.bf16.msra.mxu0 %v5030
  %6118 = vmatprep.subr.bf16.mxu0 0
  %6119 = vmatpush2.bf16.msra.mxu0 %v5023
  %6120 = vmatprep.subr.bf16.mxu0 0
  %6121 = vmatpush2.bf16.msra.mxu0 %v5016
  %6122 = vmatprep.subr.bf16.mxu0 0
  %6123 = vmatpush2.bf16.msra.mxu0 %v5009
  %6124 = vmatprep.subr.bf16.mxu0 0
  %6125 = vmatpush2.bf16.msra.mxu0 %v5002
  %6126 = vmatprep.subr.bf16.mxu0 0
  %6127 = vmatpush2.bf16.msra.mxu0 %v4995
  %6128 = vmatprep.subr.bf16.mxu0 0
  %6129 = vmatpush2.bf16.msra.mxu0 %v4988
  %6130 = vmatprep.mubr.bf16.mxu0 %v2632
  %6131 = vmatmul.mubr.bf16.gmra.mxu0 %v2631
  %v6132 = vpop.f32.mrf.mxu0
  %v6133 = vadd.f32 %v6093, %v6132
  %v6134 = vpop.f32.mrf.mxu0
  %v6135 = vpop.f32.mrf.mxu0
  %v6136 = vpop.f32.mrf.mxu0
  %6137 = vdwg.mxu0
  %v6138 = vtanh.pop %v5644
  %v6139 = vtanh.pop %v5646
  %v6140 = vtanh.pop %v5808
  %v6141 = vtanh.pop %v5810
  %v6142 = vtanh.pop %v5972
  %v6143 = vtanh.pop %v5974
  %v6144 = vtanh.pop %v6133
  %6145 = vst [vmem:[%s9] sm:$0xff] %v6138
  %6146 = vst [vmem:[%s9 + $0x8] sm:$0xff] %v6139
  %6147 = vst [vmem:[%s9 + $0x10] sm:$0xff] %v6140
  %6148 = vst [vmem:[%s9 + $0x18] sm:$0xff] %v6141
  %6149 = vst [vmem:[%s9 + $0x20] sm:$0xff] %v6142
  %6150 = vst [vmem:[%s9 + $0x28] sm:$0xff] %v6143
  %vm6151 = vcmask 130048
  %6152 = vst.msk [vmem:[%s9 + $0x30] sm:$0xff] %vm6151, %v6144
  // Predicated region
  $region38: #{generator_forward.1} parent=0 // pred_check
    _
  $region39: #{generator_forward.1} parent=0 // pred_check_branch
    %6154 = sbr.rel (0) target = $region41
  $region40: #{generator_forward.1} parent=0 // pred_region
    _
  $region41: #{generator_forward.1} parent=0 // pred_fallthru
    _
  // Predicated region
  $region42: #{generator_forward.1} parent=0 // pred_check
    _
  $region43: #{generator_forward.1} parent=0 // pred_check_branch
    %6156 = sbr.rel (0) target = $region45
  $region44: #{generator_forward.1} parent=0 // pred_region
    _
  $region45: #{generator_forward.1} parent=0 // pred_fallthru
    _

</llo_original>
